<compile_context>
chip_gen: v7x
topology: tpu7x:2x2x1
jax: 0.10.0
libtpu: 0.0.40
codegen_flags: <defaults>
</compile_context>

<pallas_src>
import math
import numpy as np

import jax
import jax.numpy as jnp
from jax.experimental import pallas as pl
from jax.experimental.pallas import tpu as pltpu

REGION_NUM = 2
HIDDEN_SCALE = 8
KSIZE = 15           # HAGuide gaussian kernel size (module default)
BN_EPS = 1e-5


# ----------------------------------------------------------------------------- host-side params
def _norm_cdf(v):
    return 0.5 * (1.0 + math.erf(v / math.sqrt(2.0)))


def _get_gaussian_kernel(kernlen=15, nsig=2.6):
    """Deterministic re-implementation of _get_kernel (scipy-free)."""
    interval = (2.0 * nsig + 1.0) / kernlen
    xs = np.linspace(-nsig - interval / 2.0, nsig + interval / 2.0, kernlen + 1)
    cdf = np.array([_norm_cdf(v) for v in xs])
    kern1d = np.diff(cdf)
    kernel_raw = np.sqrt(np.outer(kern1d, kern1d))
    return (kernel_raw / kernel_raw.sum()).astype(np.float32)


def build_blur_matrix(H, W, gk2d):
    """(HW, HW) matrix M with  M @ pred_flat == conv2d(pred, gk2d, padding=K//2)  flattened."""
    K = gk2d.shape[0]
    pad = K // 2
    Mmat = np.zeros((H * W, H * W), np.float32)
    for h in range(H):
        for w in range(W):
            s = h * W + w
            for dy in range(K):
                for dx in range(K):
                    hh, ww = h + dy - pad, w + dx - pad
                    if 0 <= hh < H and 0 <= ww < W:
                        Mmat[s, hh * W + ww] += gk2d[dy, dx]
    return Mmat


def init_layer_params(key, C_in, C_out):
    """One SConv2d_v3 conv_kernel branch, pre-arranged (host-side, free) for the kernel.

    In-kernel math per sample (f = (C_in, HW) features):
      t    = wcat @ f                                  # (2*HID*C_in + R*C_out, HW)
      hrep = sigmoid(row_mean(t[:HID*C_in]) + b1rep)   # hidden vector, replicated per c
      out  = w2d @ (hrep * t[HID*C_in:2*HID*C_in]) + t[2*HID*C_in:]
    which equals:  xcorr(f, grouped_conv(sigmoid(conv1x1(global_avg_pool(f))))).
    """
    R, HS = REGION_NUM, HIDDEN_SCALE
    HID = R * HS
    M = R * C_out
    CICO = C_in * C_out
    k1, k2, k3, k4 = jax.random.split(key, 4)
    w1 = np.asarray(0.2 * jax.random.normal(k1, (HID, C_in), jnp.float32))      # Conv2d(C_in, HID, 1)
    b1 = np.asarray(0.1 * jax.random.normal(k2, (HID,), jnp.float32))
    w2 = np.asarray(0.2 * jax.random.normal(k3, (R * CICO, HS), jnp.float32))   # grouped Conv2d(HID, R*CICO, 1, groups=R)
    b2 = np.asarray(0.1 * jax.random.normal(k4, (R * CICO,), jnp.float32))

    # dense block-diagonal embedding of the grouped 1x1 conv:  Wdense[o, h]
    wdense = np.zeros((R * CICO, HID), np.float32)
    for g in range(R):
        wdense[g * CICO:(g + 1) * CICO, g * HS:(g + 1) * HS] = w2[g * CICO:(g + 1) * CICO, :]

    w1rep = np.repeat(w1, C_in, axis=0)                        # (HID*C_in, C_in): row h*C_in+c = w1[h]
    erep = np.tile(np.eye(C_in, dtype=np.float32), (HID, 1))   # (HID*C_in, C_in): erep @ f tiles f over h
    b2m = b2.reshape(M, C_in)                                  # (M, C_in): bias part of the dynamic kernel
    wcat = np.concatenate([w1rep, erep, b2m], axis=0)          # (2*HID*C_in + M, C_in)
    b1rep = np.repeat(b1, C_in)[:, None]                       # (HID*C_in, 1)
    # w2d[m, h*C_in + c] = Wdense[m*C_in + c, h]
    w2d = np.transpose(wdense.reshape(M, C_in, HID), (0, 2, 1)).reshape(M, HID * C_in)
    return dict(wcat=jnp.asarray(wcat), b1rep=jnp.asarray(b1rep),
                w2d=jnp.asarray(w2d), C_out=C_out)


# ----------------------------------------------------------------------------- fused kernel
def _fused_forward_kernel(x_ref, y_ref, blurT_ref,
                          wcat1, b1r1, w2d1,
                          wcat2, b1r2, w2d2,
                          wcat3, b1r3, w2d3,
                          o_ref):
    B = x_ref.shape[0]

    # -------- HAGuide (shared by the three layers), whole batch, blur = one MXU matmul --------
    sig = jax.nn.sigmoid(y_ref[...])                                        # (B, HW)
    blur = jnp.dot(sig, blurT_ref[...], preferred_element_type=jnp.float32)  # gaussian conv
    mx = jnp.max(blur, axis=1, keepdims=True)
    mn = jnp.min(blur, axis=1, keepdims=True)
    hol = jnp.maximum((blur - mn) / (mx - mn + 1e-8), sig)                  # holistic soft attention
    # guide = cat([hol, 1-hol]); argmax -> region 0 iff hol >= 0.5 (first-index tie rule)
    sel = (hol >= 0.5).astype(jnp.float32)                                  # (B, HW)

    def sconv_layer(feats, wcat_r, b1r_r, w2d_r):
        """SConv2d_v3 (kernel_size=1) on a list of per-sample (ci, HW) features."""
        wcat = wcat_r[...]
        b1r = b1r_r[...]
        w2d = w2d_r[...]
        kci = w2d.shape[1]                       # HID * ci
        m = w2d.shape[0]                         # REGION_NUM * co
        co = m // REGION_NUM
        outs = []
        for b in range(len(feats)):
            f = feats[b]                                                        # (ci, HW)
            t = jnp.dot(wcat, f, preferred_element_type=jnp.float32)            # (2*kci + m, HW)
            # conv_kernel branch: global avg pool -> 1x1 conv (== row mean of t[:kci]) -> sigmoid
            hrep = jax.nn.sigmoid(jnp.mean(t[:kci, :], axis=1, keepdims=True) + b1r)   # (kci, 1)
            # dynamic grouped 1x1 conv + per-sample xcorr folded into one matmul over (hidden, c_in)
            out = jnp.dot(w2d, hrep * t[kci:2 * kci, :],
                          preferred_element_type=jnp.float32) + t[2 * kci:, :]  # (m, HW)
            # asign_index: keep the region picked by the guide
            sb = sel[b:b + 1, :]                                                # (1, HW)
            outs.append(sb * out[:co, :] + (1.0 - sb) * out[co:, :])            # (co, HW)
        return outs

    def bn_relu(xs):
        # training-mode BatchNorm2d (gamma=1, beta=0, biased batch variance) + ReLU
        inv_n = 1.0 / float(len(xs) * xs[0].shape[1])
        s1 = xs[0].sum(axis=1, keepdims=True)
        s2 = (xs[0] * xs[0]).sum(axis=1, keepdims=True)
        for x in xs[1:]:
            s1 = s1 + x.sum(axis=1, keepdims=True)
            s2 = s2 + (x * x).sum(axis=1, keepdims=True)
        mean = s1 * inv_n
        var = s2 * inv_n - mean * mean
        inv = jax.lax.rsqrt(var + BN_EPS)
        return [jnp.maximum((x - mean) * inv, 0.0) for x in xs]

    feat0 = [x_ref[b] for b in range(B)]                                     # (C_in, HW) each
    h1 = bn_relu(sconv_layer(feat0, wcat1, b1r1, w2d1))
    h2 = bn_relu(sconv_layer(h1, wcat2, b1r2, w2d2))
    y3 = bn_relu(sconv_layer(h2, wcat3, b1r3, w2d3))
    for b in range(B):
        # in_channels == out_channels -> residual is the raw input; reference: relu(relu(bn(.)) + x)
        o_ref[b] = jnp.maximum(y3[b] + feat0[b], 0.0)


# ----------------------------------------------------------------------------- wrapper
def sconvnr3_with_res_forward(x_nchw, y_nchw, params, blurT):
    B, C_in, H, W = x_nchw.shape
    HW = H * W
    C_out = params["l3"]["C_out"]
    assert C_in == C_out, "BasicBlock reduction branch not implemented (undefined in reference)"
    assert blurT.shape == (HW, HW)

    # NCHW -> (B, C, H*W): channels on sublanes, flattened spatial (multiple of 128) on lanes.
    x_flat = x_nchw.reshape(B, C_in, HW)
    y_flat = y_nchw.reshape(B, HW)

    p1, p2, p3 = params["l1"], params["l2"], params["l3"]
    args = [x_flat, y_flat, blurT,
            p1["wcat"], p1["b1rep"], p1["w2d"],
            p2["wcat"], p2["b1rep"], p2["w2d"],
            p3["wcat"], p3["b1rep"], p3["w2d"]]

    # Single fused call, no grid: every operand (activations + all weights, < 1 MiB total)
    # is whole-array VMEM resident, so there is no pipelining to configure.
    out = pl.pallas_call(
        _fused_forward_kernel,
        out_shape=jax.ShapeDtypeStruct((B, C_out, HW), jnp.float32),
    )(*args)
    return out.reshape(B, C_out, H, W)


# ----------------------------------------------------------------------------- demo
if __name__ == "__main__":
    B, C_in, C_mid, C_out, H, W = 2, 8, 16, 8, 16, 16
    key = jax.random.PRNGKey(0)
    kx, ky, k1, k2, k3 = jax.random.split(key, 5)
    params = {
        "l1": init_layer_params(k1, C_in, C_mid),
        "l2": init_layer_params(k2, C_mid, C_out),
        "l3": init_layer_params(k3, C_out, C_out),
    }
    sigma = 0.3 * ((KSIZE - 1) * 0.5 - 1) + 0.8          # HAGuide default sigma
    gk = _get_gaussian_kernel(KSIZE, sigma)
    blurT = jnp.asarray(build_blur_matrix(H, W, gk).T)   # blur_flat = sig @ blurT

    x = jax.random.normal(kx, (B, C_in, H, W), jnp.float32)   # feat (NCHW)
    y = jax.random.normal(ky, (B, 1, H, W), jnp.float32)      # pred logits (NCHW)

    out = sconvnr3_with_res_forward(x, y, params, blurT)
    out = jax.block_until_ready(out)
    assert out.shape == (B, C_out, H, W), out.shape
    print("KERNEL_OK")
</pallas_src>

<mosaic_0001>
module attributes {stable_mosaic.version = 11 : i64} {
  func.func @_fused_forward_kernel(%arg0: memref<2x8x256xf32, #tpu.memory_space<vmem>>, %arg1: memref<2x256xf32, #tpu.memory_space<vmem>>, %arg2: memref<256x256xf32, #tpu.memory_space<vmem>>, %arg3: memref<288x8xf32, #tpu.memory_space<vmem>>, %arg4: memref<128x1xf32, #tpu.memory_space<vmem>>, %arg5: memref<32x128xf32, #tpu.memory_space<vmem>>, %arg6: memref<528x16xf32, #tpu.memory_space<vmem>>, %arg7: memref<256x1xf32, #tpu.memory_space<vmem>>, %arg8: memref<16x256xf32, #tpu.memory_space<vmem>>, %arg9: memref<272x8xf32, #tpu.memory_space<vmem>>, %arg10: memref<128x1xf32, #tpu.memory_space<vmem>>, %arg11: memref<16x128xf32, #tpu.memory_space<vmem>>, %arg12: memref<2x8x256xf32, #tpu.memory_space<vmem>>) attributes {dimension_semantics = [], scalar_prefetch = 0 : i64, scratch_operands = 0 : i64, tpu.core_type = #tpu.core_type<tc>} {
    %c0 = arith.constant 0 : index
    %c0_0 = arith.constant 0 : index
    %0 = vector.load %arg1[%c0, %c0_0] : memref<2x256xf32, #tpu.memory_space<vmem>>, vector<2x256xf32>
    %1 = arith.negf %0 : vector<2x256xf32>
    %2 = math.exp %1 : vector<2x256xf32>
    %cst = arith.constant 1.000000e+00 : f32
    %3 = vector.broadcast %cst : f32 to vector<2x256xf32>
    %4 = arith.addf %3, %2 : vector<2x256xf32>
    %5 = arith.divf %3, %4 : vector<2x256xf32>
    %c0_1 = arith.constant 0 : index
    %c0_2 = arith.constant 0 : index
    %6 = vector.load %arg2[%c0_1, %c0_2] : memref<256x256xf32, #tpu.memory_space<vmem>>, vector<256x256xf32>
    %cst_3 = arith.constant dense<0.000000e+00> : vector<2x256xf32>
    %7 = tpu.matmul %5, %6, %cst_3 {dimension_numbers = #tpu.dot_dimension_numbers<[1], [0], [0], [1], [0, 0, 1, 1], [], []>} : vector<2x256xf32>, vector<256x256xf32>, vector<2x256xf32> -> vector<2x256xf32>
    %cst_4 = arith.constant dense<0xFF800000> : vector<2xf32>
    %8 = vector.multi_reduction <maximumf>, %7, %cst_4 [1] : vector<2x256xf32> to vector<2xf32>
    %9 = vector.shape_cast %8 : vector<2xf32> to vector<2x1xf32>
    %cst_5 = arith.constant dense<0x7F800000> : vector<2xf32>
    %10 = vector.multi_reduction <minimumf>, %7, %cst_5 [1] : vector<2x256xf32> to vector<2xf32>
    %11 = vector.shape_cast %10 : vector<2xf32> to vector<2x1xf32>
    %12 = vector.broadcast %11 : vector<2x1xf32> to vector<2x256xf32>
    %13 = arith.subf %7, %12 : vector<2x256xf32>
    %14 = arith.subf %9, %11 : vector<2x1xf32>
    %cst_6 = arith.constant 9.99999993E-9 : f32
    %15 = vector.broadcast %cst_6 : f32 to vector<2x1xf32>
    %16 = arith.addf %14, %15 : vector<2x1xf32>
    %17 = vector.broadcast %16 : vector<2x1xf32> to vector<2x256xf32>
    %18 = arith.divf %13, %17 : vector<2x256xf32>
    %19 = arith.maximumf %18, %5 : vector<2x256xf32>
    %cst_7 = arith.constant 5.000000e-01 : f32
    %20 = vector.broadcast %cst_7 : f32 to vector<2x256xf32>
    %21 = arith.cmpf oge, %19, %20 : vector<2x256xf32>
    %22 = arith.extui %21 : vector<2x256xi1> to vector<2x256xi32>
    %23 = arith.sitofp %22 : vector<2x256xi32> to vector<2x256xf32>
    %c0_8 = arith.constant 0 : index
    %c0_9 = arith.constant 0 : index
    %c0_10 = arith.constant 0 : index
    %24 = vector.load %arg0[%c0_8, %c0_9, %c0_10] : memref<2x8x256xf32, #tpu.memory_space<vmem>>, vector<1x8x256xf32>
    %25 = vector.shape_cast %24 : vector<1x8x256xf32> to vector<8x256xf32>
    %c1 = arith.constant 1 : index
    %c0_11 = arith.constant 0 : index
    %c0_12 = arith.constant 0 : index
    %26 = vector.load %arg0[%c1, %c0_11, %c0_12] : memref<2x8x256xf32, #tpu.memory_space<vmem>>, vector<1x8x256xf32>
    %27 = vector.shape_cast %26 : vector<1x8x256xf32> to vector<8x256xf32>
    %c0_13 = arith.constant 0 : index
    %c0_14 = arith.constant 0 : index
    %28 = vector.load %arg3[%c0_13, %c0_14] : memref<288x8xf32, #tpu.memory_space<vmem>>, vector<288x8xf32>
    %c0_15 = arith.constant 0 : index
    %c0_16 = arith.constant 0 : index
    %29 = vector.load %arg4[%c0_15, %c0_16] : memref<128x1xf32, #tpu.memory_space<vmem>>, vector<128x1xf32>
    %c0_17 = arith.constant 0 : index
    %c0_18 = arith.constant 0 : index
    %30 = vector.load %arg5[%c0_17, %c0_18] : memref<32x128xf32, #tpu.memory_space<vmem>>, vector<32x128xf32>
    %cst_19 = arith.constant dense<0.000000e+00> : vector<288x256xf32>
    %31 = tpu.matmul %28, %25, %cst_19 {dimension_numbers = #tpu.dot_dimension_numbers<[1], [0], [0], [1], [0, 0, 1, 1], [], []>} : vector<288x8xf32>, vector<8x256xf32>, vector<288x256xf32> -> vector<288x256xf32>
    %32 = vector.extract_strided_slice %31 {offsets = [0, 0], sizes = [128, 256], strides = [1, 1]} : vector<288x256xf32> to vector<128x256xf32>
    %cst_20 = arith.constant dense<0.000000e+00> : vector<128xf32>
    %33 = vector.multi_reduction <add>, %32, %cst_20 [1] : vector<128x256xf32> to vector<128xf32>
    %34 = vector.shape_cast %33 : vector<128xf32> to vector<128x1xf32>
    %cst_21 = arith.constant 2.560000e+02 : f32
    %35 = vector.broadcast %cst_21 : f32 to vector<128x1xf32>
    %36 = arith.divf %34, %35 : vector<128x1xf32>
    %37 = arith.addf %36, %29 : vector<128x1xf32>
    %38 = arith.negf %37 : vector<128x1xf32>
    %39 = math.exp %38 : vector<128x1xf32>
    %cst_22 = arith.constant 1.000000e+00 : f32
    %40 = vector.broadcast %cst_22 : f32 to vector<128x1xf32>
    %41 = arith.addf %40, %39 : vector<128x1xf32>
    %42 = arith.divf %40, %41 : vector<128x1xf32>
    %43 = vector.extract_strided_slice %31 {offsets = [128, 0], sizes = [128, 256], strides = [1, 1]} : vector<288x256xf32> to vector<128x256xf32>
    %44 = vector.broadcast %42 : vector<128x1xf32> to vector<128x256xf32>
    %45 = arith.mulf %44, %43 : vector<128x256xf32>
    %cst_23 = arith.constant dense<0.000000e+00> : vector<32x256xf32>
    %46 = tpu.matmul %30, %45, %cst_23 {dimension_numbers = #tpu.dot_dimension_numbers<[1], [0], [0], [1], [0, 0, 1, 1], [], []>} : vector<32x128xf32>, vector<128x256xf32>, vector<32x256xf32> -> vector<32x256xf32>
    %47 = vector.extract_strided_slice %31 {offsets = [256, 0], sizes = [32, 256], strides = [1, 1]} : vector<288x256xf32> to vector<32x256xf32>
    %48 = arith.addf %46, %47 : vector<32x256xf32>
    %49 = vector.extract_strided_slice %23 {offsets = [0, 0], sizes = [1, 256], strides = [1, 1]} : vector<2x256xf32> to vector<1x256xf32>
    %50 = vector.extract_strided_slice %48 {offsets = [0, 0], sizes = [16, 256], strides = [1, 1]} : vector<32x256xf32> to vector<16x256xf32>
    %51 = vector.broadcast %49 : vector<1x256xf32> to vector<16x256xf32>
    %52 = arith.mulf %51, %50 : vector<16x256xf32>
    %cst_24 = arith.constant 1.000000e+00 : f32
    %53 = vector.broadcast %cst_24 : f32 to vector<1x256xf32>
    %54 = arith.subf %53, %49 : vector<1x256xf32>
    %55 = vector.extract_strided_slice %48 {offsets = [16, 0], sizes = [16, 256], strides = [1, 1]} : vector<32x256xf32> to vector<16x256xf32>
    %56 = vector.broadcast %54 : vector<1x256xf32> to vector<16x256xf32>
    %57 = arith.mulf %56, %55 : vector<16x256xf32>
    %58 = arith.addf %52, %57 : vector<16x256xf32>
    %cst_25 = arith.constant dense<0.000000e+00> : vector<288x256xf32>
    %59 = tpu.matmul %28, %27, %cst_25 {dimension_numbers = #tpu.dot_dimension_numbers<[1], [0], [0], [1], [0, 0, 1, 1], [], []>} : vector<288x8xf32>, vector<8x256xf32>, vector<288x256xf32> -> vector<288x256xf32>
    %60 = vector.extract_strided_slice %59 {offsets = [0, 0], sizes = [128, 256], strides = [1, 1]} : vector<288x256xf32> to vector<128x256xf32>
    %cst_26 = arith.constant dense<0.000000e+00> : vector<128xf32>
    %61 = vector.multi_reduction <add>, %60, %cst_26 [1] : vector<128x256xf32> to vector<128xf32>
    %62 = vector.shape_cast %61 : vector<128xf32> to vector<128x1xf32>
    %cst_27 = arith.constant 2.560000e+02 : f32
    %63 = vector.broadcast %cst_27 : f32 to vector<128x1xf32>
    %64 = arith.divf %62, %63 : vector<128x1xf32>
    %65 = arith.addf %64, %29 : vector<128x1xf32>
    %66 = arith.negf %65 : vector<128x1xf32>
    %67 = math.exp %66 : vector<128x1xf32>
    %cst_28 = arith.constant 1.000000e+00 : f32
    %68 = vector.broadcast %cst_28 : f32 to vector<128x1xf32>
    %69 = arith.addf %68, %67 : vector<128x1xf32>
    %70 = arith.divf %68, %69 : vector<128x1xf32>
    %71 = vector.extract_strided_slice %59 {offsets = [128, 0], sizes = [128, 256], strides = [1, 1]} : vector<288x256xf32> to vector<128x256xf32>
    %72 = vector.broadcast %70 : vector<128x1xf32> to vector<128x256xf32>
    %73 = arith.mulf %72, %71 : vector<128x256xf32>
    %cst_29 = arith.constant dense<0.000000e+00> : vector<32x256xf32>
    %74 = tpu.matmul %30, %73, %cst_29 {dimension_numbers = #tpu.dot_dimension_numbers<[1], [0], [0], [1], [0, 0, 1, 1], [], []>} : vector<32x128xf32>, vector<128x256xf32>, vector<32x256xf32> -> vector<32x256xf32>
    %75 = vector.extract_strided_slice %59 {offsets = [256, 0], sizes = [32, 256], strides = [1, 1]} : vector<288x256xf32> to vector<32x256xf32>
    %76 = arith.addf %74, %75 : vector<32x256xf32>
    %77 = vector.extract_strided_slice %23 {offsets = [1, 0], sizes = [1, 256], strides = [1, 1]} : vector<2x256xf32> to vector<1x256xf32>
    %78 = vector.extract_strided_slice %76 {offsets = [0, 0], sizes = [16, 256], strides = [1, 1]} : vector<32x256xf32> to vector<16x256xf32>
    %79 = vector.broadcast %77 : vector<1x256xf32> to vector<16x256xf32>
    %80 = arith.mulf %79, %78 : vector<16x256xf32>
    %cst_30 = arith.constant 1.000000e+00 : f32
    %81 = vector.broadcast %cst_30 : f32 to vector<1x256xf32>
    %82 = arith.subf %81, %77 : vector<1x256xf32>
    %83 = vector.extract_strided_slice %76 {offsets = [16, 0], sizes = [16, 256], strides = [1, 1]} : vector<32x256xf32> to vector<16x256xf32>
    %84 = vector.broadcast %82 : vector<1x256xf32> to vector<16x256xf32>
    %85 = arith.mulf %84, %83 : vector<16x256xf32>
    %86 = arith.addf %80, %85 : vector<16x256xf32>
    %cst_31 = arith.constant dense<0.000000e+00> : vector<16xf32>
    %87 = vector.multi_reduction <add>, %58, %cst_31 [1] : vector<16x256xf32> to vector<16xf32>
    %88 = vector.shape_cast %87 : vector<16xf32> to vector<16x1xf32>
    %89 = arith.mulf %58, %58 : vector<16x256xf32>
    %cst_32 = arith.constant dense<0.000000e+00> : vector<16xf32>
    %90 = vector.multi_reduction <add>, %89, %cst_32 [1] : vector<16x256xf32> to vector<16xf32>
    %91 = vector.shape_cast %90 : vector<16xf32> to vector<16x1xf32>
    %cst_33 = arith.constant dense<0.000000e+00> : vector<16xf32>
    %92 = vector.multi_reduction <add>, %86, %cst_33 [1] : vector<16x256xf32> to vector<16xf32>
    %93 = vector.shape_cast %92 : vector<16xf32> to vector<16x1xf32>
    %94 = arith.addf %88, %93 : vector<16x1xf32>
    %95 = arith.mulf %86, %86 : vector<16x256xf32>
    %cst_34 = arith.constant dense<0.000000e+00> : vector<16xf32>
    %96 = vector.multi_reduction <add>, %95, %cst_34 [1] : vector<16x256xf32> to vector<16xf32>
    %97 = vector.shape_cast %96 : vector<16xf32> to vector<16x1xf32>
    %98 = arith.addf %91, %97 : vector<16x1xf32>
    %cst_35 = arith.constant 0.001953125 : f32
    %99 = vector.broadcast %cst_35 : f32 to vector<16x1xf32>
    %100 = arith.mulf %94, %99 : vector<16x1xf32>
    %cst_36 = arith.constant 0.001953125 : f32
    %101 = vector.broadcast %cst_36 : f32 to vector<16x1xf32>
    %102 = arith.mulf %98, %101 : vector<16x1xf32>
    %103 = arith.mulf %100, %100 : vector<16x1xf32>
    %104 = arith.subf %102, %103 : vector<16x1xf32>
    %cst_37 = arith.constant 9.99999974E-6 : f32
    %105 = vector.broadcast %cst_37 : f32 to vector<16x1xf32>
    %106 = arith.addf %104, %105 : vector<16x1xf32>
    %107 = math.rsqrt %106 : vector<16x1xf32>
    %108 = vector.broadcast %100 : vector<16x1xf32> to vector<16x256xf32>
    %109 = arith.subf %58, %108 : vector<16x256xf32>
    %110 = vector.broadcast %107 : vector<16x1xf32> to vector<16x256xf32>
    %111 = arith.mulf %109, %110 : vector<16x256xf32>
    %cst_38 = arith.constant 0.000000e+00 : f32
    %112 = vector.broadcast %cst_38 : f32 to vector<16x256xf32>
    %113 = arith.maximumf %111, %112 : vector<16x256xf32>
    %114 = vector.broadcast %100 : vector<16x1xf32> to vector<16x256xf32>
    %115 = arith.subf %86, %114 : vector<16x256xf32>
    %116 = vector.broadcast %107 : vector<16x1xf32> to vector<16x256xf32>
    %117 = arith.mulf %115, %116 : vector<16x256xf32>
    %cst_39 = arith.constant 0.000000e+00 : f32
    %118 = vector.broadcast %cst_39 : f32 to vector<16x256xf32>
    %119 = arith.maximumf %117, %118 : vector<16x256xf32>
    %c0_40 = arith.constant 0 : index
    %c0_41 = arith.constant 0 : index
    %120 = vector.load %arg6[%c0_40, %c0_41] : memref<528x16xf32, #tpu.memory_space<vmem>>, vector<528x16xf32>
    %c0_42 = arith.constant 0 : index
    %c0_43 = arith.constant 0 : index
    %121 = vector.load %arg7[%c0_42, %c0_43] : memref<256x1xf32, #tpu.memory_space<vmem>>, vector<256x1xf32>
    %c0_44 = arith.constant 0 : index
    %c0_45 = arith.constant 0 : index
    %122 = vector.load %arg8[%c0_44, %c0_45] : memref<16x256xf32, #tpu.memory_space<vmem>>, vector<16x256xf32>
    %cst_46 = arith.constant dense<0.000000e+00> : vector<528x256xf32>
    %123 = tpu.matmul %120, %113, %cst_46 {dimension_numbers = #tpu.dot_dimension_numbers<[1], [0], [0], [1], [0, 0, 1, 1], [], []>} : vector<528x16xf32>, vector<16x256xf32>, vector<528x256xf32> -> vector<528x256xf32>
    %124 = vector.extract_strided_slice %123 {offsets = [0, 0], sizes = [256, 256], strides = [1, 1]} : vector<528x256xf32> to vector<256x256xf32>
    %cst_47 = arith.constant dense<0.000000e+00> : vector<256xf32>
    %125 = vector.multi_reduction <add>, %124, %cst_47 [1] : vector<256x256xf32> to vector<256xf32>
    %126 = vector.shape_cast %125 : vector<256xf32> to vector<256x1xf32>
    %cst_48 = arith.constant 2.560000e+02 : f32
    %127 = vector.broadcast %cst_48 : f32 to vector<256x1xf32>
    %128 = arith.divf %126, %127 : vector<256x1xf32>
    %129 = arith.addf %128, %121 : vector<256x1xf32>
    %130 = arith.negf %129 : vector<256x1xf32>
    %131 = math.exp %130 : vector<256x1xf32>
    %cst_49 = arith.constant 1.000000e+00 : f32
    %132 = vector.broadcast %cst_49 : f32 to vector<256x1xf32>
    %133 = arith.addf %132, %131 : vector<256x1xf32>
    %134 = arith.divf %132, %133 : vector<256x1xf32>
    %135 = vector.extract_strided_slice %123 {offsets = [256, 0], sizes = [256, 256], strides = [1, 1]} : vector<528x256xf32> to vector<256x256xf32>
    %136 = vector.broadcast %134 : vector<256x1xf32> to vector<256x256xf32>
    %137 = arith.mulf %136, %135 : vector<256x256xf32>
    %cst_50 = arith.constant dense<0.000000e+00> : vector<16x256xf32>
    %138 = tpu.matmul %122, %137, %cst_50 {dimension_numbers = #tpu.dot_dimension_numbers<[1], [0], [0], [1], [0, 0, 1, 1], [], []>} : vector<16x256xf32>, vector<256x256xf32>, vector<16x256xf32> -> vector<16x256xf32>
    %139 = vector.extract_strided_slice %123 {offsets = [512, 0], sizes = [16, 256], strides = [1, 1]} : vector<528x256xf32> to vector<16x256xf32>
    %140 = arith.addf %138, %139 : vector<16x256xf32>
    %141 = vector.extract_strided_slice %23 {offsets = [0, 0], sizes = [1, 256], strides = [1, 1]} : vector<2x256xf32> to vector<1x256xf32>
    %142 = vector.extract_strided_slice %140 {offsets = [0, 0], sizes = [8, 256], strides = [1, 1]} : vector<16x256xf32> to vector<8x256xf32>
    %143 = vector.broadcast %141 : vector<1x256xf32> to vector<8x256xf32>
    %144 = arith.mulf %143, %142 : vector<8x256xf32>
    %cst_51 = arith.constant 1.000000e+00 : f32
    %145 = vector.broadcast %cst_51 : f32 to vector<1x256xf32>
    %146 = arith.subf %145, %141 : vector<1x256xf32>
    %147 = vector.extract_strided_slice %140 {offsets = [8, 0], sizes = [8, 256], strides = [1, 1]} : vector<16x256xf32> to vector<8x256xf32>
    %148 = vector.broadcast %146 : vector<1x256xf32> to vector<8x256xf32>
    %149 = arith.mulf %148, %147 : vector<8x256xf32>
    %150 = arith.addf %144, %149 : vector<8x256xf32>
    %cst_52 = arith.constant dense<0.000000e+00> : vector<528x256xf32>
    %151 = tpu.matmul %120, %119, %cst_52 {dimension_numbers = #tpu.dot_dimension_numbers<[1], [0], [0], [1], [0, 0, 1, 1], [], []>} : vector<528x16xf32>, vector<16x256xf32>, vector<528x256xf32> -> vector<528x256xf32>
    %152 = vector.extract_strided_slice %151 {offsets = [0, 0], sizes = [256, 256], strides = [1, 1]} : vector<528x256xf32> to vector<256x256xf32>
    %cst_53 = arith.constant dense<0.000000e+00> : vector<256xf32>
    %153 = vector.multi_reduction <add>, %152, %cst_53 [1] : vector<256x256xf32> to vector<256xf32>
    %154 = vector.shape_cast %153 : vector<256xf32> to vector<256x1xf32>
    %cst_54 = arith.constant 2.560000e+02 : f32
    %155 = vector.broadcast %cst_54 : f32 to vector<256x1xf32>
    %156 = arith.divf %154, %155 : vector<256x1xf32>
    %157 = arith.addf %156, %121 : vector<256x1xf32>
    %158 = arith.negf %157 : vector<256x1xf32>
    %159 = math.exp %158 : vector<256x1xf32>
    %cst_55 = arith.constant 1.000000e+00 : f32
    %160 = vector.broadcast %cst_55 : f32 to vector<256x1xf32>
    %161 = arith.addf %160, %159 : vector<256x1xf32>
    %162 = arith.divf %160, %161 : vector<256x1xf32>
    %163 = vector.extract_strided_slice %151 {offsets = [256, 0], sizes = [256, 256], strides = [1, 1]} : vector<528x256xf32> to vector<256x256xf32>
    %164 = vector.broadcast %162 : vector<256x1xf32> to vector<256x256xf32>
    %165 = arith.mulf %164, %163 : vector<256x256xf32>
    %cst_56 = arith.constant dense<0.000000e+00> : vector<16x256xf32>
    %166 = tpu.matmul %122, %165, %cst_56 {dimension_numbers = #tpu.dot_dimension_numbers<[1], [0], [0], [1], [0, 0, 1, 1], [], []>} : vector<16x256xf32>, vector<256x256xf32>, vector<16x256xf32> -> vector<16x256xf32>
    %167 = vector.extract_strided_slice %151 {offsets = [512, 0], sizes = [16, 256], strides = [1, 1]} : vector<528x256xf32> to vector<16x256xf32>
    %168 = arith.addf %166, %167 : vector<16x256xf32>
    %169 = vector.extract_strided_slice %23 {offsets = [1, 0], sizes = [1, 256], strides = [1, 1]} : vector<2x256xf32> to vector<1x256xf32>
    %170 = vector.extract_strided_slice %168 {offsets = [0, 0], sizes = [8, 256], strides = [1, 1]} : vector<16x256xf32> to vector<8x256xf32>
    %171 = vector.broadcast %169 : vector<1x256xf32> to vector<8x256xf32>
    %172 = arith.mulf %171, %170 : vector<8x256xf32>
    %cst_57 = arith.constant 1.000000e+00 : f32
    %173 = vector.broadcast %cst_57 : f32 to vector<1x256xf32>
    %174 = arith.subf %173, %169 : vector<1x256xf32>
    %175 = vector.extract_strided_slice %168 {offsets = [8, 0], sizes = [8, 256], strides = [1, 1]} : vector<16x256xf32> to vector<8x256xf32>
    %176 = vector.broadcast %174 : vector<1x256xf32> to vector<8x256xf32>
    %177 = arith.mulf %176, %175 : vector<8x256xf32>
    %178 = arith.addf %172, %177 : vector<8x256xf32>
    %cst_58 = arith.constant dense<0.000000e+00> : vector<8xf32>
    %179 = vector.multi_reduction <add>, %150, %cst_58 [1] : vector<8x256xf32> to vector<8xf32>
    %180 = vector.shape_cast %179 : vector<8xf32> to vector<8x1xf32>
    %181 = arith.mulf %150, %150 : vector<8x256xf32>
    %cst_59 = arith.constant dense<0.000000e+00> : vector<8xf32>
    %182 = vector.multi_reduction <add>, %181, %cst_59 [1] : vector<8x256xf32> to vector<8xf32>
    %183 = vector.shape_cast %182 : vector<8xf32> to vector<8x1xf32>
    %cst_60 = arith.constant dense<0.000000e+00> : vector<8xf32>
    %184 = vector.multi_reduction <add>, %178, %cst_60 [1] : vector<8x256xf32> to vector<8xf32>
    %185 = vector.shape_cast %184 : vector<8xf32> to vector<8x1xf32>
    %186 = arith.addf %180, %185 : vector<8x1xf32>
    %187 = arith.mulf %178, %178 : vector<8x256xf32>
    %cst_61 = arith.constant dense<0.000000e+00> : vector<8xf32>
    %188 = vector.multi_reduction <add>, %187, %cst_61 [1] : vector<8x256xf32> to vector<8xf32>
    %189 = vector.shape_cast %188 : vector<8xf32> to vector<8x1xf32>
    %190 = arith.addf %183, %189 : vector<8x1xf32>
    %cst_62 = arith.constant 0.001953125 : f32
    %191 = vector.broadcast %cst_62 : f32 to vector<8x1xf32>
    %192 = arith.mulf %186, %191 : vector<8x1xf32>
    %cst_63 = arith.constant 0.001953125 : f32
    %193 = vector.broadcast %cst_63 : f32 to vector<8x1xf32>
    %194 = arith.mulf %190, %193 : vector<8x1xf32>
    %195 = arith.mulf %192, %192 : vector<8x1xf32>
    %196 = arith.subf %194, %195 : vector<8x1xf32>
    %cst_64 = arith.constant 9.99999974E-6 : f32
    %197 = vector.broadcast %cst_64 : f32 to vector<8x1xf32>
    %198 = arith.addf %196, %197 : vector<8x1xf32>
    %199 = math.rsqrt %198 : vector<8x1xf32>
    %200 = vector.broadcast %192 : vector<8x1xf32> to vector<8x256xf32>
    %201 = arith.subf %150, %200 : vector<8x256xf32>
    %202 = vector.broadcast %199 : vector<8x1xf32> to vector<8x256xf32>
    %203 = arith.mulf %201, %202 : vector<8x256xf32>
    %cst_65 = arith.constant 0.000000e+00 : f32
    %204 = vector.broadcast %cst_65 : f32 to vector<8x256xf32>
    %205 = arith.maximumf %203, %204 : vector<8x256xf32>
    %206 = vector.broadcast %192 : vector<8x1xf32> to vector<8x256xf32>
    %207 = arith.subf %178, %206 : vector<8x256xf32>
    %208 = vector.broadcast %199 : vector<8x1xf32> to vector<8x256xf32>
    %209 = arith.mulf %207, %208 : vector<8x256xf32>
    %cst_66 = arith.constant 0.000000e+00 : f32
    %210 = vector.broadcast %cst_66 : f32 to vector<8x256xf32>
    %211 = arith.maximumf %209, %210 : vector<8x256xf32>
    %c0_67 = arith.constant 0 : index
    %c0_68 = arith.constant 0 : index
    %212 = vector.load %arg9[%c0_67, %c0_68] : memref<272x8xf32, #tpu.memory_space<vmem>>, vector<272x8xf32>
    %c0_69 = arith.constant 0 : index
    %c0_70 = arith.constant 0 : index
    %213 = vector.load %arg10[%c0_69, %c0_70] : memref<128x1xf32, #tpu.memory_space<vmem>>, vector<128x1xf32>
    %c0_71 = arith.constant 0 : index
    %c0_72 = arith.constant 0 : index
    %214 = vector.load %arg11[%c0_71, %c0_72] : memref<16x128xf32, #tpu.memory_space<vmem>>, vector<16x128xf32>
    %cst_73 = arith.constant dense<0.000000e+00> : vector<272x256xf32>
    %215 = tpu.matmul %212, %205, %cst_73 {dimension_numbers = #tpu.dot_dimension_numbers<[1], [0], [0], [1], [0, 0, 1, 1], [], []>} : vector<272x8xf32>, vector<8x256xf32>, vector<272x256xf32> -> vector<272x256xf32>
    %216 = vector.extract_strided_slice %215 {offsets = [0, 0], sizes = [128, 256], strides = [1, 1]} : vector<272x256xf32> to vector<128x256xf32>
    %cst_74 = arith.constant dense<0.000000e+00> : vector<128xf32>
    %217 = vector.multi_reduction <add>, %216, %cst_74 [1] : vector<128x256xf32> to vector<128xf32>
    %218 = vector.shape_cast %217 : vector<128xf32> to vector<128x1xf32>
    %cst_75 = arith.constant 2.560000e+02 : f32
    %219 = vector.broadcast %cst_75 : f32 to vector<128x1xf32>
    %220 = arith.divf %218, %219 : vector<128x1xf32>
    %221 = arith.addf %220, %213 : vector<128x1xf32>
    %222 = arith.negf %221 : vector<128x1xf32>
    %223 = math.exp %222 : vector<128x1xf32>
    %cst_76 = arith.constant 1.000000e+00 : f32
    %224 = vector.broadcast %cst_76 : f32 to vector<128x1xf32>
    %225 = arith.addf %224, %223 : vector<128x1xf32>
    %226 = arith.divf %224, %225 : vector<128x1xf32>
    %227 = vector.extract_strided_slice %215 {offsets = [128, 0], sizes = [128, 256], strides = [1, 1]} : vector<272x256xf32> to vector<128x256xf32>
    %228 = vector.broadcast %226 : vector<128x1xf32> to vector<128x256xf32>
    %229 = arith.mulf %228, %227 : vector<128x256xf32>
    %cst_77 = arith.constant dense<0.000000e+00> : vector<16x256xf32>
    %230 = tpu.matmul %214, %229, %cst_77 {dimension_numbers = #tpu.dot_dimension_numbers<[1], [0], [0], [1], [0, 0, 1, 1], [], []>} : vector<16x128xf32>, vector<128x256xf32>, vector<16x256xf32> -> vector<16x256xf32>
    %231 = vector.extract_strided_slice %215 {offsets = [256, 0], sizes = [16, 256], strides = [1, 1]} : vector<272x256xf32> to vector<16x256xf32>
    %232 = arith.addf %230, %231 : vector<16x256xf32>
    %233 = vector.extract_strided_slice %23 {offsets = [0, 0], sizes = [1, 256], strides = [1, 1]} : vector<2x256xf32> to vector<1x256xf32>
    %234 = vector.extract_strided_slice %232 {offsets = [0, 0], sizes = [8, 256], strides = [1, 1]} : vector<16x256xf32> to vector<8x256xf32>
    %235 = vector.broadcast %233 : vector<1x256xf32> to vector<8x256xf32>
    %236 = arith.mulf %235, %234 : vector<8x256xf32>
    %cst_78 = arith.constant 1.000000e+00 : f32
    %237 = vector.broadcast %cst_78 : f32 to vector<1x256xf32>
    %238 = arith.subf %237, %233 : vector<1x256xf32>
    %239 = vector.extract_strided_slice %232 {offsets = [8, 0], sizes = [8, 256], strides = [1, 1]} : vector<16x256xf32> to vector<8x256xf32>
    %240 = vector.broadcast %238 : vector<1x256xf32> to vector<8x256xf32>
    %241 = arith.mulf %240, %239 : vector<8x256xf32>
    %242 = arith.addf %236, %241 : vector<8x256xf32>
    %cst_79 = arith.constant dense<0.000000e+00> : vector<272x256xf32>
    %243 = tpu.matmul %212, %211, %cst_79 {dimension_numbers = #tpu.dot_dimension_numbers<[1], [0], [0], [1], [0, 0, 1, 1], [], []>} : vector<272x8xf32>, vector<8x256xf32>, vector<272x256xf32> -> vector<272x256xf32>
    %244 = vector.extract_strided_slice %243 {offsets = [0, 0], sizes = [128, 256], strides = [1, 1]} : vector<272x256xf32> to vector<128x256xf32>
    %cst_80 = arith.constant dense<0.000000e+00> : vector<128xf32>
    %245 = vector.multi_reduction <add>, %244, %cst_80 [1] : vector<128x256xf32> to vector<128xf32>
    %246 = vector.shape_cast %245 : vector<128xf32> to vector<128x1xf32>
    %cst_81 = arith.constant 2.560000e+02 : f32
    %247 = vector.broadcast %cst_81 : f32 to vector<128x1xf32>
    %248 = arith.divf %246, %247 : vector<128x1xf32>
    %249 = arith.addf %248, %213 : vector<128x1xf32>
    %250 = arith.negf %249 : vector<128x1xf32>
    %251 = math.exp %250 : vector<128x1xf32>
    %cst_82 = arith.constant 1.000000e+00 : f32
    %252 = vector.broadcast %cst_82 : f32 to vector<128x1xf32>
    %253 = arith.addf %252, %251 : vector<128x1xf32>
    %254 = arith.divf %252, %253 : vector<128x1xf32>
    %255 = vector.extract_strided_slice %243 {offsets = [128, 0], sizes = [128, 256], strides = [1, 1]} : vector<272x256xf32> to vector<128x256xf32>
    %256 = vector.broadcast %254 : vector<128x1xf32> to vector<128x256xf32>
    %257 = arith.mulf %256, %255 : vector<128x256xf32>
    %cst_83 = arith.constant dense<0.000000e+00> : vector<16x256xf32>
    %258 = tpu.matmul %214, %257, %cst_83 {dimension_numbers = #tpu.dot_dimension_numbers<[1], [0], [0], [1], [0, 0, 1, 1], [], []>} : vector<16x128xf32>, vector<128x256xf32>, vector<16x256xf32> -> vector<16x256xf32>
    %259 = vector.extract_strided_slice %243 {offsets = [256, 0], sizes = [16, 256], strides = [1, 1]} : vector<272x256xf32> to vector<16x256xf32>
    %260 = arith.addf %258, %259 : vector<16x256xf32>
    %261 = vector.extract_strided_slice %23 {offsets = [1, 0], sizes = [1, 256], strides = [1, 1]} : vector<2x256xf32> to vector<1x256xf32>
    %262 = vector.extract_strided_slice %260 {offsets = [0, 0], sizes = [8, 256], strides = [1, 1]} : vector<16x256xf32> to vector<8x256xf32>
    %263 = vector.broadcast %261 : vector<1x256xf32> to vector<8x256xf32>
    %264 = arith.mulf %263, %262 : vector<8x256xf32>
    %cst_84 = arith.constant 1.000000e+00 : f32
    %265 = vector.broadcast %cst_84 : f32 to vector<1x256xf32>
    %266 = arith.subf %265, %261 : vector<1x256xf32>
    %267 = vector.extract_strided_slice %260 {offsets = [8, 0], sizes = [8, 256], strides = [1, 1]} : vector<16x256xf32> to vector<8x256xf32>
    %268 = vector.broadcast %266 : vector<1x256xf32> to vector<8x256xf32>
    %269 = arith.mulf %268, %267 : vector<8x256xf32>
    %270 = arith.addf %264, %269 : vector<8x256xf32>
    %cst_85 = arith.constant dense<0.000000e+00> : vector<8xf32>
    %271 = vector.multi_reduction <add>, %242, %cst_85 [1] : vector<8x256xf32> to vector<8xf32>
    %272 = vector.shape_cast %271 : vector<8xf32> to vector<8x1xf32>
    %273 = arith.mulf %242, %242 : vector<8x256xf32>
    %cst_86 = arith.constant dense<0.000000e+00> : vector<8xf32>
    %274 = vector.multi_reduction <add>, %273, %cst_86 [1] : vector<8x256xf32> to vector<8xf32>
    %275 = vector.shape_cast %274 : vector<8xf32> to vector<8x1xf32>
    %cst_87 = arith.constant dense<0.000000e+00> : vector<8xf32>
    %276 = vector.multi_reduction <add>, %270, %cst_87 [1] : vector<8x256xf32> to vector<8xf32>
    %277 = vector.shape_cast %276 : vector<8xf32> to vector<8x1xf32>
    %278 = arith.addf %272, %277 : vector<8x1xf32>
    %279 = arith.mulf %270, %270 : vector<8x256xf32>
    %cst_88 = arith.constant dense<0.000000e+00> : vector<8xf32>
    %280 = vector.multi_reduction <add>, %279, %cst_88 [1] : vector<8x256xf32> to vector<8xf32>
    %281 = vector.shape_cast %280 : vector<8xf32> to vector<8x1xf32>
    %282 = arith.addf %275, %281 : vector<8x1xf32>
    %cst_89 = arith.constant 0.001953125 : f32
    %283 = vector.broadcast %cst_89 : f32 to vector<8x1xf32>
    %284 = arith.mulf %278, %283 : vector<8x1xf32>
    %cst_90 = arith.constant 0.001953125 : f32
    %285 = vector.broadcast %cst_90 : f32 to vector<8x1xf32>
    %286 = arith.mulf %282, %285 : vector<8x1xf32>
    %287 = arith.mulf %284, %284 : vector<8x1xf32>
    %288 = arith.subf %286, %287 : vector<8x1xf32>
    %cst_91 = arith.constant 9.99999974E-6 : f32
    %289 = vector.broadcast %cst_91 : f32 to vector<8x1xf32>
    %290 = arith.addf %288, %289 : vector<8x1xf32>
    %291 = math.rsqrt %290 : vector<8x1xf32>
    %292 = vector.broadcast %284 : vector<8x1xf32> to vector<8x256xf32>
    %293 = arith.subf %242, %292 : vector<8x256xf32>
    %294 = vector.broadcast %291 : vector<8x1xf32> to vector<8x256xf32>
    %295 = arith.mulf %293, %294 : vector<8x256xf32>
    %cst_92 = arith.constant 0.000000e+00 : f32
    %296 = vector.broadcast %cst_92 : f32 to vector<8x256xf32>
    %297 = arith.maximumf %295, %296 : vector<8x256xf32>
    %298 = vector.broadcast %284 : vector<8x1xf32> to vector<8x256xf32>
    %299 = arith.subf %270, %298 : vector<8x256xf32>
    %300 = vector.broadcast %291 : vector<8x1xf32> to vector<8x256xf32>
    %301 = arith.mulf %299, %300 : vector<8x256xf32>
    %cst_93 = arith.constant 0.000000e+00 : f32
    %302 = vector.broadcast %cst_93 : f32 to vector<8x256xf32>
    %303 = arith.maximumf %301, %302 : vector<8x256xf32>
    %304 = arith.addf %297, %25 : vector<8x256xf32>
    %cst_94 = arith.constant 0.000000e+00 : f32
    %305 = vector.broadcast %cst_94 : f32 to vector<8x256xf32>
    %306 = arith.maximumf %304, %305 : vector<8x256xf32>
    %c0_95 = arith.constant 0 : index
    %c0_96 = arith.constant 0 : index
    %c0_97 = arith.constant 0 : index
    %307 = vector.load %arg12[%c0_95, %c0_96, %c0_97] : memref<2x8x256xf32, #tpu.memory_space<vmem>>, vector<1x8x256xf32>
    %308 = vector.shape_cast %307 : vector<1x8x256xf32> to vector<8x256xf32>
    %309 = vector.shape_cast %306 : vector<8x256xf32> to vector<1x8x256xf32>
    tpu.vector_store %arg12[%c0_95, %c0_96, %c0_97], %309 {strides = array<i32>} : memref<2x8x256xf32, #tpu.memory_space<vmem>>, vector<1x8x256xf32>,
    %310 = arith.addf %303, %27 : vector<8x256xf32>
    %cst_98 = arith.constant 0.000000e+00 : f32
    %311 = vector.broadcast %cst_98 : f32 to vector<8x256xf32>
    %312 = arith.maximumf %310, %311 : vector<8x256xf32>
    %c1_99 = arith.constant 1 : index
    %c0_100 = arith.constant 0 : index
    %c0_101 = arith.constant 0 : index
    %313 = vector.load %arg12[%c1_99, %c0_100, %c0_101] : memref<2x8x256xf32, #tpu.memory_space<vmem>>, vector<1x8x256xf32>
    %314 = vector.shape_cast %313 : vector<1x8x256xf32> to vector<8x256xf32>
    %315 = vector.shape_cast %312 : vector<8x256xf32> to vector<1x8x256xf32>
    tpu.vector_store %arg12[%c1_99, %c0_100, %c0_101], %315 {strides = array<i32>} : memref<2x8x256xf32, #tpu.memory_space<vmem>>, vector<1x8x256xf32>,
    return
  }
}

</mosaic_0001>

<llo_original>
// kernel: tpu_custom_call.1
$region0: #{tpu_custom_call.1}
  #allocation0 [shape = 'u32[]', space=smem, size = 0x4, offset = 0x4, fixed_abs, tag = 'smem constant byte address 0x4 - core index']
  #allocation1 [shape = 'u32[144,128]{1,0:T(1,128)}', space=vmem, size = 0x12000, scoped, tag = 'internal scratch']
  %s0 = inlined_call_operand.vmem [shape: f32[2,8,256], index: 0, kind: input, shape index: {}]
  %s1 = inlined_call_operand.vmem [shape: f32[2,256], index: 1, kind: input, shape index: {}]
  %s2 = inlined_call_operand.vmem [shape: f32[256,256], index: 2, kind: input, shape index: {}]
  %s3 = inlined_call_operand.vmem [shape: f32[288,8], index: 3, kind: input, shape index: {}]
  %s4 = inlined_call_operand.vmem [shape: f32[128,1], index: 4, kind: input, shape index: {}]
  %s5 = inlined_call_operand.vmem [shape: f32[32,128], index: 5, kind: input, shape index: {}]
  %s6 = inlined_call_operand.vmem [shape: f32[528,16], index: 6, kind: input, shape index: {}]
  %s7 = inlined_call_operand.vmem [shape: f32[256,1], index: 7, kind: input, shape index: {}]
  %s8 = inlined_call_operand.vmem [shape: f32[16,256], index: 8, kind: input, shape index: {}]
  %s9 = inlined_call_operand.vmem [shape: f32[272,8], index: 9, kind: input, shape index: {}]
  %s10 = inlined_call_operand.vmem [shape: f32[128,1], index: 10, kind: input, shape index: {}]
  %s11 = inlined_call_operand.vmem [shape: f32[16,128], index: 11, kind: input, shape index: {}]
  %s12 = inlined_call_operand.hbm [shape: f32[2,8,256], index: 12, kind: output, shape index: {}]
  %s13 = sld [smem:[#allocation0]]
  $region58: #{tpu_custom_call.1} parent=0
    _
  %s15 = ssub.s32 1, %s13
  %s16 = scalar_select 0, %s15, %s13
  $region1: #{tpu_custom_call.1} parent=0
    #allocation2 [shape = 'u8[16384]{0}', space=vmem, size = 0x4000, scoped, tag = 'output window, operand 0, single buffered']
    #allocation3 [shape = 's32[1]{0}', space=sflag, size = 0x4, scoped, tag = 'scoped memory for tpu_custom_call.1']
    %17 = vsyncpa [#allocation3], 0
    // Predicated region
    $region2: #{tpu_custom_call.1} parent=1 // pred_check
      _
    $region3: #{tpu_custom_call.1} parent=1 // pred_check_branch
      %19 = sbr.rel (0) target = $region5
    $region4: #{tpu_custom_call.1} parent=1 // pred_region
      _
    $region5: #{tpu_custom_call.1} parent=1 // pred_fallthru
      _
    // Predicated region
    $region6: #{tpu_custom_call.1} parent=1 // pred_check
      _
    $region7: #{tpu_custom_call.1} parent=1 // pred_check_branch
      %21 = sbr.rel (0) target = $region9
    $region8: #{tpu_custom_call.1} parent=1 // pred_region
      _
    $region9: #{tpu_custom_call.1} parent=1 // pred_fallthru
      _
    // Predicated region
    $region10: #{tpu_custom_call.1} parent=1 // pred_check
      _
    $region11: #{tpu_custom_call.1} parent=1 // pred_check_branch
      %23 = sbr.rel (0) target = $region13
    $region12: #{tpu_custom_call.1} parent=1 // pred_region
      _
    $region13: #{tpu_custom_call.1} parent=1 // pred_fallthru
      _
    // Predicated region
    $region14: #{tpu_custom_call.1} parent=1 // pred_check
      _
    $region15: #{tpu_custom_call.1} parent=1 // pred_check_branch
      %25 = sbr.rel (0) target = $region17
    $region16: #{tpu_custom_call.1} parent=1 // pred_region
      _
    $region17: #{tpu_custom_call.1} parent=1 // pred_fallthru
      _
    // Predicated region
    $region18: #{tpu_custom_call.1} parent=1 // pred_check
      _
    $region19: #{tpu_custom_call.1} parent=1 // pred_check_branch
      %27 = sbr.rel (0) target = $region21
    $region20: #{tpu_custom_call.1} parent=1 // pred_region
      _
    $region21: #{tpu_custom_call.1} parent=1 // pred_fallthru
      _
    // Predicated region
    $region22: #{tpu_custom_call.1} parent=1 // pred_check
      _
    $region23: #{tpu_custom_call.1} parent=1 // pred_check_branch
      %29 = sbr.rel (0) target = $region25
    $region24: #{tpu_custom_call.1} parent=1 // pred_region
      _
    $region25: #{tpu_custom_call.1} parent=1 // pred_fallthru
      _
    // Predicated region
    $region26: #{tpu_custom_call.1} parent=1 // pred_check
      _
    $region27: #{tpu_custom_call.1} parent=1 // pred_check_branch
      %31 = sbr.rel (0) target = $region29
    $region28: #{tpu_custom_call.1} parent=1 // pred_region
      _
    $region29: #{tpu_custom_call.1} parent=1 // pred_fallthru
      _
    // Predicated region
    $region30: #{tpu_custom_call.1} parent=1 // pred_check
      _
    $region31: #{tpu_custom_call.1} parent=1 // pred_check_branch
      %33 = sbr.rel (0) target = $region33
    $region32: #{tpu_custom_call.1} parent=1 // pred_region
      _
    $region33: #{tpu_custom_call.1} parent=1 // pred_fallthru
      _
    // Predicated region
    $region34: #{tpu_custom_call.1} parent=1 // pred_check
      _
    $region35: #{tpu_custom_call.1} parent=1 // pred_check_branch
      %35 = sbr.rel (0) target = $region37
    $region36: #{tpu_custom_call.1} parent=1 // pred_region
      _
    $region37: #{tpu_custom_call.1} parent=1 // pred_fallthru
      _
    // Predicated region
    $region38: #{tpu_custom_call.1} parent=1 // pred_check
      _
    $region39: #{tpu_custom_call.1} parent=1 // pred_check_branch
      %37 = sbr.rel (0) target = $region41
    $region40: #{tpu_custom_call.1} parent=1 // pred_region
      _
    $region41: #{tpu_custom_call.1} parent=1 // pred_fallthru
      _
    // Predicated region
    $region42: #{tpu_custom_call.1} parent=1 // pred_check
      _
    $region43: #{tpu_custom_call.1} parent=1 // pred_check_branch
      %39 = sbr.rel (0) target = $region45
    $region44: #{tpu_custom_call.1} parent=1 // pred_region
      _
    $region45: #{tpu_custom_call.1} parent=1 // pred_fallthru
      _
    // Predicated region
    $region46: #{tpu_custom_call.1} parent=1 // pred_check
      _
    $region47: #{tpu_custom_call.1} parent=1 // pred_check_branch
      %41 = sbr.rel (0) target = $region49
    $region48: #{tpu_custom_call.1} parent=1 // pred_region
      _
    $region49: #{tpu_custom_call.1} parent=1 // pred_fallthru
      _
    %v42 = vld [vmem:[%s1] sm:$0xf]
    %v43 = vxor.u32 %v42, 2147483648
    %v44 = vmul.f32 %v43, 1.442695
    %v45 = vpow.pop %v44
    %v46 = vadd.f32 %v45, 1.0
    %v47 = vrcp.pop %v46
    %v48 = vmul.f32 1.0, %v47
    %v49 = vld [vmem:[%s2] sm:$0xff]
    %v50 = vld [vmem:[%s2 + $0x8] sm:$0xff]
    %v51 = vld [vmem:[%s2 + $0x10] sm:$0xff]
    %v52 = vld [vmem:[%s2 + $0x18] sm:$0xff]
    %v53 = vld [vmem:[%s2 + $0x20] sm:$0xff]
    %v54 = vld [vmem:[%s2 + $0x28] sm:$0xff]
    %v55 = vld [vmem:[%s2 + $0x30] sm:$0xff]
    %v56 = vld [vmem:[%s2 + $0x38] sm:$0xff]
    %v57 = vld [vmem:[%s2 + $0x40] sm:$0xff]
    %v58 = vld [vmem:[%s2 + $0x48] sm:$0xff]
    %v59 = vld [vmem:[%s2 + $0x50] sm:$0xff]
    %v60 = vld [vmem:[%s2 + $0x58] sm:$0xff]
    %v61 = vld [vmem:[%s2 + $0x60] sm:$0xff]
    %v62 = vld [vmem:[%s2 + $0x68] sm:$0xff]
    %v63 = vld [vmem:[%s2 + $0x70] sm:$0xff]
    %v64 = vld [vmem:[%s2 + $0x78] sm:$0xff]
    %v65 = vld [vmem:[%s2 + $0x80] sm:$0xff]
    %v66 = vld [vmem:[%s2 + $0x88] sm:$0xff]
    %v67 = vld [vmem:[%s2 + $0x90] sm:$0xff]
    %v68 = vld [vmem:[%s2 + $0x98] sm:$0xff]
    %v69 = vld [vmem:[%s2 + $0xa0] sm:$0xff]
    %v70 = vld [vmem:[%s2 + $0xa8] sm:$0xff]
    %v71 = vld [vmem:[%s2 + $0xb0] sm:$0xff]
    %v72 = vld [vmem:[%s2 + $0xb8] sm:$0xff]
    %v73 = vld [vmem:[%s2 + $0xc0] sm:$0xff]
    %v74 = vld [vmem:[%s2 + $0xc8] sm:$0xff]
    %v75 = vld [vmem:[%s2 + $0xd0] sm:$0xff]
    %v76 = vld [vmem:[%s2 + $0xd8] sm:$0xff]
    %v77 = vld [vmem:[%s2 + $0xe0] sm:$0xff]
    %v78 = vld [vmem:[%s2 + $0xe8] sm:$0xff]
    %v79 = vld [vmem:[%s2 + $0xf0] sm:$0xff]
    %v80 = vld [vmem:[%s2 + $0xf8] sm:$0xff]
    %v81 = vld [vmem:[%s2 + $0x100] sm:$0xff]
    %v82 = vld [vmem:[%s2 + $0x108] sm:$0xff]
    %v83 = vld [vmem:[%s2 + $0x110] sm:$0xff]
    %v84 = vld [vmem:[%s2 + $0x118] sm:$0xff]
    %v85 = vld [vmem:[%s2 + $0x120] sm:$0xff]
    %v86 = vld [vmem:[%s2 + $0x128] sm:$0xff]
    %v87 = vld [vmem:[%s2 + $0x130] sm:$0xff]
    %v88 = vld [vmem:[%s2 + $0x138] sm:$0xff]
    %v89 = vld [vmem:[%s2 + $0x140] sm:$0xff]
    %v90 = vld [vmem:[%s2 + $0x148] sm:$0xff]
    %v91 = vld [vmem:[%s2 + $0x150] sm:$0xff]
    %v92 = vld [vmem:[%s2 + $0x158] sm:$0xff]
    %v93 = vld [vmem:[%s2 + $0x160] sm:$0xff]
    %v94 = vld [vmem:[%s2 + $0x168] sm:$0xff]
    %v95 = vld [vmem:[%s2 + $0x170] sm:$0xff]
    %v96 = vld [vmem:[%s2 + $0x178] sm:$0xff]
    %v97 = vld [vmem:[%s2 + $0x180] sm:$0xff]
    %v98 = vld [vmem:[%s2 + $0x188] sm:$0xff]
    %v99 = vld [vmem:[%s2 + $0x190] sm:$0xff]
    %v100 = vld [vmem:[%s2 + $0x198] sm:$0xff]
    %v101 = vld [vmem:[%s2 + $0x1a0] sm:$0xff]
    %v102 = vld [vmem:[%s2 + $0x1a8] sm:$0xff]
    %v103 = vld [vmem:[%s2 + $0x1b0] sm:$0xff]
    %v104 = vld [vmem:[%s2 + $0x1b8] sm:$0xff]
    %v105 = vld [vmem:[%s2 + $0x1c0] sm:$0xff]
    %v106 = vld [vmem:[%s2 + $0x1c8] sm:$0xff]
    %v107 = vld [vmem:[%s2 + $0x1d0] sm:$0xff]
    %v108 = vld [vmem:[%s2 + $0x1d8] sm:$0xff]
    %v109 = vld [vmem:[%s2 + $0x1e0] sm:$0xff]
    %v110 = vld [vmem:[%s2 + $0x1e8] sm:$0xff]
    %v111 = vld [vmem:[%s2 + $0x1f0] sm:$0xff]
    %v112 = vld [vmem:[%s2 + $0x1f8] sm:$0xff]
    %v115 = vunpack.c.l.s4 1983009808
    %v116 = vunpack.c.0.s8 %v115
    %v117 = vlaneseq
    %v118 = vshrl.u32 %v117, 7
    %v119 = vsub.s32 %v116, %v118
    %v120 = vrot.slane %v48, %v119
    %v121 = vcombine.high %v120, %v120
    %124 = vmatprep.subr.mxu0 %v50
    %125 = vmatpush1.msra.mxu0 %v49
    %126 = vmatprep.subr.mxu0 %v52
    %127 = vmatpush1.msra.mxu0 %v51
    %128 = vmatprep.subr.mxu0 %v54
    %129 = vmatpush1.msra.mxu0 %v53
    %130 = vmatprep.subr.mxu0 %v56
    %131 = vmatpush1.msra.mxu0 %v55
    %132 = vmatprep.subr.mxu0 %v58
    %133 = vmatpush1.msra.mxu0 %v57
    %134 = vmatprep.subr.mxu0 %v60
    %135 = vmatpush1.msra.mxu0 %v59
    %136 = vmatprep.subr.mxu0 %v62
    %137 = vmatpush1.msra.mxu0 %v61
    %138 = vmatprep.subr.mxu0 %v64
    %139 = vmatpush1.msra.mxu0 %v63
    %140 = vmatprep.subr.mxu0 %v66
    %141 = vmatpush1.msra.mxu0 %v65
    %142 = vmatprep.subr.mxu0 %v68
    %143 = vmatpush1.msra.mxu0 %v67
    %144 = vmatprep.subr.mxu0 %v70
    %145 = vmatpush1.msra.mxu0 %v69
    %146 = vmatprep.subr.mxu0 %v72
    %147 = vmatpush1.msra.mxu0 %v71
    %148 = vmatprep.subr.mxu0 %v74
    %149 = vmatpush1.msra.mxu0 %v73
    %150 = vmatprep.subr.mxu0 %v76
    %151 = vmatpush1.msra.mxu0 %v75
    %152 = vmatprep.subr.mxu0 %v78
    %153 = vmatpush1.msra.mxu0 %v77
    %154 = vmatprep.subr.mxu0 %v80
    %155 = vmatpush1.msra.mxu0 %v79
    %156 = vmatprep.subr.mxu0 %v82
    %157 = vmatpush1.msra.mxu0 %v81
    %158 = vmatprep.subr.mxu0 %v84
    %159 = vmatpush1.msra.mxu0 %v83
    %160 = vmatprep.subr.mxu0 %v86
    %161 = vmatpush1.msra.mxu0 %v85
    %162 = vmatprep.subr.mxu0 %v88
    %163 = vmatpush1.msra.mxu0 %v87
    %164 = vmatprep.subr.mxu0 %v90
    %165 = vmatpush1.msra.mxu0 %v89
    %166 = vmatprep.subr.mxu0 %v92
    %167 = vmatpush1.msra.mxu0 %v91
    %168 = vmatprep.subr.mxu0 %v94
    %169 = vmatpush1.msra.mxu0 %v93
    %170 = vmatprep.subr.mxu0 %v96
    %171 = vmatpush1.msra.mxu0 %v95
    %172 = vmatprep.subr.mxu0 %v98
    %173 = vmatpush1.msra.mxu0 %v97
    %174 = vmatprep.subr.mxu0 %v100
    %175 = vmatpush1.msra.mxu0 %v99
    %176 = vmatprep.subr.mxu0 %v102
    %177 = vmatpush1.msra.mxu0 %v101
    %178 = vmatprep.subr.mxu0 %v104
    %179 = vmatpush1.msra.mxu0 %v103
    %180 = vmatprep.subr.mxu0 %v106
    %181 = vmatpush1.msra.mxu0 %v105
    %182 = vmatprep.subr.mxu0 %v108
    %183 = vmatpush1.msra.mxu0 %v107
    %184 = vmatprep.subr.mxu0 %v110
    %185 = vmatpush1.msra.mxu0 %v109
    %186 = vmatprep.subr.mxu0 %v112
    %187 = vmatpush1.msra.mxu0 %v111
    %188 = vmatprep.mubr.f32.mxu0 %v121
    %189 = vmatmul.mubr.f32.gmra.mrb[0].mxu0 %v120
    %v190 = vpop.f32.mrb[0].mxu0
    %v191 = vadd.f32 0.0, %v190
    %v192 = vpop.f32.mrb[0].mxu0
    %v193 = vadd.f32 0.0, %v192
    %194 = vdwg.mxu0
    %vm195 = vcmask 1041408
    %v196 = vsel %vm195, %v191, -inf
    %v197 = vsel %vm195, %v193, -inf
    %v198 = vmax.f32 %v196, %v197
    %199 = vmax.xlane.f32.xlu0 %v198
    %v200 = vpop.xlane.xlu0 %199
    %v201 = vsel %vm195, %v191, inf
    %v202 = vsel %vm195, %v193, inf
    %v203 = vmin.f32 %v201, %v202
    %204 = vmin.xlane.f32.xlu0 %v203
    %v205 = vpop.xlane.xlu0 %204
    %v206 = vsub.f32 %v191, %v205
    %v207 = vsub.f32 %v193, %v205
    %v208 = vsub.f32 %v200, %v205
    %v209 = vadd.f32 %v208, 1e-08
    %v210 = vrcp.pop %v209
    %v211 = vmul.f32 %v206, %v210
    %v212 = vmul.f32 %v207, %v210
    %v213 = vmax.f32 %v211, %v120
    %v214 = vmax.f32 %v212, %v121
    %vm215 = vcmp.ge.f32.partialorder %v213, 0.5
    %vm216 = vcmp.ge.f32.partialorder %v214, 0.5
    %v217 = vsel %vm215, 1, 0
    %v218 = vsel %vm216, 1, 0
    %v219 = vcvt.s32.f32 %v217
    %v220 = vcvt.s32.f32 %v218
    %v221 = vld [vmem:[%s0] sm:$0xff]
    %v222 = vld [vmem:[%s0 + $0x8] sm:$0xff]
    %s223 = scalar_lea.vmem %s0, 16
    %v224 = vld [vmem:[%s223] sm:$0xff]
    %v225 = vld [vmem:[%s223 + $0x8] sm:$0xff]
    %v226 = vld [vmem:[%s3] sm:$0xff]
    %v227 = vld [vmem:[%s3 + $0x8] sm:$0xff]
    %v228 = vld [vmem:[%s3 + $0x10] sm:$0xff]
    %v229 = vld [vmem:[%s3 + $0x18] sm:$0xff]
    %v230 = vld [vmem:[%s3 + $0x20] sm:$0xff]
    %v231 = vld [vmem:[%s3 + $0x28] sm:$0xff]
    %v232 = vld [vmem:[%s3 + $0x30] sm:$0xff]
    %v233 = vld [vmem:[%s3 + $0x38] sm:$0xff]
    %v234 = vld [vmem:[%s3 + $0x40] sm:$0xff]
    %v235 = vld [vmem:[%s3 + $0x48] sm:$0xff]
    %v236 = vld [vmem:[%s3 + $0x50] sm:$0xff]
    %v237 = vld [vmem:[%s3 + $0x58] sm:$0xff]
    %v238 = vld [vmem:[%s3 + $0x60] sm:$0xff]
    %v239 = vld [vmem:[%s3 + $0x68] sm:$0xff]
    %v240 = vld [vmem:[%s3 + $0x70] sm:$0xff]
    %v241 = vld [vmem:[%s3 + $0x78] sm:$0xff]
    %v242 = vld [vmem:[%s3 + $0x80] sm:$0xff]
    %v243 = vld [vmem:[%s3 + $0x88] sm:$0xff]
    %v244 = vld [vmem:[%s3 + $0x90] sm:$0xff]
    %v245 = vld [vmem:[%s3 + $0x98] sm:$0xff]
    %v246 = vld [vmem:[%s3 + $0xa0] sm:$0xff]
    %v247 = vld [vmem:[%s3 + $0xa8] sm:$0xff]
    %v248 = vld [vmem:[%s3 + $0xb0] sm:$0xff]
    %v249 = vld [vmem:[%s3 + $0xb8] sm:$0xff]
    %v250 = vld [vmem:[%s3 + $0xc0] sm:$0xff]
    %v251 = vld [vmem:[%s3 + $0xc8] sm:$0xff]
    %v252 = vld [vmem:[%s3 + $0xd0] sm:$0xff]
    %v253 = vld [vmem:[%s3 + $0xd8] sm:$0xff]
    %v254 = vld [vmem:[%s3 + $0xe0] sm:$0xff]
    %v255 = vld [vmem:[%s3 + $0xe8] sm:$0xff]
    %v256 = vld [vmem:[%s3 + $0xf0] sm:$0xff]
    %v257 = vld [vmem:[%s3 + $0xf8] sm:$0xff]
    %v258 = vld [vmem:[%s3 + $0x100] sm:$0xff]
    %v259 = vld [vmem:[%s3 + $0x108] sm:$0xff]
    %v260 = vld [vmem:[%s3 + $0x110] sm:$0xff]
    %v261 = vld [vmem:[%s3 + $0x118] sm:$0xff]
    %v262 = vld [vmem:[%s4] sm:$0xff]
    %v263 = vld [vmem:[%s4 + $0x8] sm:$0xff]
    %v264 = vld [vmem:[%s4 + $0x10] sm:$0xff]
    %v265 = vld [vmem:[%s4 + $0x18] sm:$0xff]
    %v266 = vld [vmem:[%s4 + $0x20] sm:$0xff]
    %v267 = vld [vmem:[%s4 + $0x28] sm:$0xff]
    %v268 = vld [vmem:[%s4 + $0x30] sm:$0xff]
    %v269 = vld [vmem:[%s4 + $0x38] sm:$0xff]
    %v270 = vld [vmem:[%s4 + $0x40] sm:$0xff]
    %v271 = vld [vmem:[%s4 + $0x48] sm:$0xff]
    %v272 = vld [vmem:[%s4 + $0x50] sm:$0xff]
    %v273 = vld [vmem:[%s4 + $0x58] sm:$0xff]
    %v274 = vld [vmem:[%s4 + $0x60] sm:$0xff]
    %v275 = vld [vmem:[%s4 + $0x68] sm:$0xff]
    %v276 = vld [vmem:[%s4 + $0x70] sm:$0xff]
    %v277 = vld [vmem:[%s4 + $0x78] sm:$0xff]
    %v278 = vld [vmem:[%s5] sm:$0xff]
    %v279 = vld [vmem:[%s5 + $0x8] sm:$0xff]
    %v280 = vld [vmem:[%s5 + $0x10] sm:$0xff]
    %v281 = vld [vmem:[%s5 + $0x18] sm:$0xff]
    %vm282 = vcmask 64512
    %v284 = vsel %vm282, %v226, 0
    %v287 = vsel %vm282, %v227, 0
    %v290 = vsel %vm282, %v228, 0
    %v293 = vsel %vm282, %v229, 0
    %v296 = vsel %vm282, %v230, 0
    %v299 = vsel %vm282, %v231, 0
    %v302 = vsel %vm282, %v232, 0
    %v305 = vsel %vm282, %v233, 0
    %v308 = vsel %vm282, %v234, 0
    %v311 = vsel %vm282, %v235, 0
    %v314 = vsel %vm282, %v236, 0
    %v317 = vsel %vm282, %v237, 0
    %v320 = vsel %vm282, %v238, 0
    %v323 = vsel %vm282, %v239, 0
    %v326 = vsel %vm282, %v240, 0
    %v329 = vsel %vm282, %v241, 0
    %v332 = vsel %vm282, %v242, 0
    %v335 = vsel %vm282, %v243, 0
    %v338 = vsel %vm282, %v244, 0
    %v341 = vsel %vm282, %v245, 0
    %v344 = vsel %vm282, %v246, 0
    %v347 = vsel %vm282, %v247, 0
    %v350 = vsel %vm282, %v248, 0
    %v353 = vsel %vm282, %v249, 0
    %v356 = vsel %vm282, %v250, 0
    %v359 = vsel %vm282, %v251, 0
    %v362 = vsel %vm282, %v252, 0
    %v365 = vsel %vm282, %v253, 0
    %v368 = vsel %vm282, %v254, 0
    %v371 = vsel %vm282, %v255, 0
    %v374 = vsel %vm282, %v256, 0
    %v377 = vsel %vm282, %v257, 0
    %v380 = vsel %vm282, %v258, 0
    %v383 = vsel %vm282, %v259, 0
    %v386 = vsel %vm282, %v260, 0
    %v389 = vsel %vm282, %v261, 0
    %391 = vmatprep.subr.mxu0 %v222
    %392 = vmatpush1.msra.mxu0 %v221
    %393 = vmatprep.subr.mxu0 0.0
    %394 = vmatpush1.msra.mxu0 0.0
    %395 = vmatprep.subr.mxu0 0.0
    %396 = vmatpush1.msra.mxu0 0.0
    %397 = vmatprep.subr.mxu0 0.0
    %398 = vmatpush1.msra.mxu0 0.0
    %399 = vmatprep.subr.mxu0 0.0
    %400 = vmatpush1.msra.mxu0 0.0
    %401 = vmatprep.subr.mxu0 0.0
    %402 = vmatpush1.msra.mxu0 0.0
    %403 = vmatprep.subr.mxu0 0.0
    %404 = vmatpush1.msra.mxu0 0.0
    %405 = vmatprep.subr.mxu0 0.0
    %406 = vmatpush1.msra.mxu0 0.0
    %407 = vmatprep.subr.mxu0 0.0
    %408 = vmatpush1.msra.mxu0 0.0
    %409 = vmatprep.subr.mxu0 0.0
    %410 = vmatpush1.msra.mxu0 0.0
    %411 = vmatprep.subr.mxu0 0.0
    %412 = vmatpush1.msra.mxu0 0.0
    %413 = vmatprep.subr.mxu0 0.0
    %414 = vmatpush1.msra.mxu0 0.0
    %415 = vmatprep.subr.mxu0 0.0
    %416 = vmatpush1.msra.mxu0 0.0
    %417 = vmatprep.subr.mxu0 0.0
    %418 = vmatpush1.msra.mxu0 0.0
    %419 = vmatprep.subr.mxu0 0.0
    %420 = vmatpush1.msra.mxu0 0.0
    %421 = vmatprep.subr.mxu0 0.0
    %422 = vmatpush1.msra.mxu0 0.0
    %423 = vmatprep.subr.mxu0 0.0
    %424 = vmatpush1.msra.mxu0 0.0
    %425 = vmatprep.subr.mxu0 0.0
    %426 = vmatpush1.msra.mxu0 0.0
    %427 = vmatprep.subr.mxu0 0.0
    %428 = vmatpush1.msra.mxu0 0.0
    %429 = vmatprep.subr.mxu0 0.0
    %430 = vmatpush1.msra.mxu0 0.0
    %431 = vmatprep.subr.mxu0 0.0
    %432 = vmatpush1.msra.mxu0 0.0
    %433 = vmatprep.subr.mxu0 0.0
    %434 = vmatpush1.msra.mxu0 0.0
    %435 = vmatprep.subr.mxu0 0.0
    %436 = vmatpush1.msra.mxu0 0.0
    %437 = vmatprep.subr.mxu0 0.0
    %438 = vmatpush1.msra.mxu0 0.0
    %439 = vmatprep.subr.mxu0 0.0
    %440 = vmatpush1.msra.mxu0 0.0
    %441 = vmatprep.subr.mxu0 0.0
    %442 = vmatpush1.msra.mxu0 0.0
    %443 = vmatprep.subr.mxu0 0.0
    %444 = vmatpush1.msra.mxu0 0.0
    %445 = vmatprep.subr.mxu0 0.0
    %446 = vmatpush1.msra.mxu0 0.0
    %447 = vmatprep.subr.mxu0 0.0
    %448 = vmatpush1.msra.mxu0 0.0
    %449 = vmatprep.subr.mxu0 0.0
    %450 = vmatpush1.msra.mxu0 0.0
    %451 = vmatprep.subr.mxu0 0.0
    %452 = vmatpush1.msra.mxu0 0.0
    %453 = vmatprep.subr.mxu0 0.0
    %454 = vmatpush1.msra.mxu0 0.0
    %455 = vmatprep.mubr.f32.mxu0 0.0
    %456 = vmatmul.mubr.f32.gmra.mrb[0].mxu0 %v284
    %v457 = vpop.f32.mrb[0].mxu0
    %v458 = vadd.f32 0.0, %v457
    %v459 = vpop.f32.mrb[0].mxu0
    %v460 = vadd.f32 0.0, %v459
    %461 = vmatprep.mubr.f32.mxu0 0.0
    %462 = vmatmul.mubr.f32.gmra.mrb[0].mxu0 %v287
    %v463 = vpop.f32.mrb[0].mxu0
    %v464 = vadd.f32 0.0, %v463
    %v465 = vpop.f32.mrb[0].mxu0
    %v466 = vadd.f32 0.0, %v465
    %467 = vmatprep.mubr.f32.mxu0 0.0
    %468 = vmatmul.mubr.f32.gmra.mrb[0].mxu0 %v290
    %v469 = vpop.f32.mrb[0].mxu0
    %v470 = vadd.f32 0.0, %v469
    %v471 = vpop.f32.mrb[0].mxu0
    %v472 = vadd.f32 0.0, %v471
    %473 = vmatprep.mubr.f32.mxu0 0.0
    %474 = vmatmul.mubr.f32.gmra.mrb[0].mxu0 %v293
    %v475 = vpop.f32.mrb[0].mxu0
    %v476 = vadd.f32 0.0, %v475
    %v477 = vpop.f32.mrb[0].mxu0
    %v478 = vadd.f32 0.0, %v477
    %479 = vmatprep.mubr.f32.mxu0 0.0
    %480 = vmatmul.mubr.f32.gmra.mrb[0].mxu0 %v296
    %v481 = vpop.f32.mrb[0].mxu0
    %v482 = vadd.f32 0.0, %v481
    %v483 = vpop.f32.mrb[0].mxu0
    %v484 = vadd.f32 0.0, %v483
    %485 = vmatprep.mubr.f32.mxu0 0.0
    %486 = vmatmul.mubr.f32.gmra.mrb[0].mxu0 %v299
    %v487 = vpop.f32.mrb[0].mxu0
    %v488 = vadd.f32 0.0, %v487
    %v489 = vpop.f32.mrb[0].mxu0
    %v490 = vadd.f32 0.0, %v489
    %491 = vmatprep.mubr.f32.mxu0 0.0
    %492 = vmatmul.mubr.f32.gmra.mrb[0].mxu0 %v302
    %v493 = vpop.f32.mrb[0].mxu0
    %v494 = vadd.f32 0.0, %v493
    %v495 = vpop.f32.mrb[0].mxu0
    %v496 = vadd.f32 0.0, %v495
    %497 = vmatprep.mubr.f32.mxu0 0.0
    %498 = vmatmul.mubr.f32.gmra.mrb[0].mxu0 %v305
    %v499 = vpop.f32.mrb[0].mxu0
    %v500 = vadd.f32 0.0, %v499
    %v501 = vpop.f32.mrb[0].mxu0
    %v502 = vadd.f32 0.0, %v501
    %503 = vmatprep.mubr.f32.mxu0 0.0
    %504 = vmatmul.mubr.f32.gmra.mrb[0].mxu0 %v308
    %v505 = vpop.f32.mrb[0].mxu0
    %v506 = vadd.f32 0.0, %v505
    %v507 = vpop.f32.mrb[0].mxu0
    %v508 = vadd.f32 0.0, %v507
    %509 = vmatprep.mubr.f32.mxu0 0.0
    %510 = vmatmul.mubr.f32.gmra.mrb[0].mxu0 %v311
    %v511 = vpop.f32.mrb[0].mxu0
    %v512 = vadd.f32 0.0, %v511
    %v513 = vpop.f32.mrb[0].mxu0
    %v514 = vadd.f32 0.0, %v513
    %515 = vmatprep.mubr.f32.mxu0 0.0
    %516 = vmatmul.mubr.f32.gmra.mrb[0].mxu0 %v314
    %v517 = vpop.f32.mrb[0].mxu0
    %v518 = vadd.f32 0.0, %v517
    %v519 = vpop.f32.mrb[0].mxu0
    %v520 = vadd.f32 0.0, %v519
    %521 = vmatprep.mubr.f32.mxu0 0.0
    %522 = vmatmul.mubr.f32.gmra.mrb[0].mxu0 %v317
    %v523 = vpop.f32.mrb[0].mxu0
    %v524 = vadd.f32 0.0, %v523
    %v525 = vpop.f32.mrb[0].mxu0
    %v526 = vadd.f32 0.0, %v525
    %527 = vmatprep.mubr.f32.mxu0 0.0
    %528 = vmatmul.mubr.f32.gmra.mrb[0].mxu0 %v320
    %v529 = vpop.f32.mrb[0].mxu0
    %v530 = vadd.f32 0.0, %v529
    %v531 = vpop.f32.mrb[0].mxu0
    %v532 = vadd.f32 0.0, %v531
    %533 = vmatprep.mubr.f32.mxu0 0.0
    %534 = vmatmul.mubr.f32.gmra.mrb[0].mxu0 %v323
    %v535 = vpop.f32.mrb[0].mxu0
    %v536 = vadd.f32 0.0, %v535
    %v537 = vpop.f32.mrb[0].mxu0
    %v538 = vadd.f32 0.0, %v537
    %539 = vmatprep.mubr.f32.mxu0 0.0
    %540 = vmatmul.mubr.f32.gmra.mrb[0].mxu0 %v326
    %v541 = vpop.f32.mrb[0].mxu0
    %v542 = vadd.f32 0.0, %v541
    %v543 = vpop.f32.mrb[0].mxu0
    %v544 = vadd.f32 0.0, %v543
    %545 = vmatprep.mubr.f32.mxu0 0.0
    %546 = vmatmul.mubr.f32.gmra.mrb[0].mxu0 %v329
    %v547 = vpop.f32.mrb[0].mxu0
    %v548 = vadd.f32 0.0, %v547
    %v549 = vpop.f32.mrb[0].mxu0
    %v550 = vadd.f32 0.0, %v549
    %551 = vmatprep.mubr.f32.mxu0 0.0
    %552 = vmatmul.mubr.f32.gmra.mrb[0].mxu0 %v332
    %v553 = vpop.f32.mrb[0].mxu0
    %v554 = vadd.f32 0.0, %v553
    %v555 = vpop.f32.mrb[0].mxu0
    %v556 = vadd.f32 0.0, %v555
    %557 = vmatprep.mubr.f32.mxu0 0.0
    %558 = vmatmul.mubr.f32.gmra.mrb[0].mxu0 %v335
    %v559 = vpop.f32.mrb[0].mxu0
    %v560 = vadd.f32 0.0, %v559
    %v561 = vpop.f32.mrb[0].mxu0
    %v562 = vadd.f32 0.0, %v561
    %563 = vmatprep.mubr.f32.mxu0 0.0
    %564 = vmatmul.mubr.f32.gmra.mrb[0].mxu0 %v338
    %v565 = vpop.f32.mrb[0].mxu0
    %v566 = vadd.f32 0.0, %v565
    %v567 = vpop.f32.mrb[0].mxu0
    %v568 = vadd.f32 0.0, %v567
    %569 = vmatprep.mubr.f32.mxu0 0.0
    %570 = vmatmul.mubr.f32.gmra.mrb[0].mxu0 %v341
    %v571 = vpop.f32.mrb[0].mxu0
    %v572 = vadd.f32 0.0, %v571
    %v573 = vpop.f32.mrb[0].mxu0
    %v574 = vadd.f32 0.0, %v573
    %575 = vmatprep.mubr.f32.mxu0 0.0
    %576 = vmatmul.mubr.f32.gmra.mrb[0].mxu0 %v344
    %v577 = vpop.f32.mrb[0].mxu0
    %v578 = vadd.f32 0.0, %v577
    %v579 = vpop.f32.mrb[0].mxu0
    %v580 = vadd.f32 0.0, %v579
    %581 = vmatprep.mubr.f32.mxu0 0.0
    %582 = vmatmul.mubr.f32.gmra.mrb[0].mxu0 %v347
    %v583 = vpop.f32.mrb[0].mxu0
    %v584 = vadd.f32 0.0, %v583
    %v585 = vpop.f32.mrb[0].mxu0
    %v586 = vadd.f32 0.0, %v585
    %587 = vmatprep.mubr.f32.mxu0 0.0
    %588 = vmatmul.mubr.f32.gmra.mrb[0].mxu0 %v350
    %v589 = vpop.f32.mrb[0].mxu0
    %v590 = vadd.f32 0.0, %v589
    %v591 = vpop.f32.mrb[0].mxu0
    %v592 = vadd.f32 0.0, %v591
    %593 = vmatprep.mubr.f32.mxu0 0.0
    %594 = vmatmul.mubr.f32.gmra.mrb[0].mxu0 %v353
    %v595 = vpop.f32.mrb[0].mxu0
    %v596 = vadd.f32 0.0, %v595
    %v597 = vpop.f32.mrb[0].mxu0
    %v598 = vadd.f32 0.0, %v597
    %599 = vmatprep.mubr.f32.mxu0 0.0
    %600 = vmatmul.mubr.f32.gmra.mrb[0].mxu0 %v356
    %v601 = vpop.f32.mrb[0].mxu0
    %v602 = vadd.f32 0.0, %v601
    %v603 = vpop.f32.mrb[0].mxu0
    %v604 = vadd.f32 0.0, %v603
    %605 = vmatprep.mubr.f32.mxu0 0.0
    %606 = vmatmul.mubr.f32.gmra.mrb[0].mxu0 %v359
    %v607 = vpop.f32.mrb[0].mxu0
    %v608 = vadd.f32 0.0, %v607
    %v609 = vpop.f32.mrb[0].mxu0
    %v610 = vadd.f32 0.0, %v609
    %611 = vmatprep.mubr.f32.mxu0 0.0
    %612 = vmatmul.mubr.f32.gmra.mrb[0].mxu0 %v362
    %v613 = vpop.f32.mrb[0].mxu0
    %v614 = vadd.f32 0.0, %v613
    %v615 = vpop.f32.mrb[0].mxu0
    %v616 = vadd.f32 0.0, %v615
    %617 = vmatprep.mubr.f32.mxu0 0.0
    %618 = vmatmul.mubr.f32.gmra.mrb[0].mxu0 %v365
    %v619 = vpop.f32.mrb[0].mxu0
    %v620 = vadd.f32 0.0, %v619
    %v621 = vpop.f32.mrb[0].mxu0
    %v622 = vadd.f32 0.0, %v621
    %623 = vmatprep.mubr.f32.mxu0 0.0
    %624 = vmatmul.mubr.f32.gmra.mrb[0].mxu0 %v368
    %v625 = vpop.f32.mrb[0].mxu0
    %v626 = vadd.f32 0.0, %v625
    %v627 = vpop.f32.mrb[0].mxu0
    %v628 = vadd.f32 0.0, %v627
    %629 = vmatprep.mubr.f32.mxu0 0.0
    %630 = vmatmul.mubr.f32.gmra.mrb[0].mxu0 %v371
    %v631 = vpop.f32.mrb[0].mxu0
    %v632 = vadd.f32 0.0, %v631
    %v633 = vpop.f32.mrb[0].mxu0
    %v634 = vadd.f32 0.0, %v633
    %635 = vmatprep.mubr.f32.mxu0 0.0
    %636 = vmatmul.mubr.f32.gmra.mrb[0].mxu0 %v374
    %v637 = vpop.f32.mrb[0].mxu0
    %v638 = vadd.f32 0.0, %v637
    %v639 = vpop.f32.mrb[0].mxu0
    %v640 = vadd.f32 0.0, %v639
    %641 = vmatprep.mubr.f32.mxu0 0.0
    %642 = vmatmul.mubr.f32.gmra.mrb[0].mxu0 %v377
    %v643 = vpop.f32.mrb[0].mxu0
    %v644 = vadd.f32 0.0, %v643
    %v645 = vpop.f32.mrb[0].mxu0
    %v646 = vadd.f32 0.0, %v645
    %647 = vmatprep.mubr.f32.mxu0 0.0
    %648 = vmatmul.mubr.f32.gmra.mrb[0].mxu0 %v380
    %v649 = vpop.f32.mrb[0].mxu0
    %v650 = vadd.f32 0.0, %v649
    %v651 = vpop.f32.mrb[0].mxu0
    %v652 = vadd.f32 0.0, %v651
    %653 = vmatprep.mubr.f32.mxu0 0.0
    %654 = vmatmul.mubr.f32.gmra.mrb[0].mxu0 %v383
    %v655 = vpop.f32.mrb[0].mxu0
    %v656 = vadd.f32 0.0, %v655
    %v657 = vpop.f32.mrb[0].mxu0
    %v658 = vadd.f32 0.0, %v657
    %659 = vmatprep.mubr.f32.mxu0 0.0
    %660 = vmatmul.mubr.f32.gmra.mrb[0].mxu0 %v386
    %v661 = vpop.f32.mrb[0].mxu0
    %v662 = vadd.f32 0.0, %v661
    %v663 = vpop.f32.mrb[0].mxu0
    %v664 = vadd.f32 0.0, %v663
    %665 = vmatprep.mubr.f32.mxu0 0.0
    %666 = vmatmul.mubr.f32.gmra.mrb[0].mxu0 %v389
    %v667 = vpop.f32.mrb[0].mxu0
    %v668 = vadd.f32 0.0, %v667
    %v669 = vpop.f32.mrb[0].mxu0
    %v670 = vadd.f32 0.0, %v669
    %671 = vdwg.mxu0
    %v672 = vadd.f32 %v458, %v460
    %673 = vadd.xlane.f32.xlu0 %v672
    %v674 = vpop.xlane.xlu0 %673
    %v675 = vadd.f32 %v464, %v466
    %676 = vadd.xlane.f32.xlu0 %v675
    %v677 = vpop.xlane.xlu0 %676
    %v678 = vadd.f32 %v470, %v472
    %679 = vadd.xlane.f32.xlu0 %v678
    %v680 = vpop.xlane.xlu0 %679
    %v681 = vadd.f32 %v476, %v478
    %682 = vadd.xlane.f32.xlu0 %v681
    %v683 = vpop.xlane.xlu0 %682
    %v684 = vadd.f32 %v482, %v484
    %685 = vadd.xlane.f32.xlu0 %v684
    %v686 = vpop.xlane.xlu0 %685
    %v687 = vadd.f32 %v488, %v490
    %688 = vadd.xlane.f32.xlu0 %v687
    %v689 = vpop.xlane.xlu0 %688
    %v690 = vadd.f32 %v494, %v496
    %691 = vadd.xlane.f32.xlu0 %v690
    %v692 = vpop.xlane.xlu0 %691
    %v693 = vadd.f32 %v500, %v502
    %694 = vadd.xlane.f32.xlu0 %v693
    %v695 = vpop.xlane.xlu0 %694
    %v696 = vadd.f32 %v506, %v508
    %697 = vadd.xlane.f32.xlu0 %v696
    %v698 = vpop.xlane.xlu0 %697
    %v699 = vadd.f32 %v512, %v514
    %700 = vadd.xlane.f32.xlu0 %v699
    %v701 = vpop.xlane.xlu0 %700
    %v702 = vadd.f32 %v518, %v520
    %703 = vadd.xlane.f32.xlu0 %v702
    %v704 = vpop.xlane.xlu0 %703
    %v705 = vadd.f32 %v524, %v526
    %706 = vadd.xlane.f32.xlu0 %v705
    %v707 = vpop.xlane.xlu0 %706
    %v708 = vadd.f32 %v530, %v532
    %709 = vadd.xlane.f32.xlu0 %v708
    %v710 = vpop.xlane.xlu0 %709
    %v711 = vadd.f32 %v536, %v538
    %712 = vadd.xlane.f32.xlu0 %v711
    %v713 = vpop.xlane.xlu0 %712
    %v714 = vadd.f32 %v542, %v544
    %715 = vadd.xlane.f32.xlu0 %v714
    %v716 = vpop.xlane.xlu0 %715
    %v717 = vadd.f32 %v548, %v550
    %718 = vadd.xlane.f32.xlu0 %v717
    %v719 = vpop.xlane.xlu0 %718
    %v720 = vrcp.pop 256.0
    %v721 = vmul.f32 %v674, %v720
    %v722 = vmul.f32 %v677, %v720
    %v723 = vmul.f32 %v680, %v720
    %v724 = vmul.f32 %v683, %v720
    %v725 = vmul.f32 %v686, %v720
    %v726 = vmul.f32 %v689, %v720
    %v727 = vmul.f32 %v692, %v720
    %v728 = vmul.f32 %v695, %v720
    %v729 = vmul.f32 %v698, %v720
    %v730 = vmul.f32 %v701, %v720
    %v731 = vmul.f32 %v704, %v720
    %v732 = vmul.f32 %v707, %v720
    %v733 = vmul.f32 %v710, %v720
    %v734 = vmul.f32 %v713, %v720
    %v735 = vmul.f32 %v716, %v720
    %v736 = vmul.f32 %v719, %v720
    %v737 = vadd.f32 %v721, %v262
    %v738 = vadd.f32 %v722, %v263
    %v739 = vadd.f32 %v723, %v264
    %v740 = vadd.f32 %v724, %v265
    %v741 = vadd.f32 %v725, %v266
    %v742 = vadd.f32 %v726, %v267
    %v743 = vadd.f32 %v727, %v268
    %v744 = vadd.f32 %v728, %v269
    %v745 = vadd.f32 %v729, %v270
    %v746 = vadd.f32 %v730, %v271
    %v747 = vadd.f32 %v731, %v272
    %v748 = vadd.f32 %v732, %v273
    %v749 = vadd.f32 %v733, %v274
    %v750 = vadd.f32 %v734, %v275
    %v751 = vadd.f32 %v735, %v276
    %v752 = vadd.f32 %v736, %v277
    %v753 = vxor.u32 %v737, 2147483648
    %v754 = vxor.u32 %v738, 2147483648
    %v755 = vxor.u32 %v739, 2147483648
    %v756 = vxor.u32 %v740, 2147483648
    %v757 = vxor.u32 %v741, 2147483648
    %v758 = vxor.u32 %v742, 2147483648
    %v759 = vxor.u32 %v743, 2147483648
    %v760 = vxor.u32 %v744, 2147483648
    %v761 = vxor.u32 %v745, 2147483648
    %v762 = vxor.u32 %v746, 2147483648
    %v763 = vxor.u32 %v747, 2147483648
    %v764 = vxor.u32 %v748, 2147483648
    %v765 = vxor.u32 %v749, 2147483648
    %v766 = vxor.u32 %v750, 2147483648
    %v767 = vxor.u32 %v751, 2147483648
    %v768 = vxor.u32 %v752, 2147483648
    %v769 = vmul.f32 %v753, 1.442695
    %v770 = vpow.pop %v769
    %v771 = vmul.f32 %v754, 1.442695
    %v772 = vpow.pop %v771
    %v773 = vmul.f32 %v755, 1.442695
    %v774 = vpow.pop %v773
    %v775 = vmul.f32 %v756, 1.442695
    %v776 = vpow.pop %v775
    %v777 = vmul.f32 %v757, 1.442695
    %v778 = vpow.pop %v777
    %v779 = vmul.f32 %v758, 1.442695
    %v780 = vpow.pop %v779
    %v781 = vmul.f32 %v759, 1.442695
    %v782 = vpow.pop %v781
    %v783 = vmul.f32 %v760, 1.442695
    %v784 = vpow.pop %v783
    %v785 = vmul.f32 %v761, 1.442695
    %v786 = vpow.pop %v785
    %v787 = vmul.f32 %v762, 1.442695
    %v788 = vpow.pop %v787
    %v789 = vmul.f32 %v763, 1.442695
    %v790 = vpow.pop %v789
    %v791 = vmul.f32 %v764, 1.442695
    %v792 = vpow.pop %v791
    %v793 = vmul.f32 %v765, 1.442695
    %v794 = vpow.pop %v793
    %v795 = vmul.f32 %v766, 1.442695
    %v796 = vpow.pop %v795
    %v797 = vmul.f32 %v767, 1.442695
    %v798 = vpow.pop %v797
    %v799 = vmul.f32 %v768, 1.442695
    %v800 = vpow.pop %v799
    %v801 = vadd.f32 %v770, 1.0
    %v802 = vadd.f32 %v772, 1.0
    %v803 = vadd.f32 %v774, 1.0
    %v804 = vadd.f32 %v776, 1.0
    %v805 = vadd.f32 %v778, 1.0
    %v806 = vadd.f32 %v780, 1.0
    %v807 = vadd.f32 %v782, 1.0
    %v808 = vadd.f32 %v784, 1.0
    %v809 = vadd.f32 %v786, 1.0
    %v810 = vadd.f32 %v788, 1.0
    %v811 = vadd.f32 %v790, 1.0
    %v812 = vadd.f32 %v792, 1.0
    %v813 = vadd.f32 %v794, 1.0
    %v814 = vadd.f32 %v796, 1.0
    %v815 = vadd.f32 %v798, 1.0
    %v816 = vadd.f32 %v800, 1.0
    %v817 = vrcp.pop %v801
    %v818 = vmul.f32 1.0, %v817
    %v819 = vrcp.pop %v802
    %v820 = vmul.f32 1.0, %v819
    %v821 = vrcp.pop %v803
    %v822 = vmul.f32 1.0, %v821
    %v823 = vrcp.pop %v804
    %v824 = vmul.f32 1.0, %v823
    %v825 = vrcp.pop %v805
    %v826 = vmul.f32 1.0, %v825
    %v827 = vrcp.pop %v806
    %v828 = vmul.f32 1.0, %v827
    %v829 = vrcp.pop %v807
    %v830 = vmul.f32 1.0, %v829
    %v831 = vrcp.pop %v808
    %v832 = vmul.f32 1.0, %v831
    %v833 = vrcp.pop %v809
    %v834 = vmul.f32 1.0, %v833
    %v835 = vrcp.pop %v810
    %v836 = vmul.f32 1.0, %v835
    %v837 = vrcp.pop %v811
    %v838 = vmul.f32 1.0, %v837
    %v839 = vrcp.pop %v812
    %v840 = vmul.f32 1.0, %v839
    %v841 = vrcp.pop %v813
    %v842 = vmul.f32 1.0, %v841
    %v843 = vrcp.pop %v814
    %v844 = vmul.f32 1.0, %v843
    %v845 = vrcp.pop %v815
    %v846 = vmul.f32 1.0, %v845
    %v847 = vrcp.pop %v816
    %v848 = vmul.f32 1.0, %v847
    %850 = vset.pattern.permute.xlu0 0
    %851 = vperm.xlu0 %850, %v818
    %v852 = vpop.permute.xlu0 %851
    %855 = vset.pattern.permute.xlu0 0
    %856 = vperm.xlu0 %855, %v820
    %v857 = vpop.permute.xlu0 %856
    %860 = vset.pattern.permute.xlu0 0
    %861 = vperm.xlu0 %860, %v822
    %v862 = vpop.permute.xlu0 %861
    %865 = vset.pattern.permute.xlu0 0
    %866 = vperm.xlu0 %865, %v824
    %v867 = vpop.permute.xlu0 %866
    %870 = vset.pattern.permute.xlu0 0
    %871 = vperm.xlu0 %870, %v826
    %v872 = vpop.permute.xlu0 %871
    %875 = vset.pattern.permute.xlu0 0
    %876 = vperm.xlu0 %875, %v828
    %v877 = vpop.permute.xlu0 %876
    %880 = vset.pattern.permute.xlu0 0
    %881 = vperm.xlu0 %880, %v830
    %v882 = vpop.permute.xlu0 %881
    %885 = vset.pattern.permute.xlu0 0
    %886 = vperm.xlu0 %885, %v832
    %v887 = vpop.permute.xlu0 %886
    %890 = vset.pattern.permute.xlu0 0
    %891 = vperm.xlu0 %890, %v834
    %v892 = vpop.permute.xlu0 %891
    %895 = vset.pattern.permute.xlu0 0
    %896 = vperm.xlu0 %895, %v836
    %v897 = vpop.permute.xlu0 %896
    %900 = vset.pattern.permute.xlu0 0
    %901 = vperm.xlu0 %900, %v838
    %v902 = vpop.permute.xlu0 %901
    %905 = vset.pattern.permute.xlu0 0
    %906 = vperm.xlu0 %905, %v840
    %v907 = vpop.permute.xlu0 %906
    %910 = vset.pattern.permute.xlu0 0
    %911 = vperm.xlu0 %910, %v842
    %v912 = vpop.permute.xlu0 %911
    %915 = vset.pattern.permute.xlu0 0
    %916 = vperm.xlu0 %915, %v844
    %v917 = vpop.permute.xlu0 %916
    %920 = vset.pattern.permute.xlu0 0
    %921 = vperm.xlu0 %920, %v846
    %v922 = vpop.permute.xlu0 %921
    %925 = vset.pattern.permute.xlu0 0
    %926 = vperm.xlu0 %925, %v848
    %v927 = vpop.permute.xlu0 %926
    %v929 = vmul.f32 %v852, %v554
    %v930 = vmul.f32 %v852, %v556
    %v931 = vmul.f32 %v857, %v560
    %v932 = vmul.f32 %v857, %v562
    %v933 = vmul.f32 %v862, %v566
    %v934 = vmul.f32 %v862, %v568
    %v935 = vmul.f32 %v867, %v572
    %v936 = vmul.f32 %v867, %v574
    %v937 = vmul.f32 %v872, %v578
    %v938 = vmul.f32 %v872, %v580
    %v939 = vmul.f32 %v877, %v584
    %v940 = vmul.f32 %v877, %v586
    %v941 = vmul.f32 %v882, %v590
    %v942 = vmul.f32 %v882, %v592
    %v943 = vmul.f32 %v887, %v596
    %v944 = vmul.f32 %v887, %v598
    %v945 = vmul.f32 %v892, %v602
    %v946 = vmul.f32 %v892, %v604
    %v947 = vmul.f32 %v897, %v608
    %v948 = vmul.f32 %v897, %v610
    %v949 = vmul.f32 %v902, %v614
    %v950 = vmul.f32 %v902, %v616
    %v951 = vmul.f32 %v907, %v620
    %v952 = vmul.f32 %v907, %v622
    %v953 = vmul.f32 %v912, %v626
    %v954 = vmul.f32 %v912, %v628
    %v955 = vmul.f32 %v917, %v632
    %v956 = vmul.f32 %v917, %v634
    %v957 = vmul.f32 %v922, %v638
    %v958 = vmul.f32 %v922, %v640
    %v959 = vmul.f32 %v927, %v644
    %v960 = vmul.f32 %v927, %v646
    %961 = vmatprep.subr.mxu0 %v930
    %962 = vmatpush1.msra.mxu0 %v929
    %963 = vmatprep.subr.mxu0 %v932
    %964 = vmatpush1.msra.mxu0 %v931
    %965 = vmatprep.subr.mxu0 %v934
    %966 = vmatpush1.msra.mxu0 %v933
    %967 = vmatprep.subr.mxu0 %v936
    %968 = vmatpush1.msra.mxu0 %v935
    %969 = vmatprep.subr.mxu0 %v938
    %970 = vmatpush1.msra.mxu0 %v937
    %971 = vmatprep.subr.mxu0 %v940
    %972 = vmatpush1.msra.mxu0 %v939
    %973 = vmatprep.subr.mxu0 %v942
    %974 = vmatpush1.msra.mxu0 %v941
    %975 = vmatprep.subr.mxu0 %v944
    %976 = vmatpush1.msra.mxu0 %v943
    %977 = vmatprep.subr.mxu0 %v946
    %978 = vmatpush1.msra.mxu0 %v945
    %979 = vmatprep.subr.mxu0 %v948
    %980 = vmatpush1.msra.mxu0 %v947
    %981 = vmatprep.subr.mxu0 %v950
    %982 = vmatpush1.msra.mxu0 %v949
    %983 = vmatprep.subr.mxu0 %v952
    %984 = vmatpush1.msra.mxu0 %v951
    %985 = vmatprep.subr.mxu0 %v954
    %986 = vmatpush1.msra.mxu0 %v953
    %987 = vmatprep.subr.mxu0 %v956
    %988 = vmatpush1.msra.mxu0 %v955
    %989 = vmatprep.subr.mxu0 %v958
    %990 = vmatpush1.msra.mxu0 %v957
    %991 = vmatprep.subr.mxu0 %v960
    %992 = vmatpush1.msra.mxu0 %v959
    %993 = vmatprep.subr.mxu0 0.0
    %994 = vmatpush1.msra.mxu0 0.0
    %995 = vmatprep.subr.mxu0 0.0
    %996 = vmatpush1.msra.mxu0 0.0
    %997 = vmatprep.subr.mxu0 0.0
    %998 = vmatpush1.msra.mxu0 0.0
    %999 = vmatprep.subr.mxu0 0.0
    %1000 = vmatpush1.msra.mxu0 0.0
    %1001 = vmatprep.subr.mxu0 0.0
    %1002 = vmatpush1.msra.mxu0 0.0
    %1003 = vmatprep.subr.mxu0 0.0
    %1004 = vmatpush1.msra.mxu0 0.0
    %1005 = vmatprep.subr.mxu0 0.0
    %1006 = vmatpush1.msra.mxu0 0.0
    %1007 = vmatprep.subr.mxu0 0.0
    %1008 = vmatpush1.msra.mxu0 0.0
    %1009 = vmatprep.subr.mxu0 0.0
    %1010 = vmatpush1.msra.mxu0 0.0
    %1011 = vmatprep.subr.mxu0 0.0
    %1012 = vmatpush1.msra.mxu0 0.0
    %1013 = vmatprep.subr.mxu0 0.0
    %1014 = vmatpush1.msra.mxu0 0.0
    %1015 = vmatprep.subr.mxu0 0.0
    %1016 = vmatpush1.msra.mxu0 0.0
    %1017 = vmatprep.subr.mxu0 0.0
    %1018 = vmatpush1.msra.mxu0 0.0
    %1019 = vmatprep.subr.mxu0 0.0
    %1020 = vmatpush1.msra.mxu0 0.0
    %1021 = vmatprep.subr.mxu0 0.0
    %1022 = vmatpush1.msra.mxu0 0.0
    %1023 = vmatprep.subr.mxu0 0.0
    %1024 = vmatpush1.msra.mxu0 0.0
    %1025 = vmatprep.mubr.f32.mxu0 0.0
    %1026 = vmatmul.mubr.f32.gmra.mrb[0].mxu0 %v278
    %v1027 = vpop.f32.mrb[0].mxu0
    %v1028 = vadd.f32 %v650, %v1027
    %v1029 = vpop.f32.mrb[0].mxu0
    %v1030 = vadd.f32 %v652, %v1029
    %1031 = vmatprep.mubr.f32.mxu0 0.0
    %1032 = vmatmul.mubr.f32.gmra.mrb[0].mxu0 %v279
    %v1033 = vpop.f32.mrb[0].mxu0
    %v1034 = vadd.f32 %v656, %v1033
    %v1035 = vpop.f32.mrb[0].mxu0
    %v1036 = vadd.f32 %v658, %v1035
    %1037 = vmatprep.mubr.f32.mxu0 0.0
    %1038 = vmatmul.mubr.f32.gmra.mrb[0].mxu0 %v280
    %v1039 = vpop.f32.mrb[0].mxu0
    %v1040 = vadd.f32 %v662, %v1039
    %v1041 = vpop.f32.mrb[0].mxu0
    %v1042 = vadd.f32 %v664, %v1041
    %1043 = vmatprep.mubr.f32.mxu0 0.0
    %1044 = vmatmul.mubr.f32.gmra.mrb[0].mxu0 %v281
    %v1045 = vpop.f32.mrb[0].mxu0
    %v1046 = vadd.f32 %v668, %v1045
    %v1047 = vpop.f32.mrb[0].mxu0
    %v1048 = vadd.f32 %v670, %v1047
    %1049 = vdwg.mxu0
    %v1050 = vlaneseq
    %v1051 = vshrl.u32 %v1050, 7
    %v1052 = vsub.s32 0, %v1051
    %v1053 = vrot.slane %v219, %v1052
    %v1054 = vlaneseq
    %v1055 = vshrl.u32 %v1054, 7
    %v1056 = vsub.s32 0, %v1055
    %v1057 = vrot.slane %v220, %v1056
    %v1058 = vmul.f32 %v1053, %v1028
    %v1059 = vmul.f32 %v1057, %v1030
    %v1060 = vmul.f32 %v1053, %v1034
    %v1061 = vmul.f32 %v1057, %v1036
    %v1062 = vsub.f32 1.0, %v219
    %v1063 = vsub.f32 1.0, %v220
    %v1064 = vlaneseq
    %v1065 = vshrl.u32 %v1064, 7
    %v1066 = vsub.s32 0, %v1065
    %v1067 = vrot.slane %v1062, %v1066
    %v1068 = vlaneseq
    %v1069 = vshrl.u32 %v1068, 7
    %v1070 = vsub.s32 0, %v1069
    %v1071 = vrot.slane %v1063, %v1070
    %v1072 = vmul.f32 %v1067, %v1040
    %v1073 = vmul.f32 %v1071, %v1042
    %v1074 = vmul.f32 %v1067, %v1046
    %v1075 = vmul.f32 %v1071, %v1048
    %v1076 = vadd.f32 %v1058, %v1072
    %v1077 = vadd.f32 %v1059, %v1073
    %v1078 = vadd.f32 %v1060, %v1074
    %v1079 = vadd.f32 %v1061, %v1075
    %1080 = vmatprep.subr.mxu0 %v225
    %1081 = vmatpush1.msra.mxu0 %v224
    %1082 = vmatprep.subr.mxu0 0.0
    %1083 = vmatpush1.msra.mxu0 0.0
    %1084 = vmatprep.subr.mxu0 0.0
    %1085 = vmatpush1.msra.mxu0 0.0
    %1086 = vmatprep.subr.mxu0 0.0
    %1087 = vmatpush1.msra.mxu0 0.0
    %1088 = vmatprep.subr.mxu0 0.0
    %1089 = vmatpush1.msra.mxu0 0.0
    %1090 = vmatprep.subr.mxu0 0.0
    %1091 = vmatpush1.msra.mxu0 0.0
    %1092 = vmatprep.subr.mxu0 0.0
    %1093 = vmatpush1.msra.mxu0 0.0
    %1094 = vmatprep.subr.mxu0 0.0
    %1095 = vmatpush1.msra.mxu0 0.0
    %1096 = vmatprep.subr.mxu0 0.0
    %1097 = vmatpush1.msra.mxu0 0.0
    %1098 = vmatprep.subr.mxu0 0.0
    %1099 = vmatpush1.msra.mxu0 0.0
    %1100 = vmatprep.subr.mxu0 0.0
    %1101 = vmatpush1.msra.mxu0 0.0
    %1102 = vmatprep.subr.mxu0 0.0
    %1103 = vmatpush1.msra.mxu0 0.0
    %1104 = vmatprep.subr.mxu0 0.0
    %1105 = vmatpush1.msra.mxu0 0.0
    %1106 = vmatprep.subr.mxu0 0.0
    %1107 = vmatpush1.msra.mxu0 0.0
    %1108 = vmatprep.subr.mxu0 0.0
    %1109 = vmatpush1.msra.mxu0 0.0
    %1110 = vmatprep.subr.mxu0 0.0
    %1111 = vmatpush1.msra.mxu0 0.0
    %1112 = vmatprep.subr.mxu0 0.0
    %1113 = vmatpush1.msra.mxu0 0.0
    %1114 = vmatprep.subr.mxu0 0.0
    %1115 = vmatpush1.msra.mxu0 0.0
    %1116 = vmatprep.subr.mxu0 0.0
    %1117 = vmatpush1.msra.mxu0 0.0
    %1118 = vmatprep.subr.mxu0 0.0
    %1119 = vmatpush1.msra.mxu0 0.0
    %1120 = vmatprep.subr.mxu0 0.0
    %1121 = vmatpush1.msra.mxu0 0.0
    %1122 = vmatprep.subr.mxu0 0.0
    %1123 = vmatpush1.msra.mxu0 0.0
    %1124 = vmatprep.subr.mxu0 0.0
    %1125 = vmatpush1.msra.mxu0 0.0
    %1126 = vmatprep.subr.mxu0 0.0
    %1127 = vmatpush1.msra.mxu0 0.0
    %1128 = vmatprep.subr.mxu0 0.0
    %1129 = vmatpush1.msra.mxu0 0.0
    %1130 = vmatprep.subr.mxu0 0.0
    %1131 = vmatpush1.msra.mxu0 0.0
    %1132 = vmatprep.subr.mxu0 0.0
    %1133 = vmatpush1.msra.mxu0 0.0
    %1134 = vmatprep.subr.mxu0 0.0
    %1135 = vmatpush1.msra.mxu0 0.0
    %1136 = vmatprep.subr.mxu0 0.0
    %1137 = vmatpush1.msra.mxu0 0.0
    %1138 = vmatprep.subr.mxu0 0.0
    %1139 = vmatpush1.msra.mxu0 0.0
    %1140 = vmatprep.subr.mxu0 0.0
    %1141 = vmatpush1.msra.mxu0 0.0
    %1142 = vmatprep.subr.mxu0 0.0
    %1143 = vmatpush1.msra.mxu0 0.0
    %1144 = vmatprep.mubr.f32.mxu0 0.0
    %1145 = vmatmul.mubr.f32.gmra.mrb[0].mxu0 %v284
    %v1146 = vpop.f32.mrb[0].mxu0
    %v1147 = vadd.f32 0.0, %v1146
    %v1148 = vpop.f32.mrb[0].mxu0
    %v1149 = vadd.f32 0.0, %v1148
    %1150 = vmatprep.mubr.f32.mxu0 0.0
    %1151 = vmatmul.mubr.f32.gmra.mrb[0].mxu0 %v287
    %v1152 = vpop.f32.mrb[0].mxu0
    %v1153 = vadd.f32 0.0, %v1152
    %v1154 = vpop.f32.mrb[0].mxu0
    %v1155 = vadd.f32 0.0, %v1154
    %1156 = vmatprep.mubr.f32.mxu0 0.0
    %1157 = vmatmul.mubr.f32.gmra.mrb[0].mxu0 %v290
    %v1158 = vpop.f32.mrb[0].mxu0
    %v1159 = vadd.f32 0.0, %v1158
    %v1160 = vpop.f32.mrb[0].mxu0
    %v1161 = vadd.f32 0.0, %v1160
    %1162 = vmatprep.mubr.f32.mxu0 0.0
    %1163 = vmatmul.mubr.f32.gmra.mrb[0].mxu0 %v293
    %v1164 = vpop.f32.mrb[0].mxu0
    %v1165 = vadd.f32 0.0, %v1164
    %v1166 = vpop.f32.mrb[0].mxu0
    %v1167 = vadd.f32 0.0, %v1166
    %1168 = vmatprep.mubr.f32.mxu0 0.0
    %1169 = vmatmul.mubr.f32.gmra.mrb[0].mxu0 %v296
    %v1170 = vpop.f32.mrb[0].mxu0
    %v1171 = vadd.f32 0.0, %v1170
    %v1172 = vpop.f32.mrb[0].mxu0
    %v1173 = vadd.f32 0.0, %v1172
    %1174 = vmatprep.mubr.f32.mxu0 0.0
    %1175 = vmatmul.mubr.f32.gmra.mrb[0].mxu0 %v299
    %v1176 = vpop.f32.mrb[0].mxu0
    %v1177 = vadd.f32 0.0, %v1176
    %v1178 = vpop.f32.mrb[0].mxu0
    %v1179 = vadd.f32 0.0, %v1178
    %1180 = vmatprep.mubr.f32.mxu0 0.0
    %1181 = vmatmul.mubr.f32.gmra.mrb[0].mxu0 %v302
    %v1182 = vpop.f32.mrb[0].mxu0
    %v1183 = vadd.f32 0.0, %v1182
    %v1184 = vpop.f32.mrb[0].mxu0
    %v1185 = vadd.f32 0.0, %v1184
    %1186 = vmatprep.mubr.f32.mxu0 0.0
    %1187 = vmatmul.mubr.f32.gmra.mrb[0].mxu0 %v305
    %v1188 = vpop.f32.mrb[0].mxu0
    %v1189 = vadd.f32 0.0, %v1188
    %v1190 = vpop.f32.mrb[0].mxu0
    %v1191 = vadd.f32 0.0, %v1190
    %1192 = vmatprep.mubr.f32.mxu0 0.0
    %1193 = vmatmul.mubr.f32.gmra.mrb[0].mxu0 %v308
    %v1194 = vpop.f32.mrb[0].mxu0
    %v1195 = vadd.f32 0.0, %v1194
    %v1196 = vpop.f32.mrb[0].mxu0
    %v1197 = vadd.f32 0.0, %v1196
    %1198 = vmatprep.mubr.f32.mxu0 0.0
    %1199 = vmatmul.mubr.f32.gmra.mrb[0].mxu0 %v311
    %v1200 = vpop.f32.mrb[0].mxu0
    %v1201 = vadd.f32 0.0, %v1200
    %v1202 = vpop.f32.mrb[0].mxu0
    %v1203 = vadd.f32 0.0, %v1202
    %1204 = vmatprep.mubr.f32.mxu0 0.0
    %1205 = vmatmul.mubr.f32.gmra.mrb[0].mxu0 %v314
    %v1206 = vpop.f32.mrb[0].mxu0
    %v1207 = vadd.f32 0.0, %v1206
    %v1208 = vpop.f32.mrb[0].mxu0
    %v1209 = vadd.f32 0.0, %v1208
    %1210 = vmatprep.mubr.f32.mxu0 0.0
    %1211 = vmatmul.mubr.f32.gmra.mrb[0].mxu0 %v317
    %v1212 = vpop.f32.mrb[0].mxu0
    %v1213 = vadd.f32 0.0, %v1212
    %v1214 = vpop.f32.mrb[0].mxu0
    %v1215 = vadd.f32 0.0, %v1214
    %1216 = vmatprep.mubr.f32.mxu0 0.0
    %1217 = vmatmul.mubr.f32.gmra.mrb[0].mxu0 %v320
    %v1218 = vpop.f32.mrb[0].mxu0
    %v1219 = vadd.f32 0.0, %v1218
    %v1220 = vpop.f32.mrb[0].mxu0
    %v1221 = vadd.f32 0.0, %v1220
    %1222 = vmatprep.mubr.f32.mxu0 0.0
    %1223 = vmatmul.mubr.f32.gmra.mrb[0].mxu0 %v323
    %v1224 = vpop.f32.mrb[0].mxu0
    %v1225 = vadd.f32 0.0, %v1224
    %v1226 = vpop.f32.mrb[0].mxu0
    %v1227 = vadd.f32 0.0, %v1226
    %1228 = vmatprep.mubr.f32.mxu0 0.0
    %1229 = vmatmul.mubr.f32.gmra.mrb[0].mxu0 %v326
    %v1230 = vpop.f32.mrb[0].mxu0
    %v1231 = vadd.f32 0.0, %v1230
    %v1232 = vpop.f32.mrb[0].mxu0
    %v1233 = vadd.f32 0.0, %v1232
    %1234 = vmatprep.mubr.f32.mxu0 0.0
    %1235 = vmatmul.mubr.f32.gmra.mrb[0].mxu0 %v329
    %v1236 = vpop.f32.mrb[0].mxu0
    %v1237 = vadd.f32 0.0, %v1236
    %v1238 = vpop.f32.mrb[0].mxu0
    %v1239 = vadd.f32 0.0, %v1238
    %1240 = vmatprep.mubr.f32.mxu0 0.0
    %1241 = vmatmul.mubr.f32.gmra.mrb[0].mxu0 %v332
    %v1242 = vpop.f32.mrb[0].mxu0
    %v1243 = vadd.f32 0.0, %v1242
    %v1244 = vpop.f32.mrb[0].mxu0
    %v1245 = vadd.f32 0.0, %v1244
    %1246 = vmatprep.mubr.f32.mxu0 0.0
    %1247 = vmatmul.mubr.f32.gmra.mrb[0].mxu0 %v335
    %v1248 = vpop.f32.mrb[0].mxu0
    %v1249 = vadd.f32 0.0, %v1248
    %v1250 = vpop.f32.mrb[0].mxu0
    %v1251 = vadd.f32 0.0, %v1250
    %1252 = vmatprep.mubr.f32.mxu0 0.0
    %1253 = vmatmul.mubr.f32.gmra.mrb[0].mxu0 %v338
    %v1254 = vpop.f32.mrb[0].mxu0
    %v1255 = vadd.f32 0.0, %v1254
    %v1256 = vpop.f32.mrb[0].mxu0
    %v1257 = vadd.f32 0.0, %v1256
    %1258 = vmatprep.mubr.f32.mxu0 0.0
    %1259 = vmatmul.mubr.f32.gmra.mrb[0].mxu0 %v341
    %v1260 = vpop.f32.mrb[0].mxu0
    %v1261 = vadd.f32 0.0, %v1260
    %v1262 = vpop.f32.mrb[0].mxu0
    %v1263 = vadd.f32 0.0, %v1262
    %1264 = vmatprep.mubr.f32.mxu0 0.0
    %1265 = vmatmul.mubr.f32.gmra.mrb[0].mxu0 %v344
    %v1266 = vpop.f32.mrb[0].mxu0
    %v1267 = vadd.f32 0.0, %v1266
    %v1268 = vpop.f32.mrb[0].mxu0
    %v1269 = vadd.f32 0.0, %v1268
    %1270 = vmatprep.mubr.f32.mxu0 0.0
    %1271 = vmatmul.mubr.f32.gmra.mrb[0].mxu0 %v347
    %v1272 = vpop.f32.mrb[0].mxu0
    %v1273 = vadd.f32 0.0, %v1272
    %v1274 = vpop.f32.mrb[0].mxu0
    %v1275 = vadd.f32 0.0, %v1274
    %1276 = vmatprep.mubr.f32.mxu0 0.0
    %1277 = vmatmul.mubr.f32.gmra.mrb[0].mxu0 %v350
    %v1278 = vpop.f32.mrb[0].mxu0
    %v1279 = vadd.f32 0.0, %v1278
    %v1280 = vpop.f32.mrb[0].mxu0
    %v1281 = vadd.f32 0.0, %v1280
    %1282 = vmatprep.mubr.f32.mxu0 0.0
    %1283 = vmatmul.mubr.f32.gmra.mrb[0].mxu0 %v353
    %v1284 = vpop.f32.mrb[0].mxu0
    %v1285 = vadd.f32 0.0, %v1284
    %v1286 = vpop.f32.mrb[0].mxu0
    %v1287 = vadd.f32 0.0, %v1286
    %1288 = vmatprep.mubr.f32.mxu0 0.0
    %1289 = vmatmul.mubr.f32.gmra.mrb[0].mxu0 %v356
    %v1290 = vpop.f32.mrb[0].mxu0
    %v1291 = vadd.f32 0.0, %v1290
    %v1292 = vpop.f32.mrb[0].mxu0
    %v1293 = vadd.f32 0.0, %v1292
    %1294 = vmatprep.mubr.f32.mxu0 0.0
    %1295 = vmatmul.mubr.f32.gmra.mrb[0].mxu0 %v359
    %v1296 = vpop.f32.mrb[0].mxu0
    %v1297 = vadd.f32 0.0, %v1296
    %v1298 = vpop.f32.mrb[0].mxu0
    %v1299 = vadd.f32 0.0, %v1298
    %1300 = vmatprep.mubr.f32.mxu0 0.0
    %1301 = vmatmul.mubr.f32.gmra.mrb[0].mxu0 %v362
    %v1302 = vpop.f32.mrb[0].mxu0
    %v1303 = vadd.f32 0.0, %v1302
    %v1304 = vpop.f32.mrb[0].mxu0
    %v1305 = vadd.f32 0.0, %v1304
    %1306 = vmatprep.mubr.f32.mxu0 0.0
    %1307 = vmatmul.mubr.f32.gmra.mrb[0].mxu0 %v365
    %v1308 = vpop.f32.mrb[0].mxu0
    %v1309 = vadd.f32 0.0, %v1308
    %v1310 = vpop.f32.mrb[0].mxu0
    %v1311 = vadd.f32 0.0, %v1310
    %1312 = vmatprep.mubr.f32.mxu0 0.0
    %1313 = vmatmul.mubr.f32.gmra.mrb[0].mxu0 %v368
    %v1314 = vpop.f32.mrb[0].mxu0
    %v1315 = vadd.f32 0.0, %v1314
    %v1316 = vpop.f32.mrb[0].mxu0
    %v1317 = vadd.f32 0.0, %v1316
    %1318 = vmatprep.mubr.f32.mxu0 0.0
    %1319 = vmatmul.mubr.f32.gmra.mrb[0].mxu0 %v371
    %v1320 = vpop.f32.mrb[0].mxu0
    %v1321 = vadd.f32 0.0, %v1320
    %v1322 = vpop.f32.mrb[0].mxu0
    %v1323 = vadd.f32 0.0, %v1322
    %1324 = vmatprep.mubr.f32.mxu0 0.0
    %1325 = vmatmul.mubr.f32.gmra.mrb[0].mxu0 %v374
    %v1326 = vpop.f32.mrb[0].mxu0
    %v1327 = vadd.f32 0.0, %v1326
    %v1328 = vpop.f32.mrb[0].mxu0
    %v1329 = vadd.f32 0.0, %v1328
    %1330 = vmatprep.mubr.f32.mxu0 0.0
    %1331 = vmatmul.mubr.f32.gmra.mrb[0].mxu0 %v377
    %v1332 = vpop.f32.mrb[0].mxu0
    %v1333 = vadd.f32 0.0, %v1332
    %v1334 = vpop.f32.mrb[0].mxu0
    %v1335 = vadd.f32 0.0, %v1334
    %1336 = vmatprep.mubr.f32.mxu0 0.0
    %1337 = vmatmul.mubr.f32.gmra.mrb[0].mxu0 %v380
    %v1338 = vpop.f32.mrb[0].mxu0
    %v1339 = vadd.f32 0.0, %v1338
    %v1340 = vpop.f32.mrb[0].mxu0
    %v1341 = vadd.f32 0.0, %v1340
    %1342 = vmatprep.mubr.f32.mxu0 0.0
    %1343 = vmatmul.mubr.f32.gmra.mrb[0].mxu0 %v383
    %v1344 = vpop.f32.mrb[0].mxu0
    %v1345 = vadd.f32 0.0, %v1344
    %v1346 = vpop.f32.mrb[0].mxu0
    %v1347 = vadd.f32 0.0, %v1346
    %1348 = vmatprep.mubr.f32.mxu0 0.0
    %1349 = vmatmul.mubr.f32.gmra.mrb[0].mxu0 %v386
    %v1350 = vpop.f32.mrb[0].mxu0
    %v1351 = vadd.f32 0.0, %v1350
    %v1352 = vpop.f32.mrb[0].mxu0
    %v1353 = vadd.f32 0.0, %v1352
    %1354 = vmatprep.mubr.f32.mxu0 0.0
    %1355 = vmatmul.mubr.f32.gmra.mrb[0].mxu0 %v389
    %v1356 = vpop.f32.mrb[0].mxu0
    %v1357 = vadd.f32 0.0, %v1356
    %v1358 = vpop.f32.mrb[0].mxu0
    %v1359 = vadd.f32 0.0, %v1358
    %1360 = vdwg.mxu0
    %v1361 = vadd.f32 %v1147, %v1149
    %1362 = vadd.xlane.f32.xlu0 %v1361
    %v1363 = vpop.xlane.xlu0 %1362
    %v1364 = vadd.f32 %v1153, %v1155
    %1365 = vadd.xlane.f32.xlu0 %v1364
    %v1366 = vpop.xlane.xlu0 %1365
    %v1367 = vadd.f32 %v1159, %v1161
    %1368 = vadd.xlane.f32.xlu0 %v1367
    %v1369 = vpop.xlane.xlu0 %1368
    %v1370 = vadd.f32 %v1165, %v1167
    %1371 = vadd.xlane.f32.xlu0 %v1370
    %v1372 = vpop.xlane.xlu0 %1371
    %v1373 = vadd.f32 %v1171, %v1173
    %1374 = vadd.xlane.f32.xlu0 %v1373
    %v1375 = vpop.xlane.xlu0 %1374
    %v1376 = vadd.f32 %v1177, %v1179
    %1377 = vadd.xlane.f32.xlu0 %v1376
    %v1378 = vpop.xlane.xlu0 %1377
    %v1379 = vadd.f32 %v1183, %v1185
    %1380 = vadd.xlane.f32.xlu0 %v1379
    %v1381 = vpop.xlane.xlu0 %1380
    %v1382 = vadd.f32 %v1189, %v1191
    %1383 = vadd.xlane.f32.xlu0 %v1382
    %v1384 = vpop.xlane.xlu0 %1383
    %v1385 = vadd.f32 %v1195, %v1197
    %1386 = vadd.xlane.f32.xlu0 %v1385
    %v1387 = vpop.xlane.xlu0 %1386
    %v1388 = vadd.f32 %v1201, %v1203
    %1389 = vadd.xlane.f32.xlu0 %v1388
    %v1390 = vpop.xlane.xlu0 %1389
    %v1391 = vadd.f32 %v1207, %v1209
    %1392 = vadd.xlane.f32.xlu0 %v1391
    %v1393 = vpop.xlane.xlu0 %1392
    %v1394 = vadd.f32 %v1213, %v1215
    %1395 = vadd.xlane.f32.xlu0 %v1394
    %v1396 = vpop.xlane.xlu0 %1395
    %v1397 = vadd.f32 %v1219, %v1221
    %1398 = vadd.xlane.f32.xlu0 %v1397
    %v1399 = vpop.xlane.xlu0 %1398
    %v1400 = vadd.f32 %v1225, %v1227
    %1401 = vadd.xlane.f32.xlu0 %v1400
    %v1402 = vpop.xlane.xlu0 %1401
    %v1403 = vadd.f32 %v1231, %v1233
    %1404 = vadd.xlane.f32.xlu0 %v1403
    %v1405 = vpop.xlane.xlu0 %1404
    %v1406 = vadd.f32 %v1237, %v1239
    %1407 = vadd.xlane.f32.xlu0 %v1406
    %v1408 = vpop.xlane.xlu0 %1407
    %v1409 = vmul.f32 %v1363, %v720
    %v1410 = vmul.f32 %v1366, %v720
    %v1411 = vmul.f32 %v1369, %v720
    %v1412 = vmul.f32 %v1372, %v720
    %v1413 = vmul.f32 %v1375, %v720
    %v1414 = vmul.f32 %v1378, %v720
    %v1415 = vmul.f32 %v1381, %v720
    %v1416 = vmul.f32 %v1384, %v720
    %v1417 = vmul.f32 %v1387, %v720
    %v1418 = vmul.f32 %v1390, %v720
    %v1419 = vmul.f32 %v1393, %v720
    %v1420 = vmul.f32 %v1396, %v720
    %v1421 = vmul.f32 %v1399, %v720
    %v1422 = vmul.f32 %v1402, %v720
    %v1423 = vmul.f32 %v1405, %v720
    %v1424 = vmul.f32 %v1408, %v720
    %v1425 = vadd.f32 %v1409, %v262
    %v1426 = vadd.f32 %v1410, %v263
    %v1427 = vadd.f32 %v1411, %v264
    %v1428 = vadd.f32 %v1412, %v265
    %v1429 = vadd.f32 %v1413, %v266
    %v1430 = vadd.f32 %v1414, %v267
    %v1431 = vadd.f32 %v1415, %v268
    %v1432 = vadd.f32 %v1416, %v269
    %v1433 = vadd.f32 %v1417, %v270
    %v1434 = vadd.f32 %v1418, %v271
    %v1435 = vadd.f32 %v1419, %v272
    %v1436 = vadd.f32 %v1420, %v273
    %v1437 = vadd.f32 %v1421, %v274
    %v1438 = vadd.f32 %v1422, %v275
    %v1439 = vadd.f32 %v1423, %v276
    %v1440 = vadd.f32 %v1424, %v277
    %v1441 = vxor.u32 %v1425, 2147483648
    %v1442 = vxor.u32 %v1426, 2147483648
    %v1443 = vxor.u32 %v1427, 2147483648
    %v1444 = vxor.u32 %v1428, 2147483648
    %v1445 = vxor.u32 %v1429, 2147483648
    %v1446 = vxor.u32 %v1430, 2147483648
    %v1447 = vxor.u32 %v1431, 2147483648
    %v1448 = vxor.u32 %v1432, 2147483648
    %v1449 = vxor.u32 %v1433, 2147483648
    %v1450 = vxor.u32 %v1434, 2147483648
    %v1451 = vxor.u32 %v1435, 2147483648
    %v1452 = vxor.u32 %v1436, 2147483648
    %v1453 = vxor.u32 %v1437, 2147483648
    %v1454 = vxor.u32 %v1438, 2147483648
    %v1455 = vxor.u32 %v1439, 2147483648
    %v1456 = vxor.u32 %v1440, 2147483648
    %v1457 = vmul.f32 %v1441, 1.442695
    %v1458 = vpow.pop %v1457
    %v1459 = vmul.f32 %v1442, 1.442695
    %v1460 = vpow.pop %v1459
    %v1461 = vmul.f32 %v1443, 1.442695
    %v1462 = vpow.pop %v1461
    %v1463 = vmul.f32 %v1444, 1.442695
    %v1464 = vpow.pop %v1463
    %v1465 = vmul.f32 %v1445, 1.442695
    %v1466 = vpow.pop %v1465
    %v1467 = vmul.f32 %v1446, 1.442695
    %v1468 = vpow.pop %v1467
    %v1469 = vmul.f32 %v1447, 1.442695
    %v1470 = vpow.pop %v1469
    %v1471 = vmul.f32 %v1448, 1.442695
    %v1472 = vpow.pop %v1471
    %v1473 = vmul.f32 %v1449, 1.442695
    %v1474 = vpow.pop %v1473
    %v1475 = vmul.f32 %v1450, 1.442695
    %v1476 = vpow.pop %v1475
    %v1477 = vmul.f32 %v1451, 1.442695
    %v1478 = vpow.pop %v1477
    %v1479 = vmul.f32 %v1452, 1.442695
    %v1480 = vpow.pop %v1479
    %v1481 = vmul.f32 %v1453, 1.442695
    %v1482 = vpow.pop %v1481
    %v1483 = vmul.f32 %v1454, 1.442695
    %v1484 = vpow.pop %v1483
    %v1485 = vmul.f32 %v1455, 1.442695
    %v1486 = vpow.pop %v1485
    %v1487 = vmul.f32 %v1456, 1.442695
    %v1488 = vpow.pop %v1487
    %v1489 = vadd.f32 %v1458, 1.0
    %v1490 = vadd.f32 %v1460, 1.0
    %v1491 = vadd.f32 %v1462, 1.0
    %v1492 = vadd.f32 %v1464, 1.0
    %v1493 = vadd.f32 %v1466, 1.0
    %v1494 = vadd.f32 %v1468, 1.0
    %v1495 = vadd.f32 %v1470, 1.0
    %v1496 = vadd.f32 %v1472, 1.0
    %v1497 = vadd.f32 %v1474, 1.0
    %v1498 = vadd.f32 %v1476, 1.0
    %v1499 = vadd.f32 %v1478, 1.0
    %v1500 = vadd.f32 %v1480, 1.0
    %v1501 = vadd.f32 %v1482, 1.0
    %v1502 = vadd.f32 %v1484, 1.0
    %v1503 = vadd.f32 %v1486, 1.0
    %v1504 = vadd.f32 %v1488, 1.0
    %v1505 = vrcp.pop %v1489
    %v1506 = vmul.f32 1.0, %v1505
    %v1507 = vrcp.pop %v1490
    %v1508 = vmul.f32 1.0, %v1507
    %v1509 = vrcp.pop %v1491
    %v1510 = vmul.f32 1.0, %v1509
    %v1511 = vrcp.pop %v1492
    %v1512 = vmul.f32 1.0, %v1511
    %v1513 = vrcp.pop %v1493
    %v1514 = vmul.f32 1.0, %v1513
    %v1515 = vrcp.pop %v1494
    %v1516 = vmul.f32 1.0, %v1515
    %v1517 = vrcp.pop %v1495
    %v1518 = vmul.f32 1.0, %v1517
    %v1519 = vrcp.pop %v1496
    %v1520 = vmul.f32 1.0, %v1519
    %v1521 = vrcp.pop %v1497
    %v1522 = vmul.f32 1.0, %v1521
    %v1523 = vrcp.pop %v1498
    %v1524 = vmul.f32 1.0, %v1523
    %v1525 = vrcp.pop %v1499
    %v1526 = vmul.f32 1.0, %v1525
    %v1527 = vrcp.pop %v1500
    %v1528 = vmul.f32 1.0, %v1527
    %v1529 = vrcp.pop %v1501
    %v1530 = vmul.f32 1.0, %v1529
    %v1531 = vrcp.pop %v1502
    %v1532 = vmul.f32 1.0, %v1531
    %v1533 = vrcp.pop %v1503
    %v1534 = vmul.f32 1.0, %v1533
    %v1535 = vrcp.pop %v1504
    %v1536 = vmul.f32 1.0, %v1535
    %1538 = vset.pattern.permute.xlu0 0
    %1539 = vperm.xlu0 %1538, %v1506
    %v1540 = vpop.permute.xlu0 %1539
    %1543 = vset.pattern.permute.xlu0 0
    %1544 = vperm.xlu0 %1543, %v1508
    %v1545 = vpop.permute.xlu0 %1544
    %1548 = vset.pattern.permute.xlu0 0
    %1549 = vperm.xlu0 %1548, %v1510
    %v1550 = vpop.permute.xlu0 %1549
    %1553 = vset.pattern.permute.xlu0 0
    %1554 = vperm.xlu0 %1553, %v1512
    %v1555 = vpop.permute.xlu0 %1554
    %1558 = vset.pattern.permute.xlu0 0
    %1559 = vperm.xlu0 %1558, %v1514
    %v1560 = vpop.permute.xlu0 %1559
    %1563 = vset.pattern.permute.xlu0 0
    %1564 = vperm.xlu0 %1563, %v1516
    %v1565 = vpop.permute.xlu0 %1564
    %1568 = vset.pattern.permute.xlu0 0
    %1569 = vperm.xlu0 %1568, %v1518
    %v1570 = vpop.permute.xlu0 %1569
    %1573 = vset.pattern.permute.xlu0 0
    %1574 = vperm.xlu0 %1573, %v1520
    %v1575 = vpop.permute.xlu0 %1574
    %1578 = vset.pattern.permute.xlu0 0
    %1579 = vperm.xlu0 %1578, %v1522
    %v1580 = vpop.permute.xlu0 %1579
    %1583 = vset.pattern.permute.xlu0 0
    %1584 = vperm.xlu0 %1583, %v1524
    %v1585 = vpop.permute.xlu0 %1584
    %1588 = vset.pattern.permute.xlu0 0
    %1589 = vperm.xlu0 %1588, %v1526
    %v1590 = vpop.permute.xlu0 %1589
    %1593 = vset.pattern.permute.xlu0 0
    %1594 = vperm.xlu0 %1593, %v1528
    %v1595 = vpop.permute.xlu0 %1594
    %1598 = vset.pattern.permute.xlu0 0
    %1599 = vperm.xlu0 %1598, %v1530
    %v1600 = vpop.permute.xlu0 %1599
    %1603 = vset.pattern.permute.xlu0 0
    %1604 = vperm.xlu0 %1603, %v1532
    %v1605 = vpop.permute.xlu0 %1604
    %1608 = vset.pattern.permute.xlu0 0
    %1609 = vperm.xlu0 %1608, %v1534
    %v1610 = vpop.permute.xlu0 %1609
    %1613 = vset.pattern.permute.xlu0 0
    %1614 = vperm.xlu0 %1613, %v1536
    %v1615 = vpop.permute.xlu0 %1614
    %v1617 = vmul.f32 %v1540, %v1243
    %v1618 = vmul.f32 %v1540, %v1245
    %v1619 = vmul.f32 %v1545, %v1249
    %v1620 = vmul.f32 %v1545, %v1251
    %v1621 = vmul.f32 %v1550, %v1255
    %v1622 = vmul.f32 %v1550, %v1257
    %v1623 = vmul.f32 %v1555, %v1261
    %v1624 = vmul.f32 %v1555, %v1263
    %v1625 = vmul.f32 %v1560, %v1267
    %v1626 = vmul.f32 %v1560, %v1269
    %v1627 = vmul.f32 %v1565, %v1273
    %v1628 = vmul.f32 %v1565, %v1275
    %v1629 = vmul.f32 %v1570, %v1279
    %v1630 = vmul.f32 %v1570, %v1281
    %v1631 = vmul.f32 %v1575, %v1285
    %v1632 = vmul.f32 %v1575, %v1287
    %v1633 = vmul.f32 %v1580, %v1291
    %v1634 = vmul.f32 %v1580, %v1293
    %v1635 = vmul.f32 %v1585, %v1297
    %v1636 = vmul.f32 %v1585, %v1299
    %v1637 = vmul.f32 %v1590, %v1303
    %v1638 = vmul.f32 %v1590, %v1305
    %v1639 = vmul.f32 %v1595, %v1309
    %v1640 = vmul.f32 %v1595, %v1311
    %v1641 = vmul.f32 %v1600, %v1315
    %v1642 = vmul.f32 %v1600, %v1317
    %v1643 = vmul.f32 %v1605, %v1321
    %v1644 = vmul.f32 %v1605, %v1323
    %v1645 = vmul.f32 %v1610, %v1327
    %v1646 = vmul.f32 %v1610, %v1329
    %v1647 = vmul.f32 %v1615, %v1333
    %v1648 = vmul.f32 %v1615, %v1335
    %1649 = vmatprep.subr.mxu0 %v1618
    %1650 = vmatpush1.msra.mxu0 %v1617
    %1651 = vmatprep.subr.mxu0 %v1620
    %1652 = vmatpush1.msra.mxu0 %v1619
    %1653 = vmatprep.subr.mxu0 %v1622
    %1654 = vmatpush1.msra.mxu0 %v1621
    %1655 = vmatprep.subr.mxu0 %v1624
    %1656 = vmatpush1.msra.mxu0 %v1623
    %1657 = vmatprep.subr.mxu0 %v1626
    %1658 = vmatpush1.msra.mxu0 %v1625
    %1659 = vmatprep.subr.mxu0 %v1628
    %1660 = vmatpush1.msra.mxu0 %v1627
    %1661 = vmatprep.subr.mxu0 %v1630
    %1662 = vmatpush1.msra.mxu0 %v1629
    %1663 = vmatprep.subr.mxu0 %v1632
    %1664 = vmatpush1.msra.mxu0 %v1631
    %1665 = vmatprep.subr.mxu0 %v1634
    %1666 = vmatpush1.msra.mxu0 %v1633
    %1667 = vmatprep.subr.mxu0 %v1636
    %1668 = vmatpush1.msra.mxu0 %v1635
    %1669 = vmatprep.subr.mxu0 %v1638
    %1670 = vmatpush1.msra.mxu0 %v1637
    %1671 = vmatprep.subr.mxu0 %v1640
    %1672 = vmatpush1.msra.mxu0 %v1639
    %1673 = vmatprep.subr.mxu0 %v1642
    %1674 = vmatpush1.msra.mxu0 %v1641
    %1675 = vmatprep.subr.mxu0 %v1644
    %1676 = vmatpush1.msra.mxu0 %v1643
    %1677 = vmatprep.subr.mxu0 %v1646
    %1678 = vmatpush1.msra.mxu0 %v1645
    %1679 = vmatprep.subr.mxu0 %v1648
    %1680 = vmatpush1.msra.mxu0 %v1647
    %1681 = vmatprep.subr.mxu0 0.0
    %1682 = vmatpush1.msra.mxu0 0.0
    %1683 = vmatprep.subr.mxu0 0.0
    %1684 = vmatpush1.msra.mxu0 0.0
    %1685 = vmatprep.subr.mxu0 0.0
    %1686 = vmatpush1.msra.mxu0 0.0
    %1687 = vmatprep.subr.mxu0 0.0
    %1688 = vmatpush1.msra.mxu0 0.0
    %1689 = vmatprep.subr.mxu0 0.0
    %1690 = vmatpush1.msra.mxu0 0.0
    %1691 = vmatprep.subr.mxu0 0.0
    %1692 = vmatpush1.msra.mxu0 0.0
    %1693 = vmatprep.subr.mxu0 0.0
    %1694 = vmatpush1.msra.mxu0 0.0
    %1695 = vmatprep.subr.mxu0 0.0
    %1696 = vmatpush1.msra.mxu0 0.0
    %1697 = vmatprep.subr.mxu0 0.0
    %1698 = vmatpush1.msra.mxu0 0.0
    %1699 = vmatprep.subr.mxu0 0.0
    %1700 = vmatpush1.msra.mxu0 0.0
    %1701 = vmatprep.subr.mxu0 0.0
    %1702 = vmatpush1.msra.mxu0 0.0
    %1703 = vmatprep.subr.mxu0 0.0
    %1704 = vmatpush1.msra.mxu0 0.0
    %1705 = vmatprep.subr.mxu0 0.0
    %1706 = vmatpush1.msra.mxu0 0.0
    %1707 = vmatprep.subr.mxu0 0.0
    %1708 = vmatpush1.msra.mxu0 0.0
    %1709 = vmatprep.subr.mxu0 0.0
    %1710 = vmatpush1.msra.mxu0 0.0
    %1711 = vmatprep.subr.mxu0 0.0
    %1712 = vmatpush1.msra.mxu0 0.0
    %1713 = vmatprep.mubr.f32.mxu0 0.0
    %1714 = vmatmul.mubr.f32.gmra.mrb[0].mxu0 %v278
    %v1715 = vpop.f32.mrb[0].mxu0
    %v1716 = vadd.f32 %v1339, %v1715
    %v1717 = vpop.f32.mrb[0].mxu0
    %v1718 = vadd.f32 %v1341, %v1717
    %1719 = vmatprep.mubr.f32.mxu0 0.0
    %1720 = vmatmul.mubr.f32.gmra.mrb[0].mxu0 %v279
    %v1721 = vpop.f32.mrb[0].mxu0
    %v1722 = vadd.f32 %v1345, %v1721
    %v1723 = vpop.f32.mrb[0].mxu0
    %v1724 = vadd.f32 %v1347, %v1723
    %1725 = vmatprep.mubr.f32.mxu0 0.0
    %1726 = vmatmul.mubr.f32.gmra.mrb[0].mxu0 %v280
    %v1727 = vpop.f32.mrb[0].mxu0
    %v1728 = vadd.f32 %v1351, %v1727
    %v1729 = vpop.f32.mrb[0].mxu0
    %v1730 = vadd.f32 %v1353, %v1729
    %1731 = vmatprep.mubr.f32.mxu0 0.0
    %1732 = vmatmul.mubr.f32.gmra.mrb[0].mxu0 %v281
    %v1733 = vpop.f32.mrb[0].mxu0
    %v1734 = vadd.f32 %v1357, %v1733
    %v1735 = vpop.f32.mrb[0].mxu0
    %v1736 = vadd.f32 %v1359, %v1735
    %1737 = vdwg.mxu0
    %v1738 = vlaneseq
    %v1739 = vshrl.u32 %v1738, 7
    %v1740 = vsub.s32 1, %v1739
    %v1741 = vrot.slane %v219, %v1740
    %v1742 = vlaneseq
    %v1743 = vshrl.u32 %v1742, 7
    %v1744 = vsub.s32 1, %v1743
    %v1745 = vrot.slane %v220, %v1744
    %v1746 = vmul.f32 %v1741, %v1716
    %v1747 = vmul.f32 %v1745, %v1718
    %v1748 = vmul.f32 %v1741, %v1722
    %v1749 = vmul.f32 %v1745, %v1724
    %v1750 = vlaneseq
    %v1751 = vshrl.u32 %v1750, 7
    %v1752 = vsub.s32 1, %v1751
    %v1753 = vrot.slane %v1062, %v1752
    %v1754 = vlaneseq
    %v1755 = vshrl.u32 %v1754, 7
    %v1756 = vsub.s32 1, %v1755
    %v1757 = vrot.slane %v1063, %v1756
    %v1758 = vmul.f32 %v1753, %v1728
    %v1759 = vmul.f32 %v1757, %v1730
    %v1760 = vmul.f32 %v1753, %v1734
    %v1761 = vmul.f32 %v1757, %v1736
    %v1762 = vadd.f32 %v1746, %v1758
    %v1763 = vadd.f32 %v1747, %v1759
    %v1764 = vadd.f32 %v1748, %v1760
    %v1765 = vadd.f32 %v1749, %v1761
    %v1766 = vadd.f32 %v1076, %v1077
    %1767 = vadd.xlane.f32.xlu0 %v1766
    %v1768 = vpop.xlane.xlu0 %1767
    %v1769 = vadd.f32 %v1078, %v1079
    %1770 = vadd.xlane.f32.xlu0 %v1769
    %v1771 = vpop.xlane.xlu0 %1770
    %v1772 = vmul.f32 %v1076, %v1076
    %v1773 = vmul.f32 %v1077, %v1077
    %v1774 = vmul.f32 %v1078, %v1078
    %v1775 = vmul.f32 %v1079, %v1079
    %v1776 = vadd.f32 %v1772, %v1773
    %1777 = vadd.xlane.f32.xlu0 %v1776
    %v1778 = vpop.xlane.xlu0 %1777
    %v1779 = vadd.f32 %v1774, %v1775
    %1780 = vadd.xlane.f32.xlu0 %v1779
    %v1781 = vpop.xlane.xlu0 %1780
    %v1782 = vadd.f32 %v1762, %v1763
    %1783 = vadd.xlane.f32.xlu0 %v1782
    %v1784 = vpop.xlane.xlu0 %1783
    %v1785 = vadd.f32 %v1764, %v1765
    %1786 = vadd.xlane.f32.xlu0 %v1785
    %v1787 = vpop.xlane.xlu0 %1786
    %v1788 = vadd.f32 %v1768, %v1784
    %v1789 = vadd.f32 %v1771, %v1787
    %v1790 = vmul.f32 %v1762, %v1762
    %v1791 = vmul.f32 %v1763, %v1763
    %v1792 = vmul.f32 %v1764, %v1764
    %v1793 = vmul.f32 %v1765, %v1765
    %v1794 = vadd.f32 %v1790, %v1791
    %1795 = vadd.xlane.f32.xlu0 %v1794
    %v1796 = vpop.xlane.xlu0 %1795
    %v1797 = vadd.f32 %v1792, %v1793
    %1798 = vadd.xlane.f32.xlu0 %v1797
    %v1799 = vpop.xlane.xlu0 %1798
    %v1800 = vadd.f32 %v1778, %v1796
    %v1801 = vadd.f32 %v1781, %v1799
    %v1802 = vmul.f32 %v1788, 0.001953125
    %v1803 = vmul.f32 %v1789, 0.001953125
    %v1804 = vmul.f32 %v1800, 0.001953125
    %v1805 = vmul.f32 %v1801, 0.001953125
    %v1806 = vmul.f32 %v1802, %v1802
    %v1807 = vmul.f32 %v1803, %v1803
    %v1808 = vsub.f32 %v1804, %v1806
    %v1809 = vsub.f32 %v1805, %v1807
    %v1810 = vadd.f32 %v1808, 1e-05
    %v1811 = vadd.f32 %v1809, 1e-05
    %v1812 = vrsqrt.pop %v1810
    %v1813 = vrsqrt.pop %v1811
    %v1814 = vsub.f32 %v1076, %v1802
    %v1815 = vsub.f32 %v1077, %v1802
    %v1816 = vsub.f32 %v1078, %v1803
    %v1817 = vsub.f32 %v1079, %v1803
    %v1818 = vmul.f32 %v1814, %v1812
    %v1819 = vmul.f32 %v1815, %v1812
    %v1820 = vmul.f32 %v1816, %v1813
    %v1821 = vmul.f32 %v1817, %v1813
    %v1822 = vmax.f32 %v1818, 0.0
    %v1823 = vmax.f32 %v1819, 0.0
    %v1824 = vmax.f32 %v1820, 0.0
    %v1825 = vmax.f32 %v1821, 0.0
    %v1826 = vsub.f32 %v1762, %v1802
    %v1827 = vsub.f32 %v1763, %v1802
    %v1828 = vsub.f32 %v1764, %v1803
    %v1829 = vsub.f32 %v1765, %v1803
    %v1830 = vmul.f32 %v1826, %v1812
    %v1831 = vmul.f32 %v1827, %v1812
    %v1832 = vmul.f32 %v1828, %v1813
    %v1833 = vmul.f32 %v1829, %v1813
    %v1834 = vmax.f32 %v1830, 0.0
    %v1835 = vmax.f32 %v1831, 0.0
    %v1836 = vmax.f32 %v1832, 0.0
    %v1837 = vmax.f32 %v1833, 0.0
    %v1838 = vld [vmem:[%s6] sm:$0xff]
    %v1839 = vld [vmem:[%s6 + $0x8] sm:$0xff]
    %v1840 = vld [vmem:[%s6 + $0x10] sm:$0xff]
    %v1841 = vld [vmem:[%s6 + $0x18] sm:$0xff]
    %v1842 = vld [vmem:[%s6 + $0x20] sm:$0xff]
    %v1843 = vld [vmem:[%s6 + $0x28] sm:$0xff]
    %v1844 = vld [vmem:[%s6 + $0x30] sm:$0xff]
    %v1845 = vld [vmem:[%s6 + $0x38] sm:$0xff]
    %v1846 = vld [vmem:[%s6 + $0x40] sm:$0xff]
    %v1847 = vld [vmem:[%s6 + $0x48] sm:$0xff]
    %v1848 = vld [vmem:[%s6 + $0x50] sm:$0xff]
    %v1849 = vld [vmem:[%s6 + $0x58] sm:$0xff]
    %v1850 = vld [vmem:[%s6 + $0x60] sm:$0xff]
    %v1851 = vld [vmem:[%s6 + $0x68] sm:$0xff]
    %v1852 = vld [vmem:[%s6 + $0x70] sm:$0xff]
    %v1853 = vld [vmem:[%s6 + $0x78] sm:$0xff]
    %v1854 = vld [vmem:[%s6 + $0x80] sm:$0xff]
    %v1855 = vld [vmem:[%s6 + $0x88] sm:$0xff]
    %v1856 = vld [vmem:[%s6 + $0x90] sm:$0xff]
    %v1857 = vld [vmem:[%s6 + $0x98] sm:$0xff]
    %v1858 = vld [vmem:[%s6 + $0xa0] sm:$0xff]
    %v1859 = vld [vmem:[%s6 + $0xa8] sm:$0xff]
    %v1860 = vld [vmem:[%s6 + $0xb0] sm:$0xff]
    %v1861 = vld [vmem:[%s6 + $0xb8] sm:$0xff]
    %v1862 = vld [vmem:[%s6 + $0xc0] sm:$0xff]
    %v1863 = vld [vmem:[%s6 + $0xc8] sm:$0xff]
    %v1864 = vld [vmem:[%s6 + $0xd0] sm:$0xff]
    %v1865 = vld [vmem:[%s6 + $0xd8] sm:$0xff]
    %v1866 = vld [vmem:[%s6 + $0xe0] sm:$0xff]
    %v1867 = vld [vmem:[%s6 + $0xe8] sm:$0xff]
    %v1868 = vld [vmem:[%s6 + $0xf0] sm:$0xff]
    %v1869 = vld [vmem:[%s6 + $0xf8] sm:$0xff]
    %v1870 = vld [vmem:[%s6 + $0x100] sm:$0xff]
    %v1871 = vld [vmem:[%s6 + $0x108] sm:$0xff]
    %v1872 = vld [vmem:[%s6 + $0x110] sm:$0xff]
    %v1873 = vld [vmem:[%s6 + $0x118] sm:$0xff]
    %v1874 = vld [vmem:[%s6 + $0x120] sm:$0xff]
    %v1875 = vld [vmem:[%s6 + $0x128] sm:$0xff]
    %v1876 = vld [vmem:[%s6 + $0x130] sm:$0xff]
    %v1877 = vld [vmem:[%s6 + $0x138] sm:$0xff]
    %v1878 = vld [vmem:[%s6 + $0x140] sm:$0xff]
    %v1879 = vld [vmem:[%s6 + $0x148] sm:$0xff]
    %v1880 = vld [vmem:[%s6 + $0x150] sm:$0xff]
    %v1881 = vld [vmem:[%s6 + $0x158] sm:$0xff]
    %v1882 = vld [vmem:[%s6 + $0x160] sm:$0xff]
    %v1883 = vld [vmem:[%s6 + $0x168] sm:$0xff]
    %v1884 = vld [vmem:[%s6 + $0x170] sm:$0xff]
    %v1885 = vld [vmem:[%s6 + $0x178] sm:$0xff]
    %v1886 = vld [vmem:[%s6 + $0x180] sm:$0xff]
    %v1887 = vld [vmem:[%s6 + $0x188] sm:$0xff]
    %v1888 = vld [vmem:[%s6 + $0x190] sm:$0xff]
    %v1889 = vld [vmem:[%s6 + $0x198] sm:$0xff]
    %v1890 = vld [vmem:[%s6 + $0x1a0] sm:$0xff]
    %v1891 = vld [vmem:[%s6 + $0x1a8] sm:$0xff]
    %v1892 = vld [vmem:[%s6 + $0x1b0] sm:$0xff]
    %v1893 = vld [vmem:[%s6 + $0x1b8] sm:$0xff]
    %v1894 = vld [vmem:[%s6 + $0x1c0] sm:$0xff]
    %v1895 = vld [vmem:[%s6 + $0x1c8] sm:$0xff]
    %v1896 = vld [vmem:[%s6 + $0x1d0] sm:$0xff]
    %v1897 = vld [vmem:[%s6 + $0x1d8] sm:$0xff]
    %v1898 = vld [vmem:[%s6 + $0x1e0] sm:$0xff]
    %v1899 = vld [vmem:[%s6 + $0x1e8] sm:$0xff]
    %v1900 = vld [vmem:[%s6 + $0x1f0] sm:$0xff]
    %v1901 = vld [vmem:[%s6 + $0x1f8] sm:$0xff]
    %v1902 = vld [vmem:[%s6 + $0x200] sm:$0xff]
    %v1903 = vld [vmem:[%s6 + $0x208] sm:$0xff]
    %v1904 = vld [vmem:[%s7] sm:$0xff]
    %v1905 = vld [vmem:[%s7 + $0x8] sm:$0xff]
    %v1906 = vld [vmem:[%s7 + $0x10] sm:$0xff]
    %v1907 = vld [vmem:[%s7 + $0x18] sm:$0xff]
    %v1908 = vld [vmem:[%s7 + $0x20] sm:$0xff]
    %v1909 = vld [vmem:[%s7 + $0x28] sm:$0xff]
    %v1910 = vld [vmem:[%s7 + $0x30] sm:$0xff]
    %v1911 = vld [vmem:[%s7 + $0x38] sm:$0xff]
    %v1912 = vld [vmem:[%s7 + $0x40] sm:$0xff]
    %v1913 = vld [vmem:[%s7 + $0x48] sm:$0xff]
    %v1914 = vld [vmem:[%s7 + $0x50] sm:$0xff]
    %v1915 = vld [vmem:[%s7 + $0x58] sm:$0xff]
    %v1916 = vld [vmem:[%s7 + $0x60] sm:$0xff]
    %v1917 = vld [vmem:[%s7 + $0x68] sm:$0xff]
    %v1918 = vld [vmem:[%s7 + $0x70] sm:$0xff]
    %v1919 = vld [vmem:[%s7 + $0x78] sm:$0xff]
    %v1920 = vld [vmem:[%s7 + $0x80] sm:$0xff]
    %v1921 = vld [vmem:[%s7 + $0x88] sm:$0xff]
    %v1922 = vld [vmem:[%s7 + $0x90] sm:$0xff]
    %v1923 = vld [vmem:[%s7 + $0x98] sm:$0xff]
    %v1924 = vld [vmem:[%s7 + $0xa0] sm:$0xff]
    %v1925 = vld [vmem:[%s7 + $0xa8] sm:$0xff]
    %v1926 = vld [vmem:[%s7 + $0xb0] sm:$0xff]
    %v1927 = vld [vmem:[%s7 + $0xb8] sm:$0xff]
    %v1928 = vld [vmem:[%s7 + $0xc0] sm:$0xff]
    %v1929 = vld [vmem:[%s7 + $0xc8] sm:$0xff]
    %v1930 = vld [vmem:[%s7 + $0xd0] sm:$0xff]
    %v1931 = vld [vmem:[%s7 + $0xd8] sm:$0xff]
    %v1932 = vld [vmem:[%s7 + $0xe0] sm:$0xff]
    %v1933 = vld [vmem:[%s7 + $0xe8] sm:$0xff]
    %v1934 = vld [vmem:[%s7 + $0xf0] sm:$0xff]
    %v1935 = vld [vmem:[%s7 + $0xf8] sm:$0xff]
    %v1936 = vld [vmem:[%s8] sm:$0xff]
    %v1937 = vld [vmem:[%s8 + $0x8] sm:$0xff]
    %v1938 = vld [vmem:[%s8 + $0x10] sm:$0xff]
    %v1939 = vld [vmem:[%s8 + $0x18] sm:$0xff]
    %vm1940 = vcmask 130048
    %v1942 = vsel %vm1940, %v1838, 0
    %v1945 = vsel %vm1940, %v1839, 0
    %v1948 = vsel %vm1940, %v1840, 0
    %v1951 = vsel %vm1940, %v1841, 0
    %v1954 = vsel %vm1940, %v1842, 0
    %v1957 = vsel %vm1940, %v1843, 0
    %v1960 = vsel %vm1940, %v1844, 0
    %v1963 = vsel %vm1940, %v1845, 0
    %v1966 = vsel %vm1940, %v1846, 0
    %v1969 = vsel %vm1940, %v1847, 0
    %v1972 = vsel %vm1940, %v1848, 0
    %v1975 = vsel %vm1940, %v1849, 0
    %v1978 = vsel %vm1940, %v1850, 0
    %v1981 = vsel %vm1940, %v1851, 0
    %v1984 = vsel %vm1940, %v1852, 0
    %v1987 = vsel %vm1940, %v1853, 0
    %v1990 = vsel %vm1940, %v1854, 0
    %v1993 = vsel %vm1940, %v1855, 0
    %v1996 = vsel %vm1940, %v1856, 0
    %v1999 = vsel %vm1940, %v1857, 0
    %v2002 = vsel %vm1940, %v1858, 0
    %v2005 = vsel %vm1940, %v1859, 0
    %v2008 = vsel %vm1940, %v1860, 0
    %v2011 = vsel %vm1940, %v1861, 0
    %v2014 = vsel %vm1940, %v1862, 0
    %v2017 = vsel %vm1940, %v1863, 0
    %v2020 = vsel %vm1940, %v1864, 0
    %v2023 = vsel %vm1940, %v1865, 0
    %v2026 = vsel %vm1940, %v1866, 0
    %v2029 = vsel %vm1940, %v1867, 0
    %v2032 = vsel %vm1940, %v1868, 0
    %v2035 = vsel %vm1940, %v1869, 0
    %v2038 = vsel %vm1940, %v1870, 0
    %v2041 = vsel %vm1940, %v1871, 0
    %v2044 = vsel %vm1940, %v1872, 0
    %v2047 = vsel %vm1940, %v1873, 0
    %v2050 = vsel %vm1940, %v1874, 0
    %v2053 = vsel %vm1940, %v1875, 0
    %v2056 = vsel %vm1940, %v1876, 0
    %v2059 = vsel %vm1940, %v1877, 0
    %v2062 = vsel %vm1940, %v1878, 0
    %v2065 = vsel %vm1940, %v1879, 0
    %v2068 = vsel %vm1940, %v1880, 0
    %v2071 = vsel %vm1940, %v1881, 0
    %v2074 = vsel %vm1940, %v1882, 0
    %v2077 = vsel %vm1940, %v1883, 0
    %v2080 = vsel %vm1940, %v1884, 0
    %v2083 = vsel %vm1940, %v1885, 0
    %v2086 = vsel %vm1940, %v1886, 0
    %v2089 = vsel %vm1940, %v1887, 0
    %v2092 = vsel %vm1940, %v1888, 0
    %v2095 = vsel %vm1940, %v1889, 0
    %v2098 = vsel %vm1940, %v1890, 0
    %v2101 = vsel %vm1940, %v1891, 0
    %v2104 = vsel %vm1940, %v1892, 0
    %v2107 = vsel %vm1940, %v1893, 0
    %v2110 = vsel %vm1940, %v1894, 0
    %v2113 = vsel %vm1940, %v1895, 0
    %v2116 = vsel %vm1940, %v1896, 0
    %v2119 = vsel %vm1940, %v1897, 0
    %v2122 = vsel %vm1940, %v1898, 0
    %v2125 = vsel %vm1940, %v1899, 0
    %v2128 = vsel %vm1940, %v1900, 0
    %v2131 = vsel %vm1940, %v1901, 0
    %v2134 = vsel %vm1940, %v1902, 0
    %v2137 = vsel %vm1940, %v1903, 0
    %2139 = vmatprep.subr.mxu0 %v1823
    %2140 = vmatpush1.msra.mxu0 %v1822
    %2141 = vmatprep.subr.mxu0 %v1825
    %2142 = vmatpush1.msra.mxu0 %v1824
    %2143 = vmatprep.subr.mxu0 0.0
    %2144 = vmatpush1.msra.mxu0 0.0
    %2145 = vmatprep.subr.mxu0 0.0
    %2146 = vmatpush1.msra.mxu0 0.0
    %2147 = vmatprep.subr.mxu0 0.0
    %2148 = vmatpush1.msra.mxu0 0.0
    %2149 = vmatprep.subr.mxu0 0.0
    %2150 = vmatpush1.msra.mxu0 0.0
    %2151 = vmatprep.subr.mxu0 0.0
    %2152 = vmatpush1.msra.mxu0 0.0
    %2153 = vmatprep.subr.mxu0 0.0
    %2154 = vmatpush1.msra.mxu0 0.0
    %2155 = vmatprep.subr.mxu0 0.0
    %2156 = vmatpush1.msra.mxu0 0.0
    %2157 = vmatprep.subr.mxu0 0.0
    %2158 = vmatpush1.msra.mxu0 0.0
    %2159 = vmatprep.subr.mxu0 0.0
    %2160 = vmatpush1.msra.mxu0 0.0
    %2161 = vmatprep.subr.mxu0 0.0
    %2162 = vmatpush1.msra.mxu0 0.0
    %2163 = vmatprep.subr.mxu0 0.0
    %2164 = vmatpush1.msra.mxu0 0.0
    %2165 = vmatprep.subr.mxu0 0.0
    %2166 = vmatpush1.msra.mxu0 0.0
    %2167 = vmatprep.subr.mxu0 0.0
    %2168 = vmatpush1.msra.mxu0 0.0
    %2169 = vmatprep.subr.mxu0 0.0
    %2170 = vmatpush1.msra.mxu0 0.0
    %2171 = vmatprep.subr.mxu0 0.0
    %2172 = vmatpush1.msra.mxu0 0.0
    %2173 = vmatprep.subr.mxu0 0.0
    %2174 = vmatpush1.msra.mxu0 0.0
    %2175 = vmatprep.subr.mxu0 0.0
    %2176 = vmatpush1.msra.mxu0 0.0
    %2177 = vmatprep.subr.mxu0 0.0
    %2178 = vmatpush1.msra.mxu0 0.0
    %2179 = vmatprep.subr.mxu0 0.0
    %2180 = vmatpush1.msra.mxu0 0.0
    %2181 = vmatprep.subr.mxu0 0.0
    %2182 = vmatpush1.msra.mxu0 0.0
    %2183 = vmatprep.subr.mxu0 0.0
    %2184 = vmatpush1.msra.mxu0 0.0
    %2185 = vmatprep.subr.mxu0 0.0
    %2186 = vmatpush1.msra.mxu0 0.0
    %2187 = vmatprep.subr.mxu0 0.0
    %2188 = vmatpush1.msra.mxu0 0.0
    %2189 = vmatprep.subr.mxu0 0.0
    %2190 = vmatpush1.msra.mxu0 0.0
    %2191 = vmatprep.subr.mxu0 0.0
    %2192 = vmatpush1.msra.mxu0 0.0
    %2193 = vmatprep.subr.mxu0 0.0
    %2194 = vmatpush1.msra.mxu0 0.0
    %2195 = vmatprep.subr.mxu0 0.0
    %2196 = vmatpush1.msra.mxu0 0.0
    %2197 = vmatprep.subr.mxu0 0.0
    %2198 = vmatpush1.msra.mxu0 0.0
    %2199 = vmatprep.subr.mxu0 0.0
    %2200 = vmatpush1.msra.mxu0 0.0
    %2201 = vmatprep.subr.mxu0 0.0
    %2202 = vmatpush1.msra.mxu0 0.0
    %2203 = vmatprep.mubr.f32.mxu0 0.0
    %2204 = vmatmul.mubr.f32.gmra.mrb[0].mxu0 %v1942
    %v2205 = vpop.f32.mrb[0].mxu0
    %v2206 = vadd.f32 0.0, %v2205
    %v2207 = vpop.f32.mrb[0].mxu0
    %v2208 = vadd.f32 0.0, %v2207
    %2209 = vmatprep.mubr.f32.mxu0 0.0
    %2210 = vmatmul.mubr.f32.gmra.mrb[0].mxu0 %v1945
    %v2211 = vpop.f32.mrb[0].mxu0
    %v2212 = vadd.f32 0.0, %v2211
    %v2213 = vpop.f32.mrb[0].mxu0
    %v2214 = vadd.f32 0.0, %v2213
    %2215 = vmatprep.mubr.f32.mxu0 0.0
    %2216 = vmatmul.mubr.f32.gmra.mrb[0].mxu0 %v1948
    %v2217 = vpop.f32.mrb[0].mxu0
    %v2218 = vadd.f32 0.0, %v2217
    %v2219 = vpop.f32.mrb[0].mxu0
    %v2220 = vadd.f32 0.0, %v2219
    %2221 = vmatprep.mubr.f32.mxu0 0.0
    %2222 = vmatmul.mubr.f32.gmra.mrb[0].mxu0 %v1951
    %v2223 = vpop.f32.mrb[0].mxu0
    %v2224 = vadd.f32 0.0, %v2223
    %v2225 = vpop.f32.mrb[0].mxu0
    %v2226 = vadd.f32 0.0, %v2225
    %2227 = vmatprep.mubr.f32.mxu0 0.0
    %2228 = vmatmul.mubr.f32.gmra.mrb[0].mxu0 %v1954
    %v2229 = vpop.f32.mrb[0].mxu0
    %v2230 = vadd.f32 0.0, %v2229
    %v2231 = vpop.f32.mrb[0].mxu0
    %v2232 = vadd.f32 0.0, %v2231
    %2233 = vmatprep.mubr.f32.mxu0 0.0
    %2234 = vmatmul.mubr.f32.gmra.mrb[0].mxu0 %v1957
    %v2235 = vpop.f32.mrb[0].mxu0
    %v2236 = vadd.f32 0.0, %v2235
    %v2237 = vpop.f32.mrb[0].mxu0
    %v2238 = vadd.f32 0.0, %v2237
    %2239 = vmatprep.mubr.f32.mxu0 0.0
    %2240 = vmatmul.mubr.f32.gmra.mrb[0].mxu0 %v1960
    %v2241 = vpop.f32.mrb[0].mxu0
    %v2242 = vadd.f32 0.0, %v2241
    %v2243 = vpop.f32.mrb[0].mxu0
    %v2244 = vadd.f32 0.0, %v2243
    %2245 = vmatprep.mubr.f32.mxu0 0.0
    %2246 = vmatmul.mubr.f32.gmra.mrb[0].mxu0 %v1963
    %v2247 = vpop.f32.mrb[0].mxu0
    %v2248 = vadd.f32 0.0, %v2247
    %v2249 = vpop.f32.mrb[0].mxu0
    %v2250 = vadd.f32 0.0, %v2249
    %2251 = vmatprep.mubr.f32.mxu0 0.0
    %2252 = vmatmul.mubr.f32.gmra.mrb[0].mxu0 %v1966
    %v2253 = vpop.f32.mrb[0].mxu0
    %v2254 = vadd.f32 0.0, %v2253
    %v2255 = vpop.f32.mrb[0].mxu0
    %v2256 = vadd.f32 0.0, %v2255
    %2257 = vmatprep.mubr.f32.mxu0 0.0
    %2258 = vmatmul.mubr.f32.gmra.mrb[0].mxu0 %v1969
    %v2259 = vpop.f32.mrb[0].mxu0
    %v2260 = vadd.f32 0.0, %v2259
    %v2261 = vpop.f32.mrb[0].mxu0
    %v2262 = vadd.f32 0.0, %v2261
    %2263 = vmatprep.mubr.f32.mxu0 0.0
    %2264 = vmatmul.mubr.f32.gmra.mrb[0].mxu0 %v1972
    %v2265 = vpop.f32.mrb[0].mxu0
    %v2266 = vadd.f32 0.0, %v2265
    %v2267 = vpop.f32.mrb[0].mxu0
    %v2268 = vadd.f32 0.0, %v2267
    %2269 = vmatprep.mubr.f32.mxu0 0.0
    %2270 = vmatmul.mubr.f32.gmra.mrb[0].mxu0 %v1975
    %v2271 = vpop.f32.mrb[0].mxu0
    %v2272 = vadd.f32 0.0, %v2271
    %v2273 = vpop.f32.mrb[0].mxu0
    %v2274 = vadd.f32 0.0, %v2273
    %2275 = vmatprep.mubr.f32.mxu0 0.0
    %2276 = vmatmul.mubr.f32.gmra.mrb[0].mxu0 %v1978
    %v2277 = vpop.f32.mrb[0].mxu0
    %v2278 = vadd.f32 0.0, %v2277
    %v2279 = vpop.f32.mrb[0].mxu0
    %v2280 = vadd.f32 0.0, %v2279
    %2281 = vmatprep.mubr.f32.mxu0 0.0
    %2282 = vmatmul.mubr.f32.gmra.mrb[0].mxu0 %v1981
    %v2283 = vpop.f32.mrb[0].mxu0
    %v2284 = vadd.f32 0.0, %v2283
    %v2285 = vpop.f32.mrb[0].mxu0
    %v2286 = vadd.f32 0.0, %v2285
    %2287 = vmatprep.mubr.f32.mxu0 0.0
    %2288 = vmatmul.mubr.f32.gmra.mrb[0].mxu0 %v1984
    %v2289 = vpop.f32.mrb[0].mxu0
    %v2290 = vadd.f32 0.0, %v2289
    %v2291 = vpop.f32.mrb[0].mxu0
    %v2292 = vadd.f32 0.0, %v2291
    %2293 = vmatprep.mubr.f32.mxu0 0.0
    %2294 = vmatmul.mubr.f32.gmra.mrb[0].mxu0 %v1987
    %v2295 = vpop.f32.mrb[0].mxu0
    %v2296 = vadd.f32 0.0, %v2295
    %v2297 = vpop.f32.mrb[0].mxu0
    %v2298 = vadd.f32 0.0, %v2297
    %2299 = vmatprep.mubr.f32.mxu0 0.0
    %2300 = vmatmul.mubr.f32.gmra.mrb[0].mxu0 %v1990
    %v2301 = vpop.f32.mrb[0].mxu0
    %v2302 = vadd.f32 0.0, %v2301
    %v2303 = vpop.f32.mrb[0].mxu0
    %v2304 = vadd.f32 0.0, %v2303
    %2305 = vmatprep.mubr.f32.mxu0 0.0
    %2306 = vmatmul.mubr.f32.gmra.mrb[0].mxu0 %v1993
    %v2307 = vpop.f32.mrb[0].mxu0
    %v2308 = vadd.f32 0.0, %v2307
    %v2309 = vpop.f32.mrb[0].mxu0
    %v2310 = vadd.f32 0.0, %v2309
    %2311 = vmatprep.mubr.f32.mxu0 0.0
    %2312 = vmatmul.mubr.f32.gmra.mrb[0].mxu0 %v1996
    %v2313 = vpop.f32.mrb[0].mxu0
    %v2314 = vadd.f32 0.0, %v2313
    %v2315 = vpop.f32.mrb[0].mxu0
    %v2316 = vadd.f32 0.0, %v2315
    %2317 = vmatprep.mubr.f32.mxu0 0.0
    %2318 = vmatmul.mubr.f32.gmra.mrb[0].mxu0 %v1999
    %v2319 = vpop.f32.mrb[0].mxu0
    %v2320 = vadd.f32 0.0, %v2319
    %v2321 = vpop.f32.mrb[0].mxu0
    %v2322 = vadd.f32 0.0, %v2321
    %2323 = vmatprep.mubr.f32.mxu0 0.0
    %2324 = vmatmul.mubr.f32.gmra.mrb[0].mxu0 %v2002
    %v2325 = vpop.f32.mrb[0].mxu0
    %v2326 = vadd.f32 0.0, %v2325
    %v2327 = vpop.f32.mrb[0].mxu0
    %v2328 = vadd.f32 0.0, %v2327
    %2329 = vmatprep.mubr.f32.mxu0 0.0
    %2330 = vmatmul.mubr.f32.gmra.mrb[0].mxu0 %v2005
    %v2331 = vpop.f32.mrb[0].mxu0
    %v2332 = vadd.f32 0.0, %v2331
    %v2333 = vpop.f32.mrb[0].mxu0
    %v2334 = vadd.f32 0.0, %v2333
    %2335 = vmatprep.mubr.f32.mxu0 0.0
    %2336 = vmatmul.mubr.f32.gmra.mrb[0].mxu0 %v2008
    %v2337 = vpop.f32.mrb[0].mxu0
    %v2338 = vadd.f32 0.0, %v2337
    %v2339 = vpop.f32.mrb[0].mxu0
    %v2340 = vadd.f32 0.0, %v2339
    %2341 = vmatprep.mubr.f32.mxu0 0.0
    %2342 = vmatmul.mubr.f32.gmra.mrb[0].mxu0 %v2011
    %v2343 = vpop.f32.mrb[0].mxu0
    %v2344 = vadd.f32 0.0, %v2343
    %v2345 = vpop.f32.mrb[0].mxu0
    %v2346 = vadd.f32 0.0, %v2345
    %2347 = vmatprep.mubr.f32.mxu0 0.0
    %2348 = vmatmul.mubr.f32.gmra.mrb[0].mxu0 %v2014
    %v2349 = vpop.f32.mrb[0].mxu0
    %v2350 = vadd.f32 0.0, %v2349
    %v2351 = vpop.f32.mrb[0].mxu0
    %v2352 = vadd.f32 0.0, %v2351
    %2353 = vmatprep.mubr.f32.mxu0 0.0
    %2354 = vmatmul.mubr.f32.gmra.mrb[0].mxu0 %v2017
    %v2355 = vpop.f32.mrb[0].mxu0
    %v2356 = vadd.f32 0.0, %v2355
    %v2357 = vpop.f32.mrb[0].mxu0
    %v2358 = vadd.f32 0.0, %v2357
    %2359 = vmatprep.mubr.f32.mxu0 0.0
    %2360 = vmatmul.mubr.f32.gmra.mrb[0].mxu0 %v2020
    %v2361 = vpop.f32.mrb[0].mxu0
    %v2362 = vadd.f32 0.0, %v2361
    %v2363 = vpop.f32.mrb[0].mxu0
    %v2364 = vadd.f32 0.0, %v2363
    %2365 = vmatprep.mubr.f32.mxu0 0.0
    %2366 = vmatmul.mubr.f32.gmra.mrb[0].mxu0 %v2023
    %v2367 = vpop.f32.mrb[0].mxu0
    %v2368 = vadd.f32 0.0, %v2367
    %v2369 = vpop.f32.mrb[0].mxu0
    %v2370 = vadd.f32 0.0, %v2369
    %2371 = vmatprep.mubr.f32.mxu0 0.0
    %2372 = vmatmul.mubr.f32.gmra.mrb[0].mxu0 %v2026
    %v2373 = vpop.f32.mrb[0].mxu0
    %v2374 = vadd.f32 0.0, %v2373
    %v2375 = vpop.f32.mrb[0].mxu0
    %v2376 = vadd.f32 0.0, %v2375
    %2377 = vmatprep.mubr.f32.mxu0 0.0
    %2378 = vmatmul.mubr.f32.gmra.mrb[0].mxu0 %v2029
    %v2379 = vpop.f32.mrb[0].mxu0
    %v2380 = vadd.f32 0.0, %v2379
    %v2381 = vpop.f32.mrb[0].mxu0
    %v2382 = vadd.f32 0.0, %v2381
    %2383 = vmatprep.mubr.f32.mxu0 0.0
    %2384 = vmatmul.mubr.f32.gmra.mrb[0].mxu0 %v2032
    %v2385 = vpop.f32.mrb[0].mxu0
    %v2386 = vadd.f32 0.0, %v2385
    %v2387 = vpop.f32.mrb[0].mxu0
    %v2388 = vadd.f32 0.0, %v2387
    %2389 = vmatprep.mubr.f32.mxu0 0.0
    %2390 = vmatmul.mubr.f32.gmra.mrb[0].mxu0 %v2035
    %v2391 = vpop.f32.mrb[0].mxu0
    %v2392 = vadd.f32 0.0, %v2391
    %v2393 = vpop.f32.mrb[0].mxu0
    %v2394 = vadd.f32 0.0, %v2393
    %2395 = vmatprep.mubr.f32.mxu0 0.0
    %2396 = vmatmul.mubr.f32.gmra.mrb[0].mxu0 %v2038
    %v2397 = vpop.f32.mrb[0].mxu0
    %v2398 = vadd.f32 0.0, %v2397
    %v2399 = vpop.f32.mrb[0].mxu0
    %v2400 = vadd.f32 0.0, %v2399
    %2401 = vmatprep.mubr.f32.mxu0 0.0
    %2402 = vmatmul.mubr.f32.gmra.mrb[0].mxu0 %v2041
    %v2403 = vpop.f32.mrb[0].mxu0
    %v2404 = vadd.f32 0.0, %v2403
    %v2405 = vpop.f32.mrb[0].mxu0
    %v2406 = vadd.f32 0.0, %v2405
    %2407 = vmatprep.mubr.f32.mxu0 0.0
    %2408 = vmatmul.mubr.f32.gmra.mrb[0].mxu0 %v2044
    %v2409 = vpop.f32.mrb[0].mxu0
    %v2410 = vadd.f32 0.0, %v2409
    %v2411 = vpop.f32.mrb[0].mxu0
    %v2412 = vadd.f32 0.0, %v2411
    %2413 = vmatprep.mubr.f32.mxu0 0.0
    %2414 = vmatmul.mubr.f32.gmra.mrb[0].mxu0 %v2047
    %v2415 = vpop.f32.mrb[0].mxu0
    %v2416 = vadd.f32 0.0, %v2415
    %v2417 = vpop.f32.mrb[0].mxu0
    %v2418 = vadd.f32 0.0, %v2417
    %2419 = vmatprep.mubr.f32.mxu0 0.0
    %2420 = vmatmul.mubr.f32.gmra.mrb[0].mxu0 %v2050
    %v2421 = vpop.f32.mrb[0].mxu0
    %v2422 = vadd.f32 0.0, %v2421
    %v2423 = vpop.f32.mrb[0].mxu0
    %v2424 = vadd.f32 0.0, %v2423
    %2425 = vmatprep.mubr.f32.mxu0 0.0
    %2426 = vmatmul.mubr.f32.gmra.mrb[0].mxu0 %v2053
    %v2427 = vpop.f32.mrb[0].mxu0
    %v2428 = vadd.f32 0.0, %v2427
    %v2429 = vpop.f32.mrb[0].mxu0
    %v2430 = vadd.f32 0.0, %v2429
    %2431 = vmatprep.mubr.f32.mxu0 0.0
    %2432 = vmatmul.mubr.f32.gmra.mrb[0].mxu0 %v2056
    %v2433 = vpop.f32.mrb[0].mxu0
    %v2434 = vadd.f32 0.0, %v2433
    %v2435 = vpop.f32.mrb[0].mxu0
    %v2436 = vadd.f32 0.0, %v2435
    %2437 = vmatprep.mubr.f32.mxu0 0.0
    %2438 = vmatmul.mubr.f32.gmra.mrb[0].mxu0 %v2059
    %v2439 = vpop.f32.mrb[0].mxu0
    %v2440 = vadd.f32 0.0, %v2439
    %v2441 = vpop.f32.mrb[0].mxu0
    %v2442 = vadd.f32 0.0, %v2441
    %2443 = vmatprep.mubr.f32.mxu0 0.0
    %2444 = vmatmul.mubr.f32.gmra.mrb[0].mxu0 %v2062
    %v2445 = vpop.f32.mrb[0].mxu0
    %v2446 = vadd.f32 0.0, %v2445
    %v2447 = vpop.f32.mrb[0].mxu0
    %v2448 = vadd.f32 0.0, %v2447
    %2449 = vmatprep.mubr.f32.mxu0 0.0
    %2450 = vmatmul.mubr.f32.gmra.mrb[0].mxu0 %v2065
    %v2451 = vpop.f32.mrb[0].mxu0
    %v2452 = vadd.f32 0.0, %v2451
    %v2453 = vpop.f32.mrb[0].mxu0
    %v2454 = vadd.f32 0.0, %v2453
    %2455 = vmatprep.mubr.f32.mxu0 0.0
    %2456 = vmatmul.mubr.f32.gmra.mrb[0].mxu0 %v2068
    %v2457 = vpop.f32.mrb[0].mxu0
    %v2458 = vadd.f32 0.0, %v2457
    %v2459 = vpop.f32.mrb[0].mxu0
    %v2460 = vadd.f32 0.0, %v2459
    %2461 = vmatprep.mubr.f32.mxu0 0.0
    %2462 = vmatmul.mubr.f32.gmra.mrb[0].mxu0 %v2071
    %v2463 = vpop.f32.mrb[0].mxu0
    %v2464 = vadd.f32 0.0, %v2463
    %v2465 = vpop.f32.mrb[0].mxu0
    %v2466 = vadd.f32 0.0, %v2465
    %2467 = vmatprep.mubr.f32.mxu0 0.0
    %2468 = vmatmul.mubr.f32.gmra.mrb[0].mxu0 %v2074
    %v2469 = vpop.f32.mrb[0].mxu0
    %v2470 = vadd.f32 0.0, %v2469
    %v2471 = vpop.f32.mrb[0].mxu0
    %v2472 = vadd.f32 0.0, %v2471
    %2473 = vmatprep.mubr.f32.mxu0 0.0
    %2474 = vmatmul.mubr.f32.gmra.mrb[0].mxu0 %v2077
    %v2475 = vpop.f32.mrb[0].mxu0
    %v2476 = vadd.f32 0.0, %v2475
    %v2477 = vpop.f32.mrb[0].mxu0
    %v2478 = vadd.f32 0.0, %v2477
    %2479 = vmatprep.mubr.f32.mxu0 0.0
    %2480 = vmatmul.mubr.f32.gmra.mrb[0].mxu0 %v2080
    %v2481 = vpop.f32.mrb[0].mxu0
    %v2482 = vadd.f32 0.0, %v2481
    %v2483 = vpop.f32.mrb[0].mxu0
    %v2484 = vadd.f32 0.0, %v2483
    %2485 = vmatprep.mubr.f32.mxu0 0.0
    %2486 = vmatmul.mubr.f32.gmra.mrb[0].mxu0 %v2083
    %v2487 = vpop.f32.mrb[0].mxu0
    %v2488 = vadd.f32 0.0, %v2487
    %v2489 = vpop.f32.mrb[0].mxu0
    %v2490 = vadd.f32 0.0, %v2489
    %2491 = vmatprep.mubr.f32.mxu0 0.0
    %2492 = vmatmul.mubr.f32.gmra.mrb[0].mxu0 %v2086
    %v2493 = vpop.f32.mrb[0].mxu0
    %v2494 = vadd.f32 0.0, %v2493
    %v2495 = vpop.f32.mrb[0].mxu0
    %v2496 = vadd.f32 0.0, %v2495
    %2497 = vmatprep.mubr.f32.mxu0 0.0
    %2498 = vmatmul.mubr.f32.gmra.mrb[0].mxu0 %v2089
    %v2499 = vpop.f32.mrb[0].mxu0
    %v2500 = vadd.f32 0.0, %v2499
    %v2501 = vpop.f32.mrb[0].mxu0
    %v2502 = vadd.f32 0.0, %v2501
    %2503 = vmatprep.mubr.f32.mxu0 0.0
    %2504 = vmatmul.mubr.f32.gmra.mrb[0].mxu0 %v2092
    %v2505 = vpop.f32.mrb[0].mxu0
    %v2506 = vadd.f32 0.0, %v2505
    %v2507 = vpop.f32.mrb[0].mxu0
    %v2508 = vadd.f32 0.0, %v2507
    %2509 = vmatprep.mubr.f32.mxu0 0.0
    %2510 = vmatmul.mubr.f32.gmra.mrb[0].mxu0 %v2095
    %v2511 = vpop.f32.mrb[0].mxu0
    %v2512 = vadd.f32 0.0, %v2511
    %v2513 = vpop.f32.mrb[0].mxu0
    %v2514 = vadd.f32 0.0, %v2513
    %2515 = vmatprep.mubr.f32.mxu0 0.0
    %2516 = vmatmul.mubr.f32.gmra.mrb[0].mxu0 %v2098
    %v2517 = vpop.f32.mrb[0].mxu0
    %v2518 = vadd.f32 0.0, %v2517
    %v2519 = vpop.f32.mrb[0].mxu0
    %v2520 = vadd.f32 0.0, %v2519
    %2521 = vmatprep.mubr.f32.mxu0 0.0
    %2522 = vmatmul.mubr.f32.gmra.mrb[0].mxu0 %v2101
    %v2523 = vpop.f32.mrb[0].mxu0
    %v2524 = vadd.f32 0.0, %v2523
    %v2525 = vpop.f32.mrb[0].mxu0
    %v2526 = vadd.f32 0.0, %v2525
    %2527 = vmatprep.mubr.f32.mxu0 0.0
    %2528 = vmatmul.mubr.f32.gmra.mrb[0].mxu0 %v2104
    %v2529 = vpop.f32.mrb[0].mxu0
    %v2530 = vadd.f32 0.0, %v2529
    %v2531 = vpop.f32.mrb[0].mxu0
    %v2532 = vadd.f32 0.0, %v2531
    %2533 = vmatprep.mubr.f32.mxu0 0.0
    %2534 = vmatmul.mubr.f32.gmra.mrb[0].mxu0 %v2107
    %v2535 = vpop.f32.mrb[0].mxu0
    %v2536 = vadd.f32 0.0, %v2535
    %v2537 = vpop.f32.mrb[0].mxu0
    %v2538 = vadd.f32 0.0, %v2537
    %2539 = vmatprep.mubr.f32.mxu0 0.0
    %2540 = vmatmul.mubr.f32.gmra.mrb[0].mxu0 %v2110
    %v2541 = vpop.f32.mrb[0].mxu0
    %v2542 = vadd.f32 0.0, %v2541
    %v2543 = vpop.f32.mrb[0].mxu0
    %v2544 = vadd.f32 0.0, %v2543
    %2545 = vmatprep.mubr.f32.mxu0 0.0
    %2546 = vmatmul.mubr.f32.gmra.mrb[0].mxu0 %v2113
    %v2547 = vpop.f32.mrb[0].mxu0
    %v2548 = vadd.f32 0.0, %v2547
    %v2549 = vpop.f32.mrb[0].mxu0
    %v2550 = vadd.f32 0.0, %v2549
    %2551 = vmatprep.mubr.f32.mxu0 0.0
    %2552 = vmatmul.mubr.f32.gmra.mrb[0].mxu0 %v2116
    %v2553 = vpop.f32.mrb[0].mxu0
    %v2554 = vadd.f32 0.0, %v2553
    %v2555 = vpop.f32.mrb[0].mxu0
    %v2556 = vadd.f32 0.0, %v2555
    %2557 = vmatprep.mubr.f32.mxu0 0.0
    %2558 = vmatmul.mubr.f32.gmra.mrb[0].mxu0 %v2119
    %v2559 = vpop.f32.mrb[0].mxu0
    %v2560 = vadd.f32 0.0, %v2559
    %v2561 = vpop.f32.mrb[0].mxu0
    %v2562 = vadd.f32 0.0, %v2561
    %2563 = vmatprep.mubr.f32.mxu0 0.0
    %2564 = vmatmul.mubr.f32.gmra.mrb[0].mxu0 %v2122
    %v2565 = vpop.f32.mrb[0].mxu0
    %v2566 = vadd.f32 0.0, %v2565
    %v2567 = vpop.f32.mrb[0].mxu0
    %v2568 = vadd.f32 0.0, %v2567
    %2569 = vmatprep.mubr.f32.mxu0 0.0
    %2570 = vmatmul.mubr.f32.gmra.mrb[0].mxu0 %v2125
    %v2571 = vpop.f32.mrb[0].mxu0
    %v2572 = vadd.f32 0.0, %v2571
    %v2573 = vpop.f32.mrb[0].mxu0
    %v2574 = vadd.f32 0.0, %v2573
    %2575 = vmatprep.mubr.f32.mxu0 0.0
    %2576 = vmatmul.mubr.f32.gmra.mrb[0].mxu0 %v2128
    %v2577 = vpop.f32.mrb[0].mxu0
    %v2578 = vadd.f32 0.0, %v2577
    %v2579 = vpop.f32.mrb[0].mxu0
    %v2580 = vadd.f32 0.0, %v2579
    %2581 = vmatprep.mubr.f32.mxu0 0.0
    %2582 = vmatmul.mubr.f32.gmra.mrb[0].mxu0 %v2131
    %v2583 = vpop.f32.mrb[0].mxu0
    %v2584 = vadd.f32 0.0, %v2583
    %v2585 = vpop.f32.mrb[0].mxu0
    %v2586 = vadd.f32 0.0, %v2585
    %2587 = vmatprep.mubr.f32.mxu0 0.0
    %2588 = vmatmul.mubr.f32.gmra.mrb[0].mxu0 %v2134
    %v2589 = vpop.f32.mrb[0].mxu0
    %v2590 = vadd.f32 0.0, %v2589
    %v2591 = vpop.f32.mrb[0].mxu0
    %v2592 = vadd.f32 0.0, %v2591
    %2593 = vmatprep.mubr.f32.mxu0 0.0
    %2594 = vmatmul.mubr.f32.gmra.mrb[0].mxu0 %v2137
    %v2595 = vpop.f32.mrb[0].mxu0
    %v2596 = vadd.f32 0.0, %v2595
    %v2597 = vpop.f32.mrb[0].mxu0
    %v2598 = vadd.f32 0.0, %v2597
    %2599 = vdwg.mxu0
    %v2600 = vadd.f32 %v2206, %v2208
    %2601 = vadd.xlane.f32.xlu0 %v2600
    %v2602 = vpop.xlane.xlu0 %2601
    %v2603 = vadd.f32 %v2212, %v2214
    %2604 = vadd.xlane.f32.xlu0 %v2603
    %v2605 = vpop.xlane.xlu0 %2604
    %v2606 = vadd.f32 %v2218, %v2220
    %2607 = vadd.xlane.f32.xlu0 %v2606
    %v2608 = vpop.xlane.xlu0 %2607
    %v2609 = vadd.f32 %v2224, %v2226
    %2610 = vadd.xlane.f32.xlu0 %v2609
    %v2611 = vpop.xlane.xlu0 %2610
    %v2612 = vadd.f32 %v2230, %v2232
    %2613 = vadd.xlane.f32.xlu0 %v2612
    %v2614 = vpop.xlane.xlu0 %2613
    %v2615 = vadd.f32 %v2236, %v2238
    %2616 = vadd.xlane.f32.xlu0 %v2615
    %v2617 = vpop.xlane.xlu0 %2616
    %v2618 = vadd.f32 %v2242, %v2244
    %2619 = vadd.xlane.f32.xlu0 %v2618
    %v2620 = vpop.xlane.xlu0 %2619
    %v2621 = vadd.f32 %v2248, %v2250
    %2622 = vadd.xlane.f32.xlu0 %v2621
    %v2623 = vpop.xlane.xlu0 %2622
    %v2624 = vadd.f32 %v2254, %v2256
    %2625 = vadd.xlane.f32.xlu0 %v2624
    %v2626 = vpop.xlane.xlu0 %2625
    %v2627 = vadd.f32 %v2260, %v2262
    %2628 = vadd.xlane.f32.xlu0 %v2627
    %v2629 = vpop.xlane.xlu0 %2628
    %v2630 = vadd.f32 %v2266, %v2268
    %2631 = vadd.xlane.f32.xlu0 %v2630
    %v2632 = vpop.xlane.xlu0 %2631
    %v2633 = vadd.f32 %v2272, %v2274
    %2634 = vadd.xlane.f32.xlu0 %v2633
    %v2635 = vpop.xlane.xlu0 %2634
    %v2636 = vadd.f32 %v2278, %v2280
    %2637 = vadd.xlane.f32.xlu0 %v2636
    %v2638 = vpop.xlane.xlu0 %2637
    %v2639 = vadd.f32 %v2284, %v2286
    %2640 = vadd.xlane.f32.xlu0 %v2639
    %v2641 = vpop.xlane.xlu0 %2640
    %v2642 = vadd.f32 %v2290, %v2292
    %2643 = vadd.xlane.f32.xlu0 %v2642
    %v2644 = vpop.xlane.xlu0 %2643
    %v2645 = vadd.f32 %v2296, %v2298
    %2646 = vadd.xlane.f32.xlu0 %v2645
    %v2647 = vpop.xlane.xlu0 %2646
    %v2648 = vadd.f32 %v2302, %v2304
    %2649 = vadd.xlane.f32.xlu0 %v2648
    %v2650 = vpop.xlane.xlu0 %2649
    %v2651 = vadd.f32 %v2308, %v2310
    %2652 = vadd.xlane.f32.xlu0 %v2651
    %v2653 = vpop.xlane.xlu0 %2652
    %v2654 = vadd.f32 %v2314, %v2316
    %2655 = vadd.xlane.f32.xlu0 %v2654
    %v2656 = vpop.xlane.xlu0 %2655
    %v2657 = vadd.f32 %v2320, %v2322
    %2658 = vadd.xlane.f32.xlu0 %v2657
    %v2659 = vpop.xlane.xlu0 %2658
    %v2660 = vadd.f32 %v2326, %v2328
    %2661 = vadd.xlane.f32.xlu0 %v2660
    %v2662 = vpop.xlane.xlu0 %2661
    %v2663 = vadd.f32 %v2332, %v2334
    %2664 = vadd.xlane.f32.xlu0 %v2663
    %v2665 = vpop.xlane.xlu0 %2664
    %v2666 = vadd.f32 %v2338, %v2340
    %2667 = vadd.xlane.f32.xlu0 %v2666
    %v2668 = vpop.xlane.xlu0 %2667
    %v2669 = vadd.f32 %v2344, %v2346
    %2670 = vadd.xlane.f32.xlu0 %v2669
    %v2671 = vpop.xlane.xlu0 %2670
    %v2672 = vadd.f32 %v2350, %v2352
    %2673 = vadd.xlane.f32.xlu0 %v2672
    %v2674 = vpop.xlane.xlu0 %2673
    %v2675 = vadd.f32 %v2356, %v2358
    %2676 = vadd.xlane.f32.xlu0 %v2675
    %v2677 = vpop.xlane.xlu0 %2676
    %v2678 = vadd.f32 %v2362, %v2364
    %2679 = vadd.xlane.f32.xlu0 %v2678
    %v2680 = vpop.xlane.xlu0 %2679
    %v2681 = vadd.f32 %v2368, %v2370
    %2682 = vadd.xlane.f32.xlu0 %v2681
    %v2683 = vpop.xlane.xlu0 %2682
    %v2684 = vadd.f32 %v2374, %v2376
    %2685 = vadd.xlane.f32.xlu0 %v2684
    %v2686 = vpop.xlane.xlu0 %2685
    %v2687 = vadd.f32 %v2380, %v2382
    %2688 = vadd.xlane.f32.xlu0 %v2687
    %v2689 = vpop.xlane.xlu0 %2688
    %v2690 = vadd.f32 %v2386, %v2388
    %2691 = vadd.xlane.f32.xlu0 %v2690
    %v2692 = vpop.xlane.xlu0 %2691
    %v2693 = vadd.f32 %v2392, %v2394
    %2694 = vadd.xlane.f32.xlu0 %v2693
    %v2695 = vpop.xlane.xlu0 %2694
    %v2696 = vmul.f32 %v2602, %v720
    %v2697 = vmul.f32 %v2605, %v720
    %v2698 = vmul.f32 %v2608, %v720
    %v2699 = vmul.f32 %v2611, %v720
    %v2700 = vmul.f32 %v2614, %v720
    %v2701 = vmul.f32 %v2617, %v720
    %v2702 = vmul.f32 %v2620, %v720
    %v2703 = vmul.f32 %v2623, %v720
    %v2704 = vmul.f32 %v2626, %v720
    %v2705 = vmul.f32 %v2629, %v720
    %v2706 = vmul.f32 %v2632, %v720
    %v2707 = vmul.f32 %v2635, %v720
    %v2708 = vmul.f32 %v2638, %v720
    %v2709 = vmul.f32 %v2641, %v720
    %v2710 = vmul.f32 %v2644, %v720
    %v2711 = vmul.f32 %v2647, %v720
    %v2712 = vmul.f32 %v2650, %v720
    %v2713 = vmul.f32 %v2653, %v720
    %v2714 = vmul.f32 %v2656, %v720
    %v2715 = vmul.f32 %v2659, %v720
    %v2716 = vmul.f32 %v2662, %v720
    %v2717 = vmul.f32 %v2665, %v720
    %v2718 = vmul.f32 %v2668, %v720
    %v2719 = vmul.f32 %v2671, %v720
    %v2720 = vmul.f32 %v2674, %v720
    %v2721 = vmul.f32 %v2677, %v720
    %v2722 = vmul.f32 %v2680, %v720
    %v2723 = vmul.f32 %v2683, %v720
    %v2724 = vmul.f32 %v2686, %v720
    %v2725 = vmul.f32 %v2689, %v720
    %v2726 = vmul.f32 %v2692, %v720
    %v2727 = vmul.f32 %v2695, %v720
    %v2728 = vadd.f32 %v2696, %v1904
    %v2729 = vadd.f32 %v2697, %v1905
    %v2730 = vadd.f32 %v2698, %v1906
    %v2731 = vadd.f32 %v2699, %v1907
    %v2732 = vadd.f32 %v2700, %v1908
    %v2733 = vadd.f32 %v2701, %v1909
    %v2734 = vadd.f32 %v2702, %v1910
    %v2735 = vadd.f32 %v2703, %v1911
    %v2736 = vadd.f32 %v2704, %v1912
    %v2737 = vadd.f32 %v2705, %v1913
    %v2738 = vadd.f32 %v2706, %v1914
    %v2739 = vadd.f32 %v2707, %v1915
    %v2740 = vadd.f32 %v2708, %v1916
    %v2741 = vadd.f32 %v2709, %v1917
    %v2742 = vadd.f32 %v2710, %v1918
    %v2743 = vadd.f32 %v2711, %v1919
    %v2744 = vadd.f32 %v2712, %v1920
    %v2745 = vadd.f32 %v2713, %v1921
    %v2746 = vadd.f32 %v2714, %v1922
    %v2747 = vadd.f32 %v2715, %v1923
    %v2748 = vadd.f32 %v2716, %v1924
    %v2749 = vadd.f32 %v2717, %v1925
    %v2750 = vadd.f32 %v2718, %v1926
    %v2751 = vadd.f32 %v2719, %v1927
    %v2752 = vadd.f32 %v2720, %v1928
    %v2753 = vadd.f32 %v2721, %v1929
    %v2754 = vadd.f32 %v2722, %v1930
    %v2755 = vadd.f32 %v2723, %v1931
    %v2756 = vadd.f32 %v2724, %v1932
    %v2757 = vadd.f32 %v2725, %v1933
    %v2758 = vadd.f32 %v2726, %v1934
    %v2759 = vadd.f32 %v2727, %v1935
    %v2760 = vxor.u32 %v2728, 2147483648
    %v2761 = vxor.u32 %v2729, 2147483648
    %v2762 = vxor.u32 %v2730, 2147483648
    %v2763 = vxor.u32 %v2731, 2147483648
    %v2764 = vxor.u32 %v2732, 2147483648
    %v2765 = vxor.u32 %v2733, 2147483648
    %v2766 = vxor.u32 %v2734, 2147483648
    %v2767 = vxor.u32 %v2735, 2147483648
    %v2768 = vxor.u32 %v2736, 2147483648
    %v2769 = vxor.u32 %v2737, 2147483648
    %v2770 = vxor.u32 %v2738, 2147483648
    %v2771 = vxor.u32 %v2739, 2147483648
    %v2772 = vxor.u32 %v2740, 2147483648
    %v2773 = vxor.u32 %v2741, 2147483648
    %v2774 = vxor.u32 %v2742, 2147483648
    %v2775 = vxor.u32 %v2743, 2147483648
    %v2776 = vxor.u32 %v2744, 2147483648
    %v2777 = vxor.u32 %v2745, 2147483648
    %v2778 = vxor.u32 %v2746, 2147483648
    %v2779 = vxor.u32 %v2747, 2147483648
    %v2780 = vxor.u32 %v2748, 2147483648
    %v2781 = vxor.u32 %v2749, 2147483648
    %v2782 = vxor.u32 %v2750, 2147483648
    %v2783 = vxor.u32 %v2751, 2147483648
    %v2784 = vxor.u32 %v2752, 2147483648
    %v2785 = vxor.u32 %v2753, 2147483648
    %v2786 = vxor.u32 %v2754, 2147483648
    %v2787 = vxor.u32 %v2755, 2147483648
    %v2788 = vxor.u32 %v2756, 2147483648
    %v2789 = vxor.u32 %v2757, 2147483648
    %v2790 = vxor.u32 %v2758, 2147483648
    %v2791 = vxor.u32 %v2759, 2147483648
    %v2792 = vmul.f32 %v2760, 1.442695
    %v2793 = vpow.pop %v2792
    %v2794 = vmul.f32 %v2761, 1.442695
    %v2795 = vpow.pop %v2794
    %v2796 = vmul.f32 %v2762, 1.442695
    %v2797 = vpow.pop %v2796
    %v2798 = vmul.f32 %v2763, 1.442695
    %v2799 = vpow.pop %v2798
    %v2800 = vmul.f32 %v2764, 1.442695
    %v2801 = vpow.pop %v2800
    %v2802 = vmul.f32 %v2765, 1.442695
    %v2803 = vpow.pop %v2802
    %v2804 = vmul.f32 %v2766, 1.442695
    %v2805 = vpow.pop %v2804
    %v2806 = vmul.f32 %v2767, 1.442695
    %v2807 = vpow.pop %v2806
    %v2808 = vmul.f32 %v2768, 1.442695
    %v2809 = vpow.pop %v2808
    %v2810 = vmul.f32 %v2769, 1.442695
    %v2811 = vpow.pop %v2810
    %v2812 = vmul.f32 %v2770, 1.442695
    %v2813 = vpow.pop %v2812
    %v2814 = vmul.f32 %v2771, 1.442695
    %v2815 = vpow.pop %v2814
    %v2816 = vmul.f32 %v2772, 1.442695
    %v2817 = vpow.pop %v2816
    %v2818 = vmul.f32 %v2773, 1.442695
    %v2819 = vpow.pop %v2818
    %v2820 = vmul.f32 %v2774, 1.442695
    %v2821 = vpow.pop %v2820
    %v2822 = vmul.f32 %v2775, 1.442695
    %v2823 = vpow.pop %v2822
    %v2824 = vmul.f32 %v2776, 1.442695
    %v2825 = vpow.pop %v2824
    %v2826 = vmul.f32 %v2777, 1.442695
    %v2827 = vpow.pop %v2826
    %v2828 = vmul.f32 %v2778, 1.442695
    %v2829 = vpow.pop %v2828
    %v2830 = vmul.f32 %v2779, 1.442695
    %v2831 = vpow.pop %v2830
    %v2832 = vmul.f32 %v2780, 1.442695
    %v2833 = vpow.pop %v2832
    %v2834 = vmul.f32 %v2781, 1.442695
    %v2835 = vpow.pop %v2834
    %v2836 = vmul.f32 %v2782, 1.442695
    %v2837 = vpow.pop %v2836
    %v2838 = vmul.f32 %v2783, 1.442695
    %v2839 = vpow.pop %v2838
    %v2840 = vmul.f32 %v2784, 1.442695
    %v2841 = vpow.pop %v2840
    %v2842 = vmul.f32 %v2785, 1.442695
    %v2843 = vpow.pop %v2842
    %v2844 = vmul.f32 %v2786, 1.442695
    %v2845 = vpow.pop %v2844
    %v2846 = vmul.f32 %v2787, 1.442695
    %v2847 = vpow.pop %v2846
    %v2848 = vmul.f32 %v2788, 1.442695
    %v2849 = vpow.pop %v2848
    %v2850 = vmul.f32 %v2789, 1.442695
    %v2851 = vpow.pop %v2850
    %v2852 = vmul.f32 %v2790, 1.442695
    %v2853 = vpow.pop %v2852
    %v2854 = vmul.f32 %v2791, 1.442695
    %v2855 = vpow.pop %v2854
    %v2856 = vadd.f32 %v2793, 1.0
    %v2857 = vadd.f32 %v2795, 1.0
    %v2858 = vadd.f32 %v2797, 1.0
    %v2859 = vadd.f32 %v2799, 1.0
    %v2860 = vadd.f32 %v2801, 1.0
    %v2861 = vadd.f32 %v2803, 1.0
    %v2862 = vadd.f32 %v2805, 1.0
    %v2863 = vadd.f32 %v2807, 1.0
    %v2864 = vadd.f32 %v2809, 1.0
    %v2865 = vadd.f32 %v2811, 1.0
    %v2866 = vadd.f32 %v2813, 1.0
    %v2867 = vadd.f32 %v2815, 1.0
    %v2868 = vadd.f32 %v2817, 1.0
    %v2869 = vadd.f32 %v2819, 1.0
    %v2870 = vadd.f32 %v2821, 1.0
    %v2871 = vadd.f32 %v2823, 1.0
    %v2872 = vadd.f32 %v2825, 1.0
    %v2873 = vadd.f32 %v2827, 1.0
    %v2874 = vadd.f32 %v2829, 1.0
    %v2875 = vadd.f32 %v2831, 1.0
    %v2876 = vadd.f32 %v2833, 1.0
    %v2877 = vadd.f32 %v2835, 1.0
    %v2878 = vadd.f32 %v2837, 1.0
    %v2879 = vadd.f32 %v2839, 1.0
    %v2880 = vadd.f32 %v2841, 1.0
    %v2881 = vadd.f32 %v2843, 1.0
    %v2882 = vadd.f32 %v2845, 1.0
    %v2883 = vadd.f32 %v2847, 1.0
    %v2884 = vadd.f32 %v2849, 1.0
    %v2885 = vadd.f32 %v2851, 1.0
    %v2886 = vadd.f32 %v2853, 1.0
    %v2887 = vadd.f32 %v2855, 1.0
    %v2888 = vrcp.pop %v2856
    %v2889 = vmul.f32 1.0, %v2888
    %v2890 = vrcp.pop %v2857
    %v2891 = vmul.f32 1.0, %v2890
    %v2892 = vrcp.pop %v2858
    %v2893 = vmul.f32 1.0, %v2892
    %v2894 = vrcp.pop %v2859
    %v2895 = vmul.f32 1.0, %v2894
    %v2896 = vrcp.pop %v2860
    %v2897 = vmul.f32 1.0, %v2896
    %v2898 = vrcp.pop %v2861
    %v2899 = vmul.f32 1.0, %v2898
    %v2900 = vrcp.pop %v2862
    %v2901 = vmul.f32 1.0, %v2900
    %v2902 = vrcp.pop %v2863
    %v2903 = vmul.f32 1.0, %v2902
    %v2904 = vrcp.pop %v2864
    %v2905 = vmul.f32 1.0, %v2904
    %v2906 = vrcp.pop %v2865
    %v2907 = vmul.f32 1.0, %v2906
    %v2908 = vrcp.pop %v2866
    %v2909 = vmul.f32 1.0, %v2908
    %v2910 = vrcp.pop %v2867
    %v2911 = vmul.f32 1.0, %v2910
    %v2912 = vrcp.pop %v2868
    %v2913 = vmul.f32 1.0, %v2912
    %v2914 = vrcp.pop %v2869
    %v2915 = vmul.f32 1.0, %v2914
    %v2916 = vrcp.pop %v2870
    %v2917 = vmul.f32 1.0, %v2916
    %v2918 = vrcp.pop %v2871
    %v2919 = vmul.f32 1.0, %v2918
    %v2920 = vrcp.pop %v2872
    %v2921 = vmul.f32 1.0, %v2920
    %v2922 = vrcp.pop %v2873
    %v2923 = vmul.f32 1.0, %v2922
    %v2924 = vrcp.pop %v2874
    %v2925 = vmul.f32 1.0, %v2924
    %v2926 = vrcp.pop %v2875
    %v2927 = vmul.f32 1.0, %v2926
    %v2928 = vrcp.pop %v2876
    %v2929 = vmul.f32 1.0, %v2928
    %v2930 = vrcp.pop %v2877
    %v2931 = vmul.f32 1.0, %v2930
    %v2932 = vrcp.pop %v2878
    %v2933 = vmul.f32 1.0, %v2932
    %v2934 = vrcp.pop %v2879
    %v2935 = vmul.f32 1.0, %v2934
    %v2936 = vrcp.pop %v2880
    %v2937 = vmul.f32 1.0, %v2936
    %v2938 = vrcp.pop %v2881
    %v2939 = vmul.f32 1.0, %v2938
    %v2940 = vrcp.pop %v2882
    %v2941 = vmul.f32 1.0, %v2940
    %v2942 = vrcp.pop %v2883
    %v2943 = vmul.f32 1.0, %v2942
    %v2944 = vrcp.pop %v2884
    %v2945 = vmul.f32 1.0, %v2944
    %v2946 = vrcp.pop %v2885
    %v2947 = vmul.f32 1.0, %v2946
    %v2948 = vrcp.pop %v2886
    %v2949 = vmul.f32 1.0, %v2948
    %v2950 = vrcp.pop %v2887
    %v2951 = vmul.f32 1.0, %v2950
    %2953 = vset.pattern.permute.xlu0 0
    %2954 = vperm.xlu0 %2953, %v2889
    %v2955 = vpop.permute.xlu0 %2954
    %2958 = vset.pattern.permute.xlu0 0
    %2959 = vperm.xlu0 %2958, %v2891
    %v2960 = vpop.permute.xlu0 %2959
    %2963 = vset.pattern.permute.xlu0 0
    %2964 = vperm.xlu0 %2963, %v2893
    %v2965 = vpop.permute.xlu0 %2964
    %2968 = vset.pattern.permute.xlu0 0
    %2969 = vperm.xlu0 %2968, %v2895
    %v2970 = vpop.permute.xlu0 %2969
    %2973 = vset.pattern.permute.xlu0 0
    %2974 = vperm.xlu0 %2973, %v2897
    %v2975 = vpop.permute.xlu0 %2974
    %2978 = vset.pattern.permute.xlu0 0
    %2979 = vperm.xlu0 %2978, %v2899
    %v2980 = vpop.permute.xlu0 %2979
    %2983 = vset.pattern.permute.xlu0 0
    %2984 = vperm.xlu0 %2983, %v2901
    %v2985 = vpop.permute.xlu0 %2984
    %2988 = vset.pattern.permute.xlu0 0
    %2989 = vperm.xlu0 %2988, %v2903
    %v2990 = vpop.permute.xlu0 %2989
    %2993 = vset.pattern.permute.xlu0 0
    %2994 = vperm.xlu0 %2993, %v2905
    %v2995 = vpop.permute.xlu0 %2994
    %2998 = vset.pattern.permute.xlu0 0
    %2999 = vperm.xlu0 %2998, %v2907
    %v3000 = vpop.permute.xlu0 %2999
    %3003 = vset.pattern.permute.xlu0 0
    %3004 = vperm.xlu0 %3003, %v2909
    %v3005 = vpop.permute.xlu0 %3004
    %3008 = vset.pattern.permute.xlu0 0
    %3009 = vperm.xlu0 %3008, %v2911
    %v3010 = vpop.permute.xlu0 %3009
    %3013 = vset.pattern.permute.xlu0 0
    %3014 = vperm.xlu0 %3013, %v2913
    %v3015 = vpop.permute.xlu0 %3014
    %3018 = vset.pattern.permute.xlu0 0
    %3019 = vperm.xlu0 %3018, %v2915
    %v3020 = vpop.permute.xlu0 %3019
    %3023 = vset.pattern.permute.xlu0 0
    %3024 = vperm.xlu0 %3023, %v2917
    %v3025 = vpop.permute.xlu0 %3024
    %3028 = vset.pattern.permute.xlu0 0
    %3029 = vperm.xlu0 %3028, %v2919
    %v3030 = vpop.permute.xlu0 %3029
    %3033 = vset.pattern.permute.xlu0 0
    %3034 = vperm.xlu0 %3033, %v2921
    %v3035 = vpop.permute.xlu0 %3034
    %3038 = vset.pattern.permute.xlu0 0
    %3039 = vperm.xlu0 %3038, %v2923
    %v3040 = vpop.permute.xlu0 %3039
    %3043 = vset.pattern.permute.xlu0 0
    %3044 = vperm.xlu0 %3043, %v2925
    %v3045 = vpop.permute.xlu0 %3044
    %3048 = vset.pattern.permute.xlu0 0
    %3049 = vperm.xlu0 %3048, %v2927
    %v3050 = vpop.permute.xlu0 %3049
    %3053 = vset.pattern.permute.xlu0 0
    %3054 = vperm.xlu0 %3053, %v2929
    %v3055 = vpop.permute.xlu0 %3054
    %3058 = vset.pattern.permute.xlu0 0
    %3059 = vperm.xlu0 %3058, %v2931
    %v3060 = vpop.permute.xlu0 %3059
    %3063 = vset.pattern.permute.xlu0 0
    %3064 = vperm.xlu0 %3063, %v2933
    %v3065 = vpop.permute.xlu0 %3064
    %3068 = vset.pattern.permute.xlu0 0
    %3069 = vperm.xlu0 %3068, %v2935
    %v3070 = vpop.permute.xlu0 %3069
    %3073 = vset.pattern.permute.xlu0 0
    %3074 = vperm.xlu0 %3073, %v2937
    %v3075 = vpop.permute.xlu0 %3074
    %3078 = vset.pattern.permute.xlu0 0
    %3079 = vperm.xlu0 %3078, %v2939
    %v3080 = vpop.permute.xlu0 %3079
    %3083 = vset.pattern.permute.xlu0 0
    %3084 = vperm.xlu0 %3083, %v2941
    %v3085 = vpop.permute.xlu0 %3084
    %3088 = vset.pattern.permute.xlu0 0
    %3089 = vperm.xlu0 %3088, %v2943
    %v3090 = vpop.permute.xlu0 %3089
    %3093 = vset.pattern.permute.xlu0 0
    %3094 = vperm.xlu0 %3093, %v2945
    %v3095 = vpop.permute.xlu0 %3094
    %3098 = vset.pattern.permute.xlu0 0
    %3099 = vperm.xlu0 %3098, %v2947
    %v3100 = vpop.permute.xlu0 %3099
    %3103 = vset.pattern.permute.xlu0 0
    %3104 = vperm.xlu0 %3103, %v2949
    %v3105 = vpop.permute.xlu0 %3104
    %3108 = vset.pattern.permute.xlu0 0
    %3109 = vperm.xlu0 %3108, %v2951
    %v3110 = vpop.permute.xlu0 %3109
    %v3112 = vmul.f32 %v2955, %v2398
    %v3113 = vmul.f32 %v2955, %v2400
    %v3114 = vmul.f32 %v2960, %v2404
    %v3115 = vmul.f32 %v2960, %v2406
    %v3116 = vmul.f32 %v2965, %v2410
    %v3117 = vmul.f32 %v2965, %v2412
    %v3118 = vmul.f32 %v2970, %v2416
    %v3119 = vmul.f32 %v2970, %v2418
    %v3120 = vmul.f32 %v2975, %v2422
    %v3121 = vmul.f32 %v2975, %v2424
    %v3122 = vmul.f32 %v2980, %v2428
    %v3123 = vmul.f32 %v2980, %v2430
    %v3124 = vmul.f32 %v2985, %v2434
    %v3125 = vmul.f32 %v2985, %v2436
    %v3126 = vmul.f32 %v2990, %v2440
    %v3127 = vmul.f32 %v2990, %v2442
    %v3128 = vmul.f32 %v2995, %v2446
    %v3129 = vmul.f32 %v2995, %v2448
    %v3130 = vmul.f32 %v3000, %v2452
    %v3131 = vmul.f32 %v3000, %v2454
    %v3132 = vmul.f32 %v3005, %v2458
    %v3133 = vmul.f32 %v3005, %v2460
    %v3134 = vmul.f32 %v3010, %v2464
    %v3135 = vmul.f32 %v3010, %v2466
    %v3136 = vmul.f32 %v3015, %v2470
    %v3137 = vmul.f32 %v3015, %v2472
    %v3138 = vmul.f32 %v3020, %v2476
    %v3139 = vmul.f32 %v3020, %v2478
    %v3140 = vmul.f32 %v3025, %v2482
    %v3141 = vmul.f32 %v3025, %v2484
    %v3142 = vmul.f32 %v3030, %v2488
    %v3143 = vmul.f32 %v3030, %v2490
    %v3144 = vmul.f32 %v3035, %v2494
    %v3145 = vmul.f32 %v3035, %v2496
    %v3146 = vmul.f32 %v3040, %v2500
    %v3147 = vmul.f32 %v3040, %v2502
    %v3148 = vmul.f32 %v3045, %v2506
    %v3149 = vmul.f32 %v3045, %v2508
    %v3150 = vmul.f32 %v3050, %v2512
    %v3151 = vmul.f32 %v3050, %v2514
    %v3152 = vmul.f32 %v3055, %v2518
    %v3153 = vmul.f32 %v3055, %v2520
    %v3154 = vmul.f32 %v3060, %v2524
    %v3155 = vmul.f32 %v3060, %v2526
    %v3156 = vmul.f32 %v3065, %v2530
    %v3157 = vmul.f32 %v3065, %v2532
    %v3158 = vmul.f32 %v3070, %v2536
    %v3159 = vmul.f32 %v3070, %v2538
    %v3160 = vmul.f32 %v3075, %v2542
    %v3161 = vmul.f32 %v3075, %v2544
    %v3162 = vmul.f32 %v3080, %v2548
    %v3163 = vmul.f32 %v3080, %v2550
    %v3164 = vmul.f32 %v3085, %v2554
    %v3165 = vmul.f32 %v3085, %v2556
    %v3166 = vmul.f32 %v3090, %v2560
    %v3167 = vmul.f32 %v3090, %v2562
    %v3168 = vmul.f32 %v3095, %v2566
    %v3169 = vmul.f32 %v3095, %v2568
    %v3170 = vmul.f32 %v3100, %v2572
    %v3171 = vmul.f32 %v3100, %v2574
    %v3172 = vmul.f32 %v3105, %v2578
    %v3173 = vmul.f32 %v3105, %v2580
    %v3174 = vmul.f32 %v3110, %v2584
    %v3175 = vmul.f32 %v3110, %v2586
    %3176 = vmatprep.subr.mxu0 %v3113
    %3177 = vmatpush1.msra.mxu0 %v3112
    %3178 = vmatprep.subr.mxu0 %v3115
    %3179 = vmatpush1.msra.mxu0 %v3114
    %3180 = vmatprep.subr.mxu0 %v3117
    %3181 = vmatpush1.msra.mxu0 %v3116
    %3182 = vmatprep.subr.mxu0 %v3119
    %3183 = vmatpush1.msra.mxu0 %v3118
    %3184 = vmatprep.subr.mxu0 %v3121
    %3185 = vmatpush1.msra.mxu0 %v3120
    %3186 = vmatprep.subr.mxu0 %v3123
    %3187 = vmatpush1.msra.mxu0 %v3122
    %3188 = vmatprep.subr.mxu0 %v3125
    %3189 = vmatpush1.msra.mxu0 %v3124
    %3190 = vmatprep.subr.mxu0 %v3127
    %3191 = vmatpush1.msra.mxu0 %v3126
    %3192 = vmatprep.subr.mxu0 %v3129
    %3193 = vmatpush1.msra.mxu0 %v3128
    %3194 = vmatprep.subr.mxu0 %v3131
    %3195 = vmatpush1.msra.mxu0 %v3130
    %3196 = vmatprep.subr.mxu0 %v3133
    %3197 = vmatpush1.msra.mxu0 %v3132
    %3198 = vmatprep.subr.mxu0 %v3135
    %3199 = vmatpush1.msra.mxu0 %v3134
    %3200 = vmatprep.subr.mxu0 %v3137
    %3201 = vmatpush1.msra.mxu0 %v3136
    %3202 = vmatprep.subr.mxu0 %v3139
    %3203 = vmatpush1.msra.mxu0 %v3138
    %3204 = vmatprep.subr.mxu0 %v3141
    %3205 = vmatpush1.msra.mxu0 %v3140
    %3206 = vmatprep.subr.mxu0 %v3143
    %3207 = vmatpush1.msra.mxu0 %v3142
    %3208 = vmatprep.subr.mxu0 %v3145
    %3209 = vmatpush1.msra.mxu0 %v3144
    %3210 = vmatprep.subr.mxu0 %v3147
    %3211 = vmatpush1.msra.mxu0 %v3146
    %3212 = vmatprep.subr.mxu0 %v3149
    %3213 = vmatpush1.msra.mxu0 %v3148
    %3214 = vmatprep.subr.mxu0 %v3151
    %3215 = vmatpush1.msra.mxu0 %v3150
    %3216 = vmatprep.subr.mxu0 %v3153
    %3217 = vmatpush1.msra.mxu0 %v3152
    %3218 = vmatprep.subr.mxu0 %v3155
    %3219 = vmatpush1.msra.mxu0 %v3154
    %3220 = vmatprep.subr.mxu0 %v3157
    %3221 = vmatpush1.msra.mxu0 %v3156
    %3222 = vmatprep.subr.mxu0 %v3159
    %3223 = vmatpush1.msra.mxu0 %v3158
    %3224 = vmatprep.subr.mxu0 %v3161
    %3225 = vmatpush1.msra.mxu0 %v3160
    %3226 = vmatprep.subr.mxu0 %v3163
    %3227 = vmatpush1.msra.mxu0 %v3162
    %3228 = vmatprep.subr.mxu0 %v3165
    %3229 = vmatpush1.msra.mxu0 %v3164
    %3230 = vmatprep.subr.mxu0 %v3167
    %3231 = vmatpush1.msra.mxu0 %v3166
    %3232 = vmatprep.subr.mxu0 %v3169
    %3233 = vmatpush1.msra.mxu0 %v3168
    %3234 = vmatprep.subr.mxu0 %v3171
    %3235 = vmatpush1.msra.mxu0 %v3170
    %3236 = vmatprep.subr.mxu0 %v3173
    %3237 = vmatpush1.msra.mxu0 %v3172
    %3238 = vmatprep.subr.mxu0 %v3175
    %3239 = vmatpush1.msra.mxu0 %v3174
    %3240 = vmatprep.mubr.f32.mxu0 %v1937
    %3241 = vmatmul.mubr.f32.gmra.mrb[0].mxu0 %v1936
    %v3242 = vpop.f32.mrb[0].mxu0
    %v3243 = vadd.f32 %v2590, %v3242
    %v3244 = vpop.f32.mrb[0].mxu0
    %v3245 = vadd.f32 %v2592, %v3244
    %3246 = vmatprep.mubr.f32.mxu0 %v1939
    %3247 = vmatmul.mubr.f32.gmra.mrb[0].mxu0 %v1938
    %v3248 = vpop.f32.mrb[0].mxu0
    %v3249 = vadd.f32 %v2596, %v3248
    %v3250 = vpop.f32.mrb[0].mxu0
    %v3251 = vadd.f32 %v2598, %v3250
    %3252 = vdwg.mxu0
    %v3253 = vmul.f32 %v1053, %v3243
    %v3254 = vmul.f32 %v1057, %v3245
    %v3255 = vmul.f32 %v1067, %v3249
    %v3256 = vmul.f32 %v1071, %v3251
    %v3257 = vadd.f32 %v3253, %v3255
    %v3258 = vadd.f32 %v3254, %v3256
    %3259 = vmatprep.subr.mxu0 %v1835
    %3260 = vmatpush1.msra.mxu0 %v1834
    %3261 = vmatprep.subr.mxu0 %v1837
    %3262 = vmatpush1.msra.mxu0 %v1836
    %3263 = vmatprep.subr.mxu0 0.0
    %3264 = vmatpush1.msra.mxu0 0.0
    %3265 = vmatprep.subr.mxu0 0.0
    %3266 = vmatpush1.msra.mxu0 0.0
    %3267 = vmatprep.subr.mxu0 0.0
    %3268 = vmatpush1.msra.mxu0 0.0
    %3269 = vmatprep.subr.mxu0 0.0
    %3270 = vmatpush1.msra.mxu0 0.0
    %3271 = vmatprep.subr.mxu0 0.0
    %3272 = vmatpush1.msra.mxu0 0.0
    %3273 = vmatprep.subr.mxu0 0.0
    %3274 = vmatpush1.msra.mxu0 0.0
    %3275 = vmatprep.subr.mxu0 0.0
    %3276 = vmatpush1.msra.mxu0 0.0
    %3277 = vmatprep.subr.mxu0 0.0
    %3278 = vmatpush1.msra.mxu0 0.0
    %3279 = vmatprep.subr.mxu0 0.0
    %3280 = vmatpush1.msra.mxu0 0.0
    %3281 = vmatprep.subr.mxu0 0.0
    %3282 = vmatpush1.msra.mxu0 0.0
    %3283 = vmatprep.subr.mxu0 0.0
    %3284 = vmatpush1.msra.mxu0 0.0
    %3285 = vmatprep.subr.mxu0 0.0
    %3286 = vmatpush1.msra.mxu0 0.0
    %3287 = vmatprep.subr.mxu0 0.0
    %3288 = vmatpush1.msra.mxu0 0.0
    %3289 = vmatprep.subr.mxu0 0.0
    %3290 = vmatpush1.msra.mxu0 0.0
    %3291 = vmatprep.subr.mxu0 0.0
    %3292 = vmatpush1.msra.mxu0 0.0
    %3293 = vmatprep.subr.mxu0 0.0
    %3294 = vmatpush1.msra.mxu0 0.0
    %3295 = vmatprep.subr.mxu0 0.0
    %3296 = vmatpush1.msra.mxu0 0.0
    %3297 = vmatprep.subr.mxu0 0.0
    %3298 = vmatpush1.msra.mxu0 0.0
    %3299 = vmatprep.subr.mxu0 0.0
    %3300 = vmatpush1.msra.mxu0 0.0
    %3301 = vmatprep.subr.mxu0 0.0
    %3302 = vmatpush1.msra.mxu0 0.0
    %3303 = vmatprep.subr.mxu0 0.0
    %3304 = vmatpush1.msra.mxu0 0.0
    %3305 = vmatprep.subr.mxu0 0.0
    %3306 = vmatpush1.msra.mxu0 0.0
    %3307 = vmatprep.subr.mxu0 0.0
    %3308 = vmatpush1.msra.mxu0 0.0
    %3309 = vmatprep.subr.mxu0 0.0
    %3310 = vmatpush1.msra.mxu0 0.0
    %3311 = vmatprep.subr.mxu0 0.0
    %3312 = vmatpush1.msra.mxu0 0.0
    %3313 = vmatprep.subr.mxu0 0.0
    %3314 = vmatpush1.msra.mxu0 0.0
    %3315 = vmatprep.subr.mxu0 0.0
    %3316 = vmatpush1.msra.mxu0 0.0
    %3317 = vmatprep.subr.mxu0 0.0
    %3318 = vmatpush1.msra.mxu0 0.0
    %3319 = vmatprep.subr.mxu0 0.0
    %3320 = vmatpush1.msra.mxu0 0.0
    %3321 = vmatprep.subr.mxu0 0.0
    %3322 = vmatpush1.msra.mxu0 0.0
    %3323 = vmatprep.mubr.f32.mxu0 0.0
    %3324 = vmatmul.mubr.f32.gmra.mrb[0].mxu0 %v1942
    %v3325 = vpop.f32.mrb[0].mxu0
    %v3326 = vadd.f32 0.0, %v3325
    %v3327 = vpop.f32.mrb[0].mxu0
    %v3328 = vadd.f32 0.0, %v3327
    %3329 = vmatprep.mubr.f32.mxu0 0.0
    %3330 = vmatmul.mubr.f32.gmra.mrb[0].mxu0 %v1945
    %v3331 = vpop.f32.mrb[0].mxu0
    %v3332 = vadd.f32 0.0, %v3331
    %v3333 = vpop.f32.mrb[0].mxu0
    %v3334 = vadd.f32 0.0, %v3333
    %3335 = vmatprep.mubr.f32.mxu0 0.0
    %3336 = vmatmul.mubr.f32.gmra.mrb[0].mxu0 %v1948
    %v3337 = vpop.f32.mrb[0].mxu0
    %v3338 = vadd.f32 0.0, %v3337
    %v3339 = vpop.f32.mrb[0].mxu0
    %v3340 = vadd.f32 0.0, %v3339
    %3341 = vmatprep.mubr.f32.mxu0 0.0
    %3342 = vmatmul.mubr.f32.gmra.mrb[0].mxu0 %v1951
    %v3343 = vpop.f32.mrb[0].mxu0
    %v3344 = vadd.f32 0.0, %v3343
    %v3345 = vpop.f32.mrb[0].mxu0
    %v3346 = vadd.f32 0.0, %v3345
    %3347 = vmatprep.mubr.f32.mxu0 0.0
    %3348 = vmatmul.mubr.f32.gmra.mrb[0].mxu0 %v1954
    %v3349 = vpop.f32.mrb[0].mxu0
    %v3350 = vadd.f32 0.0, %v3349
    %v3351 = vpop.f32.mrb[0].mxu0
    %v3352 = vadd.f32 0.0, %v3351
    %3353 = vmatprep.mubr.f32.mxu0 0.0
    %3354 = vmatmul.mubr.f32.gmra.mrb[0].mxu0 %v1957
    %v3355 = vpop.f32.mrb[0].mxu0
    %v3356 = vadd.f32 0.0, %v3355
    %v3357 = vpop.f32.mrb[0].mxu0
    %v3358 = vadd.f32 0.0, %v3357
    %3359 = vmatprep.mubr.f32.mxu0 0.0
    %3360 = vmatmul.mubr.f32.gmra.mrb[0].mxu0 %v1960
    %v3361 = vpop.f32.mrb[0].mxu0
    %v3362 = vadd.f32 0.0, %v3361
    %v3363 = vpop.f32.mrb[0].mxu0
    %v3364 = vadd.f32 0.0, %v3363
    %3365 = vmatprep.mubr.f32.mxu0 0.0
    %3366 = vmatmul.mubr.f32.gmra.mrb[0].mxu0 %v1963
    %v3367 = vpop.f32.mrb[0].mxu0
    %v3368 = vadd.f32 0.0, %v3367
    %v3369 = vpop.f32.mrb[0].mxu0
    %v3370 = vadd.f32 0.0, %v3369
    %3371 = vmatprep.mubr.f32.mxu0 0.0
    %3372 = vmatmul.mubr.f32.gmra.mrb[0].mxu0 %v1966
    %v3373 = vpop.f32.mrb[0].mxu0
    %v3374 = vadd.f32 0.0, %v3373
    %v3375 = vpop.f32.mrb[0].mxu0
    %v3376 = vadd.f32 0.0, %v3375
    %3377 = vmatprep.mubr.f32.mxu0 0.0
    %3378 = vmatmul.mubr.f32.gmra.mrb[0].mxu0 %v1969
    %v3379 = vpop.f32.mrb[0].mxu0
    %v3380 = vadd.f32 0.0, %v3379
    %v3381 = vpop.f32.mrb[0].mxu0
    %v3382 = vadd.f32 0.0, %v3381
    %3383 = vmatprep.mubr.f32.mxu0 0.0
    %3384 = vmatmul.mubr.f32.gmra.mrb[0].mxu0 %v1972
    %v3385 = vpop.f32.mrb[0].mxu0
    %v3386 = vadd.f32 0.0, %v3385
    %v3387 = vpop.f32.mrb[0].mxu0
    %v3388 = vadd.f32 0.0, %v3387
    %3389 = vmatprep.mubr.f32.mxu0 0.0
    %3390 = vmatmul.mubr.f32.gmra.mrb[0].mxu0 %v1975
    %v3391 = vpop.f32.mrb[0].mxu0
    %v3392 = vadd.f32 0.0, %v3391
    %v3393 = vpop.f32.mrb[0].mxu0
    %v3394 = vadd.f32 0.0, %v3393
    %3395 = vmatprep.mubr.f32.mxu0 0.0
    %3396 = vmatmul.mubr.f32.gmra.mrb[0].mxu0 %v1978
    %v3397 = vpop.f32.mrb[0].mxu0
    %v3398 = vadd.f32 0.0, %v3397
    %v3399 = vpop.f32.mrb[0].mxu0
    %v3400 = vadd.f32 0.0, %v3399
    %3401 = vmatprep.mubr.f32.mxu0 0.0
    %3402 = vmatmul.mubr.f32.gmra.mrb[0].mxu0 %v1981
    %v3403 = vpop.f32.mrb[0].mxu0
    %v3404 = vadd.f32 0.0, %v3403
    %v3405 = vpop.f32.mrb[0].mxu0
    %v3406 = vadd.f32 0.0, %v3405
    %3407 = vmatprep.mubr.f32.mxu0 0.0
    %3408 = vmatmul.mubr.f32.gmra.mrb[0].mxu0 %v1984
    %v3409 = vpop.f32.mrb[0].mxu0
    %v3410 = vadd.f32 0.0, %v3409
    %v3411 = vpop.f32.mrb[0].mxu0
    %v3412 = vadd.f32 0.0, %v3411
    %3413 = vmatprep.mubr.f32.mxu0 0.0
    %3414 = vmatmul.mubr.f32.gmra.mrb[0].mxu0 %v1987
    %v3415 = vpop.f32.mrb[0].mxu0
    %v3416 = vadd.f32 0.0, %v3415
    %v3417 = vpop.f32.mrb[0].mxu0
    %v3418 = vadd.f32 0.0, %v3417
    %3419 = vmatprep.mubr.f32.mxu0 0.0
    %3420 = vmatmul.mubr.f32.gmra.mrb[0].mxu0 %v1990
    %v3421 = vpop.f32.mrb[0].mxu0
    %v3422 = vadd.f32 0.0, %v3421
    %v3423 = vpop.f32.mrb[0].mxu0
    %v3424 = vadd.f32 0.0, %v3423
    %3425 = vmatprep.mubr.f32.mxu0 0.0
    %3426 = vmatmul.mubr.f32.gmra.mrb[0].mxu0 %v1993
    %v3427 = vpop.f32.mrb[0].mxu0
    %v3428 = vadd.f32 0.0, %v3427
    %v3429 = vpop.f32.mrb[0].mxu0
    %v3430 = vadd.f32 0.0, %v3429
    %3431 = vmatprep.mubr.f32.mxu0 0.0
    %3432 = vmatmul.mubr.f32.gmra.mrb[0].mxu0 %v1996
    %v3433 = vpop.f32.mrb[0].mxu0
    %v3434 = vadd.f32 0.0, %v3433
    %v3435 = vpop.f32.mrb[0].mxu0
    %v3436 = vadd.f32 0.0, %v3435
    %3437 = vmatprep.mubr.f32.mxu0 0.0
    %3438 = vmatmul.mubr.f32.gmra.mrb[0].mxu0 %v1999
    %v3439 = vpop.f32.mrb[0].mxu0
    %v3440 = vadd.f32 0.0, %v3439
    %v3441 = vpop.f32.mrb[0].mxu0
    %v3442 = vadd.f32 0.0, %v3441
    %3443 = vmatprep.mubr.f32.mxu0 0.0
    %3444 = vmatmul.mubr.f32.gmra.mrb[0].mxu0 %v2002
    %v3445 = vpop.f32.mrb[0].mxu0
    %v3446 = vadd.f32 0.0, %v3445
    %v3447 = vpop.f32.mrb[0].mxu0
    %v3448 = vadd.f32 0.0, %v3447
    %3449 = vmatprep.mubr.f32.mxu0 0.0
    %3450 = vmatmul.mubr.f32.gmra.mrb[0].mxu0 %v2005
    %v3451 = vpop.f32.mrb[0].mxu0
    %v3452 = vadd.f32 0.0, %v3451
    %v3453 = vpop.f32.mrb[0].mxu0
    %v3454 = vadd.f32 0.0, %v3453
    %3455 = vmatprep.mubr.f32.mxu0 0.0
    %3456 = vmatmul.mubr.f32.gmra.mrb[0].mxu0 %v2008
    %v3457 = vpop.f32.mrb[0].mxu0
    %v3458 = vadd.f32 0.0, %v3457
    %v3459 = vpop.f32.mrb[0].mxu0
    %v3460 = vadd.f32 0.0, %v3459
    %3461 = vmatprep.mubr.f32.mxu0 0.0
    %3462 = vmatmul.mubr.f32.gmra.mrb[0].mxu0 %v2011
    %v3463 = vpop.f32.mrb[0].mxu0
    %v3464 = vadd.f32 0.0, %v3463
    %v3465 = vpop.f32.mrb[0].mxu0
    %v3466 = vadd.f32 0.0, %v3465
    %3467 = vmatprep.mubr.f32.mxu0 0.0
    %3468 = vmatmul.mubr.f32.gmra.mrb[0].mxu0 %v2014
    %v3469 = vpop.f32.mrb[0].mxu0
    %v3470 = vadd.f32 0.0, %v3469
    %v3471 = vpop.f32.mrb[0].mxu0
    %v3472 = vadd.f32 0.0, %v3471
    %3473 = vmatprep.mubr.f32.mxu0 0.0
    %3474 = vmatmul.mubr.f32.gmra.mrb[0].mxu0 %v2017
    %v3475 = vpop.f32.mrb[0].mxu0
    %v3476 = vadd.f32 0.0, %v3475
    %v3477 = vpop.f32.mrb[0].mxu0
    %v3478 = vadd.f32 0.0, %v3477
    %3479 = vmatprep.mubr.f32.mxu0 0.0
    %3480 = vmatmul.mubr.f32.gmra.mrb[0].mxu0 %v2020
    %v3481 = vpop.f32.mrb[0].mxu0
    %v3482 = vadd.f32 0.0, %v3481
    %v3483 = vpop.f32.mrb[0].mxu0
    %v3484 = vadd.f32 0.0, %v3483
    %3485 = vmatprep.mubr.f32.mxu0 0.0
    %3486 = vmatmul.mubr.f32.gmra.mrb[0].mxu0 %v2023
    %v3487 = vpop.f32.mrb[0].mxu0
    %v3488 = vadd.f32 0.0, %v3487
    %v3489 = vpop.f32.mrb[0].mxu0
    %v3490 = vadd.f32 0.0, %v3489
    %3491 = vmatprep.mubr.f32.mxu0 0.0
    %3492 = vmatmul.mubr.f32.gmra.mrb[0].mxu0 %v2026
    %v3493 = vpop.f32.mrb[0].mxu0
    %v3494 = vadd.f32 0.0, %v3493
    %v3495 = vpop.f32.mrb[0].mxu0
    %v3496 = vadd.f32 0.0, %v3495
    %3497 = vmatprep.mubr.f32.mxu0 0.0
    %3498 = vmatmul.mubr.f32.gmra.mrb[0].mxu0 %v2029
    %v3499 = vpop.f32.mrb[0].mxu0
    %v3500 = vadd.f32 0.0, %v3499
    %v3501 = vpop.f32.mrb[0].mxu0
    %v3502 = vadd.f32 0.0, %v3501
    %3503 = vmatprep.mubr.f32.mxu0 0.0
    %3504 = vmatmul.mubr.f32.gmra.mrb[0].mxu0 %v2032
    %v3505 = vpop.f32.mrb[0].mxu0
    %v3506 = vadd.f32 0.0, %v3505
    %v3507 = vpop.f32.mrb[0].mxu0
    %v3508 = vadd.f32 0.0, %v3507
    %3509 = vmatprep.mubr.f32.mxu0 0.0
    %3510 = vmatmul.mubr.f32.gmra.mrb[0].mxu0 %v2035
    %v3511 = vpop.f32.mrb[0].mxu0
    %v3512 = vadd.f32 0.0, %v3511
    %v3513 = vpop.f32.mrb[0].mxu0
    %v3514 = vadd.f32 0.0, %v3513
    %3515 = vmatprep.mubr.f32.mxu0 0.0
    %3516 = vmatmul.mubr.f32.gmra.mrb[0].mxu0 %v2038
    %v3517 = vpop.f32.mrb[0].mxu0
    %v3518 = vadd.f32 0.0, %v3517
    %v3519 = vpop.f32.mrb[0].mxu0
    %v3520 = vadd.f32 0.0, %v3519
    %3521 = vmatprep.mubr.f32.mxu0 0.0
    %3522 = vmatmul.mubr.f32.gmra.mrb[0].mxu0 %v2041
    %v3523 = vpop.f32.mrb[0].mxu0
    %v3524 = vadd.f32 0.0, %v3523
    %v3525 = vpop.f32.mrb[0].mxu0
    %v3526 = vadd.f32 0.0, %v3525
    %3527 = vmatprep.mubr.f32.mxu0 0.0
    %3528 = vmatmul.mubr.f32.gmra.mrb[0].mxu0 %v2044
    %v3529 = vpop.f32.mrb[0].mxu0
    %v3530 = vadd.f32 0.0, %v3529
    %v3531 = vpop.f32.mrb[0].mxu0
    %v3532 = vadd.f32 0.0, %v3531
    %3533 = vmatprep.mubr.f32.mxu0 0.0
    %3534 = vmatmul.mubr.f32.gmra.mrb[0].mxu0 %v2047
    %v3535 = vpop.f32.mrb[0].mxu0
    %v3536 = vadd.f32 0.0, %v3535
    %v3537 = vpop.f32.mrb[0].mxu0
    %v3538 = vadd.f32 0.0, %v3537
    %3539 = vmatprep.mubr.f32.mxu0 0.0
    %3540 = vmatmul.mubr.f32.gmra.mrb[0].mxu0 %v2050
    %v3541 = vpop.f32.mrb[0].mxu0
    %v3542 = vadd.f32 0.0, %v3541
    %v3543 = vpop.f32.mrb[0].mxu0
    %v3544 = vadd.f32 0.0, %v3543
    %3545 = vmatprep.mubr.f32.mxu0 0.0
    %3546 = vmatmul.mubr.f32.gmra.mrb[0].mxu0 %v2053
    %v3547 = vpop.f32.mrb[0].mxu0
    %v3548 = vadd.f32 0.0, %v3547
    %v3549 = vpop.f32.mrb[0].mxu0
    %v3550 = vadd.f32 0.0, %v3549
    %3551 = vmatprep.mubr.f32.mxu0 0.0
    %3552 = vmatmul.mubr.f32.gmra.mrb[0].mxu0 %v2056
    %v3553 = vpop.f32.mrb[0].mxu0
    %v3554 = vadd.f32 0.0, %v3553
    %v3555 = vpop.f32.mrb[0].mxu0
    %v3556 = vadd.f32 0.0, %v3555
    %3557 = vmatprep.mubr.f32.mxu0 0.0
    %3558 = vmatmul.mubr.f32.gmra.mrb[0].mxu0 %v2059
    %v3559 = vpop.f32.mrb[0].mxu0
    %v3560 = vadd.f32 0.0, %v3559
    %v3561 = vpop.f32.mrb[0].mxu0
    %v3562 = vadd.f32 0.0, %v3561
    %3563 = vmatprep.mubr.f32.mxu0 0.0
    %3564 = vmatmul.mubr.f32.gmra.mrb[0].mxu0 %v2062
    %v3565 = vpop.f32.mrb[0].mxu0
    %v3566 = vadd.f32 0.0, %v3565
    %v3567 = vpop.f32.mrb[0].mxu0
    %v3568 = vadd.f32 0.0, %v3567
    %3569 = vmatprep.mubr.f32.mxu0 0.0
    %3570 = vmatmul.mubr.f32.gmra.mrb[0].mxu0 %v2065
    %v3571 = vpop.f32.mrb[0].mxu0
    %v3572 = vadd.f32 0.0, %v3571
    %v3573 = vpop.f32.mrb[0].mxu0
    %v3574 = vadd.f32 0.0, %v3573
    %3575 = vmatprep.mubr.f32.mxu0 0.0
    %3576 = vmatmul.mubr.f32.gmra.mrb[0].mxu0 %v2068
    %v3577 = vpop.f32.mrb[0].mxu0
    %v3578 = vadd.f32 0.0, %v3577
    %v3579 = vpop.f32.mrb[0].mxu0
    %v3580 = vadd.f32 0.0, %v3579
    %3581 = vmatprep.mubr.f32.mxu0 0.0
    %3582 = vmatmul.mubr.f32.gmra.mrb[0].mxu0 %v2071
    %v3583 = vpop.f32.mrb[0].mxu0
    %v3584 = vadd.f32 0.0, %v3583
    %v3585 = vpop.f32.mrb[0].mxu0
    %v3586 = vadd.f32 0.0, %v3585
    %3587 = vmatprep.mubr.f32.mxu0 0.0
    %3588 = vmatmul.mubr.f32.gmra.mrb[0].mxu0 %v2074
    %v3589 = vpop.f32.mrb[0].mxu0
    %v3590 = vadd.f32 0.0, %v3589
    %v3591 = vpop.f32.mrb[0].mxu0
    %v3592 = vadd.f32 0.0, %v3591
    %3593 = vmatprep.mubr.f32.mxu0 0.0
    %3594 = vmatmul.mubr.f32.gmra.mrb[0].mxu0 %v2077
    %v3595 = vpop.f32.mrb[0].mxu0
    %v3596 = vadd.f32 0.0, %v3595
    %v3597 = vpop.f32.mrb[0].mxu0
    %v3598 = vadd.f32 0.0, %v3597
    %3599 = vmatprep.mubr.f32.mxu0 0.0
    %3600 = vmatmul.mubr.f32.gmra.mrb[0].mxu0 %v2080
    %v3601 = vpop.f32.mrb[0].mxu0
    %v3602 = vadd.f32 0.0, %v3601
    %v3603 = vpop.f32.mrb[0].mxu0
    %v3604 = vadd.f32 0.0, %v3603
    %3605 = vmatprep.mubr.f32.mxu0 0.0
    %3606 = vmatmul.mubr.f32.gmra.mrb[0].mxu0 %v2083
    %v3607 = vpop.f32.mrb[0].mxu0
    %v3608 = vadd.f32 0.0, %v3607
    %v3609 = vpop.f32.mrb[0].mxu0
    %v3610 = vadd.f32 0.0, %v3609
    %3611 = vmatprep.mubr.f32.mxu0 0.0
    %3612 = vmatmul.mubr.f32.gmra.mrb[0].mxu0 %v2086
    %v3613 = vpop.f32.mrb[0].mxu0
    %v3614 = vadd.f32 0.0, %v3613
    %v3615 = vpop.f32.mrb[0].mxu0
    %v3616 = vadd.f32 0.0, %v3615
    %3617 = vmatprep.mubr.f32.mxu0 0.0
    %3618 = vmatmul.mubr.f32.gmra.mrb[0].mxu0 %v2089
    %v3619 = vpop.f32.mrb[0].mxu0
    %v3620 = vadd.f32 0.0, %v3619
    %v3621 = vpop.f32.mrb[0].mxu0
    %v3622 = vadd.f32 0.0, %v3621
    %3623 = vmatprep.mubr.f32.mxu0 0.0
    %3624 = vmatmul.mubr.f32.gmra.mrb[0].mxu0 %v2092
    %v3625 = vpop.f32.mrb[0].mxu0
    %v3626 = vadd.f32 0.0, %v3625
    %v3627 = vpop.f32.mrb[0].mxu0
    %v3628 = vadd.f32 0.0, %v3627
    %3629 = vmatprep.mubr.f32.mxu0 0.0
    %3630 = vmatmul.mubr.f32.gmra.mrb[0].mxu0 %v2095
    %v3631 = vpop.f32.mrb[0].mxu0
    %v3632 = vadd.f32 0.0, %v3631
    %v3633 = vpop.f32.mrb[0].mxu0
    %v3634 = vadd.f32 0.0, %v3633
    %3635 = vmatprep.mubr.f32.mxu0 0.0
    %3636 = vmatmul.mubr.f32.gmra.mrb[0].mxu0 %v2098
    %v3637 = vpop.f32.mrb[0].mxu0
    %v3638 = vadd.f32 0.0, %v3637
    %v3639 = vpop.f32.mrb[0].mxu0
    %v3640 = vadd.f32 0.0, %v3639
    %3641 = vmatprep.mubr.f32.mxu0 0.0
    %3642 = vmatmul.mubr.f32.gmra.mrb[0].mxu0 %v2101
    %v3643 = vpop.f32.mrb[0].mxu0
    %v3644 = vadd.f32 0.0, %v3643
    %v3645 = vpop.f32.mrb[0].mxu0
    %v3646 = vadd.f32 0.0, %v3645
    %3647 = vmatprep.mubr.f32.mxu0 0.0
    %3648 = vmatmul.mubr.f32.gmra.mrb[0].mxu0 %v2104
    %v3649 = vpop.f32.mrb[0].mxu0
    %v3650 = vadd.f32 0.0, %v3649
    %v3651 = vpop.f32.mrb[0].mxu0
    %v3652 = vadd.f32 0.0, %v3651
    %3653 = vmatprep.mubr.f32.mxu0 0.0
    %3654 = vmatmul.mubr.f32.gmra.mrb[0].mxu0 %v2107
    %v3655 = vpop.f32.mrb[0].mxu0
    %v3656 = vadd.f32 0.0, %v3655
    %v3657 = vpop.f32.mrb[0].mxu0
    %v3658 = vadd.f32 0.0, %v3657
    %3659 = vmatprep.mubr.f32.mxu0 0.0
    %3660 = vmatmul.mubr.f32.gmra.mrb[0].mxu0 %v2110
    %v3661 = vpop.f32.mrb[0].mxu0
    %v3662 = vadd.f32 0.0, %v3661
    %v3663 = vpop.f32.mrb[0].mxu0
    %v3664 = vadd.f32 0.0, %v3663
    %3665 = vmatprep.mubr.f32.mxu0 0.0
    %3666 = vmatmul.mubr.f32.gmra.mrb[0].mxu0 %v2113
    %v3667 = vpop.f32.mrb[0].mxu0
    %v3668 = vadd.f32 0.0, %v3667
    %v3669 = vpop.f32.mrb[0].mxu0
    %v3670 = vadd.f32 0.0, %v3669
    %3671 = vmatprep.mubr.f32.mxu0 0.0
    %3672 = vmatmul.mubr.f32.gmra.mrb[0].mxu0 %v2116
    %v3673 = vpop.f32.mrb[0].mxu0
    %v3674 = vadd.f32 0.0, %v3673
    %v3675 = vpop.f32.mrb[0].mxu0
    %v3676 = vadd.f32 0.0, %v3675
    %3677 = vmatprep.mubr.f32.mxu0 0.0
    %3678 = vmatmul.mubr.f32.gmra.mrb[0].mxu0 %v2119
    %v3679 = vpop.f32.mrb[0].mxu0
    %v3680 = vadd.f32 0.0, %v3679
    %v3681 = vpop.f32.mrb[0].mxu0
    %v3682 = vadd.f32 0.0, %v3681
    %3683 = vmatprep.mubr.f32.mxu0 0.0
    %3684 = vmatmul.mubr.f32.gmra.mrb[0].mxu0 %v2122
    %v3685 = vpop.f32.mrb[0].mxu0
    %v3686 = vadd.f32 0.0, %v3685
    %v3687 = vpop.f32.mrb[0].mxu0
    %v3688 = vadd.f32 0.0, %v3687
    %3689 = vmatprep.mubr.f32.mxu0 0.0
    %3690 = vmatmul.mubr.f32.gmra.mrb[0].mxu0 %v2125
    %v3691 = vpop.f32.mrb[0].mxu0
    %v3692 = vadd.f32 0.0, %v3691
    %v3693 = vpop.f32.mrb[0].mxu0
    %v3694 = vadd.f32 0.0, %v3693
    %3695 = vmatprep.mubr.f32.mxu0 0.0
    %3696 = vmatmul.mubr.f32.gmra.mrb[0].mxu0 %v2128
    %v3697 = vpop.f32.mrb[0].mxu0
    %v3698 = vadd.f32 0.0, %v3697
    %v3699 = vpop.f32.mrb[0].mxu0
    %v3700 = vadd.f32 0.0, %v3699
    %3701 = vmatprep.mubr.f32.mxu0 0.0
    %3702 = vmatmul.mubr.f32.gmra.mrb[0].mxu0 %v2131
    %v3703 = vpop.f32.mrb[0].mxu0
    %v3704 = vadd.f32 0.0, %v3703
    %v3705 = vpop.f32.mrb[0].mxu0
    %v3706 = vadd.f32 0.0, %v3705
    %3707 = vmatprep.mubr.f32.mxu0 0.0
    %3708 = vmatmul.mubr.f32.gmra.mrb[0].mxu0 %v2134
    %v3709 = vpop.f32.mrb[0].mxu0
    %v3710 = vadd.f32 0.0, %v3709
    %v3711 = vpop.f32.mrb[0].mxu0
    %v3712 = vadd.f32 0.0, %v3711
    %3713 = vmatprep.mubr.f32.mxu0 0.0
    %3714 = vmatmul.mubr.f32.gmra.mrb[0].mxu0 %v2137
    %v3715 = vpop.f32.mrb[0].mxu0
    %v3716 = vadd.f32 0.0, %v3715
    %v3717 = vpop.f32.mrb[0].mxu0
    %v3718 = vadd.f32 0.0, %v3717
    %3719 = vdwg.mxu0
    %v3720 = vadd.f32 %v3326, %v3328
    %3721 = vadd.xlane.f32.xlu0 %v3720
    %v3722 = vpop.xlane.xlu0 %3721
    %v3723 = vadd.f32 %v3332, %v3334
    %3724 = vadd.xlane.f32.xlu0 %v3723
    %v3725 = vpop.xlane.xlu0 %3724
    %v3726 = vadd.f32 %v3338, %v3340
    %3727 = vadd.xlane.f32.xlu0 %v3726
    %v3728 = vpop.xlane.xlu0 %3727
    %v3729 = vadd.f32 %v3344, %v3346
    %3730 = vadd.xlane.f32.xlu0 %v3729
    %v3731 = vpop.xlane.xlu0 %3730
    %v3732 = vadd.f32 %v3350, %v3352
    %3733 = vadd.xlane.f32.xlu0 %v3732
    %v3734 = vpop.xlane.xlu0 %3733
    %v3735 = vadd.f32 %v3356, %v3358
    %3736 = vadd.xlane.f32.xlu0 %v3735
    %v3737 = vpop.xlane.xlu0 %3736
    %v3738 = vadd.f32 %v3362, %v3364
    %3739 = vadd.xlane.f32.xlu0 %v3738
    %v3740 = vpop.xlane.xlu0 %3739
    %v3741 = vadd.f32 %v3368, %v3370
    %3742 = vadd.xlane.f32.xlu0 %v3741
    %v3743 = vpop.xlane.xlu0 %3742
    %v3744 = vadd.f32 %v3374, %v3376
    %3745 = vadd.xlane.f32.xlu0 %v3744
    %v3746 = vpop.xlane.xlu0 %3745
    %v3747 = vadd.f32 %v3380, %v3382
    %3748 = vadd.xlane.f32.xlu0 %v3747
    %v3749 = vpop.xlane.xlu0 %3748
    %v3750 = vadd.f32 %v3386, %v3388
    %3751 = vadd.xlane.f32.xlu0 %v3750
    %v3752 = vpop.xlane.xlu0 %3751
    %v3753 = vadd.f32 %v3392, %v3394
    %3754 = vadd.xlane.f32.xlu0 %v3753
    %v3755 = vpop.xlane.xlu0 %3754
    %v3756 = vadd.f32 %v3398, %v3400
    %3757 = vadd.xlane.f32.xlu0 %v3756
    %v3758 = vpop.xlane.xlu0 %3757
    %v3759 = vadd.f32 %v3404, %v3406
    %3760 = vadd.xlane.f32.xlu0 %v3759
    %v3761 = vpop.xlane.xlu0 %3760
    %v3762 = vadd.f32 %v3410, %v3412
    %3763 = vadd.xlane.f32.xlu0 %v3762
    %v3764 = vpop.xlane.xlu0 %3763
    %v3765 = vadd.f32 %v3416, %v3418
    %3766 = vadd.xlane.f32.xlu0 %v3765
    %v3767 = vpop.xlane.xlu0 %3766
    %v3768 = vadd.f32 %v3422, %v3424
    %3769 = vadd.xlane.f32.xlu0 %v3768
    %v3770 = vpop.xlane.xlu0 %3769
    %v3771 = vadd.f32 %v3428, %v3430
    %3772 = vadd.xlane.f32.xlu0 %v3771
    %v3773 = vpop.xlane.xlu0 %3772
    %v3774 = vadd.f32 %v3434, %v3436
    %3775 = vadd.xlane.f32.xlu0 %v3774
    %v3776 = vpop.xlane.xlu0 %3775
    %v3777 = vadd.f32 %v3440, %v3442
    %3778 = vadd.xlane.f32.xlu0 %v3777
    %v3779 = vpop.xlane.xlu0 %3778
    %v3780 = vadd.f32 %v3446, %v3448
    %3781 = vadd.xlane.f32.xlu0 %v3780
    %v3782 = vpop.xlane.xlu0 %3781
    %v3783 = vadd.f32 %v3452, %v3454
    %3784 = vadd.xlane.f32.xlu0 %v3783
    %v3785 = vpop.xlane.xlu0 %3784
    %v3786 = vadd.f32 %v3458, %v3460
    %3787 = vadd.xlane.f32.xlu0 %v3786
    %v3788 = vpop.xlane.xlu0 %3787
    %v3789 = vadd.f32 %v3464, %v3466
    %3790 = vadd.xlane.f32.xlu0 %v3789
    %v3791 = vpop.xlane.xlu0 %3790
    %v3792 = vadd.f32 %v3470, %v3472
    %3793 = vadd.xlane.f32.xlu0 %v3792
    %v3794 = vpop.xlane.xlu0 %3793
    %v3795 = vadd.f32 %v3476, %v3478
    %3796 = vadd.xlane.f32.xlu0 %v3795
    %v3797 = vpop.xlane.xlu0 %3796
    %v3798 = vadd.f32 %v3482, %v3484
    %3799 = vadd.xlane.f32.xlu0 %v3798
    %v3800 = vpop.xlane.xlu0 %3799
    %v3801 = vadd.f32 %v3488, %v3490
    %3802 = vadd.xlane.f32.xlu0 %v3801
    %v3803 = vpop.xlane.xlu0 %3802
    %v3804 = vadd.f32 %v3494, %v3496
    %3805 = vadd.xlane.f32.xlu0 %v3804
    %v3806 = vpop.xlane.xlu0 %3805
    %v3807 = vadd.f32 %v3500, %v3502
    %3808 = vadd.xlane.f32.xlu0 %v3807
    %v3809 = vpop.xlane.xlu0 %3808
    %v3810 = vadd.f32 %v3506, %v3508
    %3811 = vadd.xlane.f32.xlu0 %v3810
    %v3812 = vpop.xlane.xlu0 %3811
    %v3813 = vadd.f32 %v3512, %v3514
    %3814 = vadd.xlane.f32.xlu0 %v3813
    %v3815 = vpop.xlane.xlu0 %3814
    %v3816 = vmul.f32 %v3722, %v720
    %v3817 = vmul.f32 %v3725, %v720
    %v3818 = vmul.f32 %v3728, %v720
    %v3819 = vmul.f32 %v3731, %v720
    %v3820 = vmul.f32 %v3734, %v720
    %v3821 = vmul.f32 %v3737, %v720
    %v3822 = vmul.f32 %v3740, %v720
    %v3823 = vmul.f32 %v3743, %v720
    %v3824 = vmul.f32 %v3746, %v720
    %v3825 = vmul.f32 %v3749, %v720
    %v3826 = vmul.f32 %v3752, %v720
    %v3827 = vmul.f32 %v3755, %v720
    %v3828 = vmul.f32 %v3758, %v720
    %v3829 = vmul.f32 %v3761, %v720
    %v3830 = vmul.f32 %v3764, %v720
    %v3831 = vmul.f32 %v3767, %v720
    %v3832 = vmul.f32 %v3770, %v720
    %v3833 = vmul.f32 %v3773, %v720
    %v3834 = vmul.f32 %v3776, %v720
    %v3835 = vmul.f32 %v3779, %v720
    %v3836 = vmul.f32 %v3782, %v720
    %v3837 = vmul.f32 %v3785, %v720
    %v3838 = vmul.f32 %v3788, %v720
    %v3839 = vmul.f32 %v3791, %v720
    %v3840 = vmul.f32 %v3794, %v720
    %v3841 = vmul.f32 %v3797, %v720
    %v3842 = vmul.f32 %v3800, %v720
    %v3843 = vmul.f32 %v3803, %v720
    %v3844 = vmul.f32 %v3806, %v720
    %v3845 = vmul.f32 %v3809, %v720
    %v3846 = vmul.f32 %v3812, %v720
    %v3847 = vmul.f32 %v3815, %v720
    %v3848 = vadd.f32 %v3816, %v1904
    %v3849 = vadd.f32 %v3817, %v1905
    %v3850 = vadd.f32 %v3818, %v1906
    %v3851 = vadd.f32 %v3819, %v1907
    %v3852 = vadd.f32 %v3820, %v1908
    %v3853 = vadd.f32 %v3821, %v1909
    %v3854 = vadd.f32 %v3822, %v1910
    %v3855 = vadd.f32 %v3823, %v1911
    %v3856 = vadd.f32 %v3824, %v1912
    %v3857 = vadd.f32 %v3825, %v1913
    %v3858 = vadd.f32 %v3826, %v1914
    %v3859 = vadd.f32 %v3827, %v1915
    %v3860 = vadd.f32 %v3828, %v1916
    %v3861 = vadd.f32 %v3829, %v1917
    %v3862 = vadd.f32 %v3830, %v1918
    %v3863 = vadd.f32 %v3831, %v1919
    %v3864 = vadd.f32 %v3832, %v1920
    %v3865 = vadd.f32 %v3833, %v1921
    %v3866 = vadd.f32 %v3834, %v1922
    %v3867 = vadd.f32 %v3835, %v1923
    %v3868 = vadd.f32 %v3836, %v1924
    %v3869 = vadd.f32 %v3837, %v1925
    %v3870 = vadd.f32 %v3838, %v1926
    %v3871 = vadd.f32 %v3839, %v1927
    %v3872 = vadd.f32 %v3840, %v1928
    %v3873 = vadd.f32 %v3841, %v1929
    %v3874 = vadd.f32 %v3842, %v1930
    %v3875 = vadd.f32 %v3843, %v1931
    %v3876 = vadd.f32 %v3844, %v1932
    %v3877 = vadd.f32 %v3845, %v1933
    %v3878 = vadd.f32 %v3846, %v1934
    %v3879 = vadd.f32 %v3847, %v1935
    %v3880 = vxor.u32 %v3848, 2147483648
    %v3881 = vxor.u32 %v3849, 2147483648
    %v3882 = vxor.u32 %v3850, 2147483648
    %v3883 = vxor.u32 %v3851, 2147483648
    %v3884 = vxor.u32 %v3852, 2147483648
    %v3885 = vxor.u32 %v3853, 2147483648
    %v3886 = vxor.u32 %v3854, 2147483648
    %v3887 = vxor.u32 %v3855, 2147483648
    %v3888 = vxor.u32 %v3856, 2147483648
    %v3889 = vxor.u32 %v3857, 2147483648
    %v3890 = vxor.u32 %v3858, 2147483648
    %v3891 = vxor.u32 %v3859, 2147483648
    %v3892 = vxor.u32 %v3860, 2147483648
    %v3893 = vxor.u32 %v3861, 2147483648
    %v3894 = vxor.u32 %v3862, 2147483648
    %v3895 = vxor.u32 %v3863, 2147483648
    %v3896 = vxor.u32 %v3864, 2147483648
    %v3897 = vxor.u32 %v3865, 2147483648
    %v3898 = vxor.u32 %v3866, 2147483648
    %v3899 = vxor.u32 %v3867, 2147483648
    %v3900 = vxor.u32 %v3868, 2147483648
    %v3901 = vxor.u32 %v3869, 2147483648
    %v3902 = vxor.u32 %v3870, 2147483648
    %v3903 = vxor.u32 %v3871, 2147483648
    %v3904 = vxor.u32 %v3872, 2147483648
    %v3905 = vxor.u32 %v3873, 2147483648
    %v3906 = vxor.u32 %v3874, 2147483648
    %v3907 = vxor.u32 %v3875, 2147483648
    %v3908 = vxor.u32 %v3876, 2147483648
    %v3909 = vxor.u32 %v3877, 2147483648
    %v3910 = vxor.u32 %v3878, 2147483648
    %v3911 = vxor.u32 %v3879, 2147483648
    %v3912 = vmul.f32 %v3880, 1.442695
    %v3913 = vpow.pop %v3912
    %v3914 = vmul.f32 %v3881, 1.442695
    %v3915 = vpow.pop %v3914
    %v3916 = vmul.f32 %v3882, 1.442695
    %v3917 = vpow.pop %v3916
    %v3918 = vmul.f32 %v3883, 1.442695
    %v3919 = vpow.pop %v3918
    %v3920 = vmul.f32 %v3884, 1.442695
    %v3921 = vpow.pop %v3920
    %v3922 = vmul.f32 %v3885, 1.442695
    %v3923 = vpow.pop %v3922
    %v3924 = vmul.f32 %v3886, 1.442695
    %v3925 = vpow.pop %v3924
    %v3926 = vmul.f32 %v3887, 1.442695
    %v3927 = vpow.pop %v3926
    %v3928 = vmul.f32 %v3888, 1.442695
    %v3929 = vpow.pop %v3928
    %v3930 = vmul.f32 %v3889, 1.442695
    %v3931 = vpow.pop %v3930
    %v3932 = vmul.f32 %v3890, 1.442695
    %v3933 = vpow.pop %v3932
    %v3934 = vmul.f32 %v3891, 1.442695
    %v3935 = vpow.pop %v3934
    %v3936 = vmul.f32 %v3892, 1.442695
    %v3937 = vpow.pop %v3936
    %v3938 = vmul.f32 %v3893, 1.442695
    %v3939 = vpow.pop %v3938
    %v3940 = vmul.f32 %v3894, 1.442695
    %v3941 = vpow.pop %v3940
    %v3942 = vmul.f32 %v3895, 1.442695
    %v3943 = vpow.pop %v3942
    %v3944 = vmul.f32 %v3896, 1.442695
    %v3945 = vpow.pop %v3944
    %v3946 = vmul.f32 %v3897, 1.442695
    %v3947 = vpow.pop %v3946
    %v3948 = vmul.f32 %v3898, 1.442695
    %v3949 = vpow.pop %v3948
    %v3950 = vmul.f32 %v3899, 1.442695
    %v3951 = vpow.pop %v3950
    %v3952 = vmul.f32 %v3900, 1.442695
    %v3953 = vpow.pop %v3952
    %v3954 = vmul.f32 %v3901, 1.442695
    %v3955 = vpow.pop %v3954
    %v3956 = vmul.f32 %v3902, 1.442695
    %v3957 = vpow.pop %v3956
    %v3958 = vmul.f32 %v3903, 1.442695
    %v3959 = vpow.pop %v3958
    %v3960 = vmul.f32 %v3904, 1.442695
    %v3961 = vpow.pop %v3960
    %v3962 = vmul.f32 %v3905, 1.442695
    %v3963 = vpow.pop %v3962
    %v3964 = vmul.f32 %v3906, 1.442695
    %v3965 = vpow.pop %v3964
    %v3966 = vmul.f32 %v3907, 1.442695
    %v3967 = vpow.pop %v3966
    %v3968 = vmul.f32 %v3908, 1.442695
    %v3969 = vpow.pop %v3968
    %v3970 = vmul.f32 %v3909, 1.442695
    %v3971 = vpow.pop %v3970
    %v3972 = vmul.f32 %v3910, 1.442695
    %v3973 = vpow.pop %v3972
    %v3974 = vmul.f32 %v3911, 1.442695
    %v3975 = vpow.pop %v3974
    %v3976 = vadd.f32 %v3913, 1.0
    %v3977 = vadd.f32 %v3915, 1.0
    %v3978 = vadd.f32 %v3917, 1.0
    %v3979 = vadd.f32 %v3919, 1.0
    %v3980 = vadd.f32 %v3921, 1.0
    %v3981 = vadd.f32 %v3923, 1.0
    %v3982 = vadd.f32 %v3925, 1.0
    %v3983 = vadd.f32 %v3927, 1.0
    %v3984 = vadd.f32 %v3929, 1.0
    %v3985 = vadd.f32 %v3931, 1.0
    %v3986 = vadd.f32 %v3933, 1.0
    %v3987 = vadd.f32 %v3935, 1.0
    %v3988 = vadd.f32 %v3937, 1.0
    %v3989 = vadd.f32 %v3939, 1.0
    %v3990 = vadd.f32 %v3941, 1.0
    %v3991 = vadd.f32 %v3943, 1.0
    %v3992 = vadd.f32 %v3945, 1.0
    %v3993 = vadd.f32 %v3947, 1.0
    %v3994 = vadd.f32 %v3949, 1.0
    %v3995 = vadd.f32 %v3951, 1.0
    %v3996 = vadd.f32 %v3953, 1.0
    %v3997 = vadd.f32 %v3955, 1.0
    %v3998 = vadd.f32 %v3957, 1.0
    %v3999 = vadd.f32 %v3959, 1.0
    %v4000 = vadd.f32 %v3961, 1.0
    %v4001 = vadd.f32 %v3963, 1.0
    %v4002 = vadd.f32 %v3965, 1.0
    %v4003 = vadd.f32 %v3967, 1.0
    %v4004 = vadd.f32 %v3969, 1.0
    %v4005 = vadd.f32 %v3971, 1.0
    %v4006 = vadd.f32 %v3973, 1.0
    %v4007 = vadd.f32 %v3975, 1.0
    %v4008 = vrcp.pop %v3976
    %v4009 = vmul.f32 1.0, %v4008
    %v4010 = vrcp.pop %v3977
    %v4011 = vmul.f32 1.0, %v4010
    %v4012 = vrcp.pop %v3978
    %v4013 = vmul.f32 1.0, %v4012
    %v4014 = vrcp.pop %v3979
    %v4015 = vmul.f32 1.0, %v4014
    %v4016 = vrcp.pop %v3980
    %v4017 = vmul.f32 1.0, %v4016
    %v4018 = vrcp.pop %v3981
    %v4019 = vmul.f32 1.0, %v4018
    %v4020 = vrcp.pop %v3982
    %v4021 = vmul.f32 1.0, %v4020
    %v4022 = vrcp.pop %v3983
    %v4023 = vmul.f32 1.0, %v4022
    %v4024 = vrcp.pop %v3984
    %v4025 = vmul.f32 1.0, %v4024
    %v4026 = vrcp.pop %v3985
    %v4027 = vmul.f32 1.0, %v4026
    %v4028 = vrcp.pop %v3986
    %v4029 = vmul.f32 1.0, %v4028
    %v4030 = vrcp.pop %v3987
    %v4031 = vmul.f32 1.0, %v4030
    %v4032 = vrcp.pop %v3988
    %v4033 = vmul.f32 1.0, %v4032
    %v4034 = vrcp.pop %v3989
    %v4035 = vmul.f32 1.0, %v4034
    %v4036 = vrcp.pop %v3990
    %v4037 = vmul.f32 1.0, %v4036
    %v4038 = vrcp.pop %v3991
    %v4039 = vmul.f32 1.0, %v4038
    %v4040 = vrcp.pop %v3992
    %v4041 = vmul.f32 1.0, %v4040
    %v4042 = vrcp.pop %v3993
    %v4043 = vmul.f32 1.0, %v4042
    %v4044 = vrcp.pop %v3994
    %v4045 = vmul.f32 1.0, %v4044
    %v4046 = vrcp.pop %v3995
    %v4047 = vmul.f32 1.0, %v4046
    %v4048 = vrcp.pop %v3996
    %v4049 = vmul.f32 1.0, %v4048
    %v4050 = vrcp.pop %v3997
    %v4051 = vmul.f32 1.0, %v4050
    %v4052 = vrcp.pop %v3998
    %v4053 = vmul.f32 1.0, %v4052
    %v4054 = vrcp.pop %v3999
    %v4055 = vmul.f32 1.0, %v4054
    %v4056 = vrcp.pop %v4000
    %v4057 = vmul.f32 1.0, %v4056
    %v4058 = vrcp.pop %v4001
    %v4059 = vmul.f32 1.0, %v4058
    %v4060 = vrcp.pop %v4002
    %v4061 = vmul.f32 1.0, %v4060
    %v4062 = vrcp.pop %v4003
    %v4063 = vmul.f32 1.0, %v4062
    %v4064 = vrcp.pop %v4004
    %v4065 = vmul.f32 1.0, %v4064
    %v4066 = vrcp.pop %v4005
    %v4067 = vmul.f32 1.0, %v4066
    %v4068 = vrcp.pop %v4006
    %v4069 = vmul.f32 1.0, %v4068
    %v4070 = vrcp.pop %v4007
    %v4071 = vmul.f32 1.0, %v4070
    %4073 = vset.pattern.permute.xlu0 0
    %4074 = vperm.xlu0 %4073, %v4009
    %v4075 = vpop.permute.xlu0 %4074
    %4078 = vset.pattern.permute.xlu0 0
    %4079 = vperm.xlu0 %4078, %v4011
    %v4080 = vpop.permute.xlu0 %4079
    %4083 = vset.pattern.permute.xlu0 0
    %4084 = vperm.xlu0 %4083, %v4013
    %v4085 = vpop.permute.xlu0 %4084
    %4088 = vset.pattern.permute.xlu0 0
    %4089 = vperm.xlu0 %4088, %v4015
    %v4090 = vpop.permute.xlu0 %4089
    %4093 = vset.pattern.permute.xlu0 0
    %4094 = vperm.xlu0 %4093, %v4017
    %v4095 = vpop.permute.xlu0 %4094
    %4098 = vset.pattern.permute.xlu0 0
    %4099 = vperm.xlu0 %4098, %v4019
    %v4100 = vpop.permute.xlu0 %4099
    %4103 = vset.pattern.permute.xlu0 0
    %4104 = vperm.xlu0 %4103, %v4021
    %v4105 = vpop.permute.xlu0 %4104
    %4108 = vset.pattern.permute.xlu0 0
    %4109 = vperm.xlu0 %4108, %v4023
    %v4110 = vpop.permute.xlu0 %4109
    %4113 = vset.pattern.permute.xlu0 0
    %4114 = vperm.xlu0 %4113, %v4025
    %v4115 = vpop.permute.xlu0 %4114
    %4118 = vset.pattern.permute.xlu0 0
    %4119 = vperm.xlu0 %4118, %v4027
    %v4120 = vpop.permute.xlu0 %4119
    %4123 = vset.pattern.permute.xlu0 0
    %4124 = vperm.xlu0 %4123, %v4029
    %v4125 = vpop.permute.xlu0 %4124
    %4128 = vset.pattern.permute.xlu0 0
    %4129 = vperm.xlu0 %4128, %v4031
    %v4130 = vpop.permute.xlu0 %4129
    %4133 = vset.pattern.permute.xlu0 0
    %4134 = vperm.xlu0 %4133, %v4033
    %v4135 = vpop.permute.xlu0 %4134
    %4138 = vset.pattern.permute.xlu0 0
    %4139 = vperm.xlu0 %4138, %v4035
    %v4140 = vpop.permute.xlu0 %4139
    %4143 = vset.pattern.permute.xlu0 0
    %4144 = vperm.xlu0 %4143, %v4037
    %v4145 = vpop.permute.xlu0 %4144
    %4148 = vset.pattern.permute.xlu0 0
    %4149 = vperm.xlu0 %4148, %v4039
    %v4150 = vpop.permute.xlu0 %4149
    %4153 = vset.pattern.permute.xlu0 0
    %4154 = vperm.xlu0 %4153, %v4041
    %v4155 = vpop.permute.xlu0 %4154
    %4158 = vset.pattern.permute.xlu0 0
    %4159 = vperm.xlu0 %4158, %v4043
    %v4160 = vpop.permute.xlu0 %4159
    %4163 = vset.pattern.permute.xlu0 0
    %4164 = vperm.xlu0 %4163, %v4045
    %v4165 = vpop.permute.xlu0 %4164
    %4168 = vset.pattern.permute.xlu0 0
    %4169 = vperm.xlu0 %4168, %v4047
    %v4170 = vpop.permute.xlu0 %4169
    %4173 = vset.pattern.permute.xlu0 0
    %4174 = vperm.xlu0 %4173, %v4049
    %v4175 = vpop.permute.xlu0 %4174
    %4178 = vset.pattern.permute.xlu0 0
    %4179 = vperm.xlu0 %4178, %v4051
    %v4180 = vpop.permute.xlu0 %4179
    %4183 = vset.pattern.permute.xlu0 0
    %4184 = vperm.xlu0 %4183, %v4053
    %v4185 = vpop.permute.xlu0 %4184
    %4188 = vset.pattern.permute.xlu0 0
    %4189 = vperm.xlu0 %4188, %v4055
    %v4190 = vpop.permute.xlu0 %4189
    %4193 = vset.pattern.permute.xlu0 0
    %4194 = vperm.xlu0 %4193, %v4057
    %v4195 = vpop.permute.xlu0 %4194
    %4198 = vset.pattern.permute.xlu0 0
    %4199 = vperm.xlu0 %4198, %v4059
    %v4200 = vpop.permute.xlu0 %4199
    %4203 = vset.pattern.permute.xlu0 0
    %4204 = vperm.xlu0 %4203, %v4061
    %v4205 = vpop.permute.xlu0 %4204
    %4208 = vset.pattern.permute.xlu0 0
    %4209 = vperm.xlu0 %4208, %v4063
    %v4210 = vpop.permute.xlu0 %4209
    %4213 = vset.pattern.permute.xlu0 0
    %4214 = vperm.xlu0 %4213, %v4065
    %v4215 = vpop.permute.xlu0 %4214
    %4218 = vset.pattern.permute.xlu0 0
    %4219 = vperm.xlu0 %4218, %v4067
    %v4220 = vpop.permute.xlu0 %4219
    %4223 = vset.pattern.permute.xlu0 0
    %4224 = vperm.xlu0 %4223, %v4069
    %v4225 = vpop.permute.xlu0 %4224
    %4228 = vset.pattern.permute.xlu0 0
    %4229 = vperm.xlu0 %4228, %v4071
    %v4230 = vpop.permute.xlu0 %4229
    %v4232 = vmul.f32 %v4075, %v3518
    %v4233 = vmul.f32 %v4075, %v3520
    %v4234 = vmul.f32 %v4080, %v3524
    %v4235 = vmul.f32 %v4080, %v3526
    %v4236 = vmul.f32 %v4085, %v3530
    %v4237 = vmul.f32 %v4085, %v3532
    %v4238 = vmul.f32 %v4090, %v3536
    %v4239 = vmul.f32 %v4090, %v3538
    %v4240 = vmul.f32 %v4095, %v3542
    %v4241 = vmul.f32 %v4095, %v3544
    %v4242 = vmul.f32 %v4100, %v3548
    %v4243 = vmul.f32 %v4100, %v3550
    %v4244 = vmul.f32 %v4105, %v3554
    %v4245 = vmul.f32 %v4105, %v3556
    %v4246 = vmul.f32 %v4110, %v3560
    %v4247 = vmul.f32 %v4110, %v3562
    %v4248 = vmul.f32 %v4115, %v3566
    %v4249 = vmul.f32 %v4115, %v3568
    %v4250 = vmul.f32 %v4120, %v3572
    %v4251 = vmul.f32 %v4120, %v3574
    %v4252 = vmul.f32 %v4125, %v3578
    %v4253 = vmul.f32 %v4125, %v3580
    %v4254 = vmul.f32 %v4130, %v3584
    %v4255 = vmul.f32 %v4130, %v3586
    %v4256 = vmul.f32 %v4135, %v3590
    %v4257 = vmul.f32 %v4135, %v3592
    %v4258 = vmul.f32 %v4140, %v3596
    %v4259 = vmul.f32 %v4140, %v3598
    %v4260 = vmul.f32 %v4145, %v3602
    %v4261 = vmul.f32 %v4145, %v3604
    %v4262 = vmul.f32 %v4150, %v3608
    %v4263 = vmul.f32 %v4150, %v3610
    %v4264 = vmul.f32 %v4155, %v3614
    %v4265 = vmul.f32 %v4155, %v3616
    %v4266 = vmul.f32 %v4160, %v3620
    %v4267 = vmul.f32 %v4160, %v3622
    %v4268 = vmul.f32 %v4165, %v3626
    %v4269 = vmul.f32 %v4165, %v3628
    %v4270 = vmul.f32 %v4170, %v3632
    %v4271 = vmul.f32 %v4170, %v3634
    %v4272 = vmul.f32 %v4175, %v3638
    %v4273 = vmul.f32 %v4175, %v3640
    %v4274 = vmul.f32 %v4180, %v3644
    %v4275 = vmul.f32 %v4180, %v3646
    %v4276 = vmul.f32 %v4185, %v3650
    %v4277 = vmul.f32 %v4185, %v3652
    %v4278 = vmul.f32 %v4190, %v3656
    %v4279 = vmul.f32 %v4190, %v3658
    %v4280 = vmul.f32 %v4195, %v3662
    %v4281 = vmul.f32 %v4195, %v3664
    %v4282 = vmul.f32 %v4200, %v3668
    %v4283 = vmul.f32 %v4200, %v3670
    %v4284 = vmul.f32 %v4205, %v3674
    %v4285 = vmul.f32 %v4205, %v3676
    %v4286 = vmul.f32 %v4210, %v3680
    %v4287 = vmul.f32 %v4210, %v3682
    %v4288 = vmul.f32 %v4215, %v3686
    %v4289 = vmul.f32 %v4215, %v3688
    %v4290 = vmul.f32 %v4220, %v3692
    %v4291 = vmul.f32 %v4220, %v3694
    %v4292 = vmul.f32 %v4225, %v3698
    %v4293 = vmul.f32 %v4225, %v3700
    %v4294 = vmul.f32 %v4230, %v3704
    %v4295 = vmul.f32 %v4230, %v3706
    %4296 = vmatprep.subr.mxu0 %v4233
    %4297 = vmatpush1.msra.mxu0 %v4232
    %4298 = vmatprep.subr.mxu0 %v4235
    %4299 = vmatpush1.msra.mxu0 %v4234
    %4300 = vmatprep.subr.mxu0 %v4237
    %4301 = vmatpush1.msra.mxu0 %v4236
    %4302 = vmatprep.subr.mxu0 %v4239
    %4303 = vmatpush1.msra.mxu0 %v4238
    %4304 = vmatprep.subr.mxu0 %v4241
    %4305 = vmatpush1.msra.mxu0 %v4240
    %4306 = vmatprep.subr.mxu0 %v4243
    %4307 = vmatpush1.msra.mxu0 %v4242
    %4308 = vmatprep.subr.mxu0 %v4245
    %4309 = vmatpush1.msra.mxu0 %v4244
    %4310 = vmatprep.subr.mxu0 %v4247
    %4311 = vmatpush1.msra.mxu0 %v4246
    %4312 = vmatprep.subr.mxu0 %v4249
    %4313 = vmatpush1.msra.mxu0 %v4248
    %4314 = vmatprep.subr.mxu0 %v4251
    %4315 = vmatpush1.msra.mxu0 %v4250
    %4316 = vmatprep.subr.mxu0 %v4253
    %4317 = vmatpush1.msra.mxu0 %v4252
    %4318 = vmatprep.subr.mxu0 %v4255
    %4319 = vmatpush1.msra.mxu0 %v4254
    %4320 = vmatprep.subr.mxu0 %v4257
    %4321 = vmatpush1.msra.mxu0 %v4256
    %4322 = vmatprep.subr.mxu0 %v4259
    %4323 = vmatpush1.msra.mxu0 %v4258
    %4324 = vmatprep.subr.mxu0 %v4261
    %4325 = vmatpush1.msra.mxu0 %v4260
    %4326 = vmatprep.subr.mxu0 %v4263
    %4327 = vmatpush1.msra.mxu0 %v4262
    %4328 = vmatprep.subr.mxu0 %v4265
    %4329 = vmatpush1.msra.mxu0 %v4264
    %4330 = vmatprep.subr.mxu0 %v4267
    %4331 = vmatpush1.msra.mxu0 %v4266
    %4332 = vmatprep.subr.mxu0 %v4269
    %4333 = vmatpush1.msra.mxu0 %v4268
    %4334 = vmatprep.subr.mxu0 %v4271
    %4335 = vmatpush1.msra.mxu0 %v4270
    %4336 = vmatprep.subr.mxu0 %v4273
    %4337 = vmatpush1.msra.mxu0 %v4272
    %4338 = vmatprep.subr.mxu0 %v4275
    %4339 = vmatpush1.msra.mxu0 %v4274
    %4340 = vmatprep.subr.mxu0 %v4277
    %4341 = vmatpush1.msra.mxu0 %v4276
    %4342 = vmatprep.subr.mxu0 %v4279
    %4343 = vmatpush1.msra.mxu0 %v4278
    %4344 = vmatprep.subr.mxu0 %v4281
    %4345 = vmatpush1.msra.mxu0 %v4280
    %4346 = vmatprep.subr.mxu0 %v4283
    %4347 = vmatpush1.msra.mxu0 %v4282
    %4348 = vmatprep.subr.mxu0 %v4285
    %4349 = vmatpush1.msra.mxu0 %v4284
    %4350 = vmatprep.subr.mxu0 %v4287
    %4351 = vmatpush1.msra.mxu0 %v4286
    %4352 = vmatprep.subr.mxu0 %v4289
    %4353 = vmatpush1.msra.mxu0 %v4288
    %4354 = vmatprep.subr.mxu0 %v4291
    %4355 = vmatpush1.msra.mxu0 %v4290
    %4356 = vmatprep.subr.mxu0 %v4293
    %4357 = vmatpush1.msra.mxu0 %v4292
    %4358 = vmatprep.subr.mxu0 %v4295
    %4359 = vmatpush1.msra.mxu0 %v4294
    %4360 = vmatprep.mubr.f32.mxu0 %v1937
    %4361 = vmatmul.mubr.f32.gmra.mrb[0].mxu0 %v1936
    %v4362 = vpop.f32.mrb[0].mxu0
    %v4363 = vadd.f32 %v3710, %v4362
    %v4364 = vpop.f32.mrb[0].mxu0
    %v4365 = vadd.f32 %v3712, %v4364
    %4366 = vmatprep.mubr.f32.mxu0 %v1939
    %4367 = vmatmul.mubr.f32.gmra.mrb[0].mxu0 %v1938
    %v4368 = vpop.f32.mrb[0].mxu0
    %v4369 = vadd.f32 %v3716, %v4368
    %v4370 = vpop.f32.mrb[0].mxu0
    %v4371 = vadd.f32 %v3718, %v4370
    %4372 = vdwg.mxu0
    %v4373 = vmul.f32 %v1741, %v4363
    %v4374 = vmul.f32 %v1745, %v4365
    %v4375 = vmul.f32 %v1753, %v4369
    %v4376 = vmul.f32 %v1757, %v4371
    %v4377 = vadd.f32 %v4373, %v4375
    %v4378 = vadd.f32 %v4374, %v4376
    %v4379 = vadd.f32 %v3257, %v3258
    %4380 = vadd.xlane.f32.xlu0 %v4379
    %v4381 = vpop.xlane.xlu0 %4380
    %v4382 = vmul.f32 %v3257, %v3257
    %v4383 = vmul.f32 %v3258, %v3258
    %v4384 = vadd.f32 %v4382, %v4383
    %4385 = vadd.xlane.f32.xlu0 %v4384
    %v4386 = vpop.xlane.xlu0 %4385
    %v4387 = vadd.f32 %v4377, %v4378
    %4388 = vadd.xlane.f32.xlu0 %v4387
    %v4389 = vpop.xlane.xlu0 %4388
    %v4390 = vadd.f32 %v4381, %v4389
    %v4391 = vmul.f32 %v4377, %v4377
    %v4392 = vmul.f32 %v4378, %v4378
    %v4393 = vadd.f32 %v4391, %v4392
    %4394 = vadd.xlane.f32.xlu0 %v4393
    %v4395 = vpop.xlane.xlu0 %4394
    %v4396 = vadd.f32 %v4386, %v4395
    %v4397 = vmul.f32 %v4390, 0.001953125
    %v4398 = vmul.f32 %v4396, 0.001953125
    %v4399 = vmul.f32 %v4397, %v4397
    %v4400 = vsub.f32 %v4398, %v4399
    %v4401 = vadd.f32 %v4400, 1e-05
    %v4402 = vrsqrt.pop %v4401
    %v4403 = vsub.f32 %v3257, %v4397
    %v4404 = vsub.f32 %v3258, %v4397
    %v4405 = vmul.f32 %v4403, %v4402
    %v4406 = vmul.f32 %v4404, %v4402
    %v4407 = vmax.f32 %v4405, 0.0
    %v4408 = vmax.f32 %v4406, 0.0
    %v4409 = vsub.f32 %v4377, %v4397
    %v4410 = vsub.f32 %v4378, %v4397
    %v4411 = vmul.f32 %v4409, %v4402
    %v4412 = vmul.f32 %v4410, %v4402
    %v4413 = vmax.f32 %v4411, 0.0
    %v4414 = vmax.f32 %v4412, 0.0
    %v4415 = vld [vmem:[%s9] sm:$0xff]
    %v4416 = vld [vmem:[%s9 + $0x8] sm:$0xff]
    %v4417 = vld [vmem:[%s9 + $0x10] sm:$0xff]
    %v4418 = vld [vmem:[%s9 + $0x18] sm:$0xff]
    %v4419 = vld [vmem:[%s9 + $0x20] sm:$0xff]
    %v4420 = vld [vmem:[%s9 + $0x28] sm:$0xff]
    %v4421 = vld [vmem:[%s9 + $0x30] sm:$0xff]
    %v4422 = vld [vmem:[%s9 + $0x38] sm:$0xff]
    %v4423 = vld [vmem:[%s9 + $0x40] sm:$0xff]
    %v4424 = vld [vmem:[%s9 + $0x48] sm:$0xff]
    %v4425 = vld [vmem:[%s9 + $0x50] sm:$0xff]
    %v4426 = vld [vmem:[%s9 + $0x58] sm:$0xff]
    %v4427 = vld [vmem:[%s9 + $0x60] sm:$0xff]
    %v4428 = vld [vmem:[%s9 + $0x68] sm:$0xff]
    %v4429 = vld [vmem:[%s9 + $0x70] sm:$0xff]
    %v4430 = vld [vmem:[%s9 + $0x78] sm:$0xff]
    %v4431 = vld [vmem:[%s9 + $0x80] sm:$0xff]
    %v4432 = vld [vmem:[%s9 + $0x88] sm:$0xff]
    %v4433 = vld [vmem:[%s9 + $0x90] sm:$0xff]
    %v4434 = vld [vmem:[%s9 + $0x98] sm:$0xff]
    %v4435 = vld [vmem:[%s9 + $0xa0] sm:$0xff]
    %v4436 = vld [vmem:[%s9 + $0xa8] sm:$0xff]
    %v4437 = vld [vmem:[%s9 + $0xb0] sm:$0xff]
    %v4438 = vld [vmem:[%s9 + $0xb8] sm:$0xff]
    %v4439 = vld [vmem:[%s9 + $0xc0] sm:$0xff]
    %v4440 = vld [vmem:[%s9 + $0xc8] sm:$0xff]
    %v4441 = vld [vmem:[%s9 + $0xd0] sm:$0xff]
    %v4442 = vld [vmem:[%s9 + $0xd8] sm:$0xff]
    %v4443 = vld [vmem:[%s9 + $0xe0] sm:$0xff]
    %v4444 = vld [vmem:[%s9 + $0xe8] sm:$0xff]
    %v4445 = vld [vmem:[%s9 + $0xf0] sm:$0xff]
    %v4446 = vld [vmem:[%s9 + $0xf8] sm:$0xff]
    %v4447 = vld [vmem:[%s9 + $0x100] sm:$0xff]
    %v4448 = vld [vmem:[%s9 + $0x108] sm:$0xff]
    %v4449 = vld [vmem:[%s10] sm:$0xff]
    %v4450 = vld [vmem:[%s10 + $0x8] sm:$0xff]
    %v4451 = vld [vmem:[%s10 + $0x10] sm:$0xff]
    %v4452 = vld [vmem:[%s10 + $0x18] sm:$0xff]
    %v4453 = vld [vmem:[%s10 + $0x20] sm:$0xff]
    %v4454 = vld [vmem:[%s10 + $0x28] sm:$0xff]
    %v4455 = vld [vmem:[%s10 + $0x30] sm:$0xff]
    %v4456 = vld [vmem:[%s10 + $0x38] sm:$0xff]
    %v4457 = vld [vmem:[%s10 + $0x40] sm:$0xff]
    %v4458 = vld [vmem:[%s10 + $0x48] sm:$0xff]
    %v4459 = vld [vmem:[%s10 + $0x50] sm:$0xff]
    %v4460 = vld [vmem:[%s10 + $0x58] sm:$0xff]
    %v4461 = vld [vmem:[%s10 + $0x60] sm:$0xff]
    %v4462 = vld [vmem:[%s10 + $0x68] sm:$0xff]
    %v4463 = vld [vmem:[%s10 + $0x70] sm:$0xff]
    %v4464 = vld [vmem:[%s10 + $0x78] sm:$0xff]
    %v4465 = vld [vmem:[%s11] sm:$0xff]
    %v4466 = vld [vmem:[%s11 + $0x8] sm:$0xff]
    %v4468 = vsel %vm282, %v4415, 0
    %v4471 = vsel %vm282, %v4416, 0
    %v4474 = vsel %vm282, %v4417, 0
    %v4477 = vsel %vm282, %v4418, 0
    %v4480 = vsel %vm282, %v4419, 0
    %v4483 = vsel %vm282, %v4420, 0
    %v4486 = vsel %vm282, %v4421, 0
    %v4489 = vsel %vm282, %v4422, 0
    %v4492 = vsel %vm282, %v4423, 0
    %v4495 = vsel %vm282, %v4424, 0
    %v4498 = vsel %vm282, %v4425, 0
    %v4501 = vsel %vm282, %v4426, 0
    %v4504 = vsel %vm282, %v4427, 0
    %v4507 = vsel %vm282, %v4428, 0
    %v4510 = vsel %vm282, %v4429, 0
    %v4513 = vsel %vm282, %v4430, 0
    %v4516 = vsel %vm282, %v4431, 0
    %v4519 = vsel %vm282, %v4432, 0
    %v4522 = vsel %vm282, %v4433, 0
    %v4525 = vsel %vm282, %v4434, 0
    %v4528 = vsel %vm282, %v4435, 0
    %v4531 = vsel %vm282, %v4436, 0
    %v4534 = vsel %vm282, %v4437, 0
    %v4537 = vsel %vm282, %v4438, 0
    %v4540 = vsel %vm282, %v4439, 0
    %v4543 = vsel %vm282, %v4440, 0
    %v4546 = vsel %vm282, %v4441, 0
    %v4549 = vsel %vm282, %v4442, 0
    %v4552 = vsel %vm282, %v4443, 0
    %v4555 = vsel %vm282, %v4444, 0
    %v4558 = vsel %vm282, %v4445, 0
    %v4561 = vsel %vm282, %v4446, 0
    %v4564 = vsel %vm282, %v4447, 0
    %v4567 = vsel %vm282, %v4448, 0
    %4569 = vmatprep.subr.mxu0 %v4408
    %4570 = vmatpush1.msra.mxu0 %v4407
    %4571 = vmatprep.subr.mxu0 0.0
    %4572 = vmatpush1.msra.mxu0 0.0
    %4573 = vmatprep.subr.mxu0 0.0
    %4574 = vmatpush1.msra.mxu0 0.0
    %4575 = vmatprep.subr.mxu0 0.0
    %4576 = vmatpush1.msra.mxu0 0.0
    %4577 = vmatprep.subr.mxu0 0.0
    %4578 = vmatpush1.msra.mxu0 0.0
    %4579 = vmatprep.subr.mxu0 0.0
    %4580 = vmatpush1.msra.mxu0 0.0
    %4581 = vmatprep.subr.mxu0 0.0
    %4582 = vmatpush1.msra.mxu0 0.0
    %4583 = vmatprep.subr.mxu0 0.0
    %4584 = vmatpush1.msra.mxu0 0.0
    %4585 = vmatprep.subr.mxu0 0.0
    %4586 = vmatpush1.msra.mxu0 0.0
    %4587 = vmatprep.subr.mxu0 0.0
    %4588 = vmatpush1.msra.mxu0 0.0
    %4589 = vmatprep.subr.mxu0 0.0
    %4590 = vmatpush1.msra.mxu0 0.0
    %4591 = vmatprep.subr.mxu0 0.0
    %4592 = vmatpush1.msra.mxu0 0.0
    %4593 = vmatprep.subr.mxu0 0.0
    %4594 = vmatpush1.msra.mxu0 0.0
    %4595 = vmatprep.subr.mxu0 0.0
    %4596 = vmatpush1.msra.mxu0 0.0
    %4597 = vmatprep.subr.mxu0 0.0
    %4598 = vmatpush1.msra.mxu0 0.0
    %4599 = vmatprep.subr.mxu0 0.0
    %4600 = vmatpush1.msra.mxu0 0.0
    %4601 = vmatprep.subr.mxu0 0.0
    %4602 = vmatpush1.msra.mxu0 0.0
    %4603 = vmatprep.subr.mxu0 0.0
    %4604 = vmatpush1.msra.mxu0 0.0
    %4605 = vmatprep.subr.mxu0 0.0
    %4606 = vmatpush1.msra.mxu0 0.0
    %4607 = vmatprep.subr.mxu0 0.0
    %4608 = vmatpush1.msra.mxu0 0.0
    %4609 = vmatprep.subr.mxu0 0.0
    %4610 = vmatpush1.msra.mxu0 0.0
    %4611 = vmatprep.subr.mxu0 0.0
    %4612 = vmatpush1.msra.mxu0 0.0
    %4613 = vmatprep.subr.mxu0 0.0
    %4614 = vmatpush1.msra.mxu0 0.0
    %4615 = vmatprep.subr.mxu0 0.0
    %4616 = vmatpush1.msra.mxu0 0.0
    %4617 = vmatprep.subr.mxu0 0.0
    %4618 = vmatpush1.msra.mxu0 0.0
    %4619 = vmatprep.subr.mxu0 0.0
    %4620 = vmatpush1.msra.mxu0 0.0
    %4621 = vmatprep.subr.mxu0 0.0
    %4622 = vmatpush1.msra.mxu0 0.0
    %4623 = vmatprep.subr.mxu0 0.0
    %4624 = vmatpush1.msra.mxu0 0.0
    %4625 = vmatprep.subr.mxu0 0.0
    %4626 = vmatpush1.msra.mxu0 0.0
    %4627 = vmatprep.subr.mxu0 0.0
    %4628 = vmatpush1.msra.mxu0 0.0
    %4629 = vmatprep.subr.mxu0 0.0
    %4630 = vmatpush1.msra.mxu0 0.0
    %4631 = vmatprep.subr.mxu0 0.0
    %4632 = vmatpush1.msra.mxu0 0.0
    %4633 = vmatprep.mubr.f32.mxu0 0.0
    %4634 = vmatmul.mubr.f32.gmra.mrb[0].mxu0 %v4468
    %v4635 = vpop.f32.mrb[0].mxu0
    %v4636 = vadd.f32 0.0, %v4635
    %v4637 = vpop.f32.mrb[0].mxu0
    %v4638 = vadd.f32 0.0, %v4637
    %4639 = vmatprep.mubr.f32.mxu0 0.0
    %4640 = vmatmul.mubr.f32.gmra.mrb[0].mxu0 %v4471
    %v4641 = vpop.f32.mrb[0].mxu0
    %v4642 = vadd.f32 0.0, %v4641
    %v4643 = vpop.f32.mrb[0].mxu0
    %v4644 = vadd.f32 0.0, %v4643
    %4645 = vmatprep.mubr.f32.mxu0 0.0
    %4646 = vmatmul.mubr.f32.gmra.mrb[0].mxu0 %v4474
    %v4647 = vpop.f32.mrb[0].mxu0
    %v4648 = vadd.f32 0.0, %v4647
    %v4649 = vpop.f32.mrb[0].mxu0
    %v4650 = vadd.f32 0.0, %v4649
    %4651 = vmatprep.mubr.f32.mxu0 0.0
    %4652 = vmatmul.mubr.f32.gmra.mrb[0].mxu0 %v4477
    %v4653 = vpop.f32.mrb[0].mxu0
    %v4654 = vadd.f32 0.0, %v4653
    %v4655 = vpop.f32.mrb[0].mxu0
    %v4656 = vadd.f32 0.0, %v4655
    %4657 = vmatprep.mubr.f32.mxu0 0.0
    %4658 = vmatmul.mubr.f32.gmra.mrb[0].mxu0 %v4480
    %v4659 = vpop.f32.mrb[0].mxu0
    %v4660 = vadd.f32 0.0, %v4659
    %v4661 = vpop.f32.mrb[0].mxu0
    %v4662 = vadd.f32 0.0, %v4661
    %4663 = vmatprep.mubr.f32.mxu0 0.0
    %4664 = vmatmul.mubr.f32.gmra.mrb[0].mxu0 %v4483
    %v4665 = vpop.f32.mrb[0].mxu0
    %v4666 = vadd.f32 0.0, %v4665
    %v4667 = vpop.f32.mrb[0].mxu0
    %v4668 = vadd.f32 0.0, %v4667
    %4669 = vmatprep.mubr.f32.mxu0 0.0
    %4670 = vmatmul.mubr.f32.gmra.mrb[0].mxu0 %v4486
    %v4671 = vpop.f32.mrb[0].mxu0
    %v4672 = vadd.f32 0.0, %v4671
    %v4673 = vpop.f32.mrb[0].mxu0
    %v4674 = vadd.f32 0.0, %v4673
    %4675 = vmatprep.mubr.f32.mxu0 0.0
    %4676 = vmatmul.mubr.f32.gmra.mrb[0].mxu0 %v4489
    %v4677 = vpop.f32.mrb[0].mxu0
    %v4678 = vadd.f32 0.0, %v4677
    %v4679 = vpop.f32.mrb[0].mxu0
    %v4680 = vadd.f32 0.0, %v4679
    %4681 = vmatprep.mubr.f32.mxu0 0.0
    %4682 = vmatmul.mubr.f32.gmra.mrb[0].mxu0 %v4492
    %v4683 = vpop.f32.mrb[0].mxu0
    %v4684 = vadd.f32 0.0, %v4683
    %v4685 = vpop.f32.mrb[0].mxu0
    %v4686 = vadd.f32 0.0, %v4685
    %4687 = vmatprep.mubr.f32.mxu0 0.0
    %4688 = vmatmul.mubr.f32.gmra.mrb[0].mxu0 %v4495
    %v4689 = vpop.f32.mrb[0].mxu0
    %v4690 = vadd.f32 0.0, %v4689
    %v4691 = vpop.f32.mrb[0].mxu0
    %v4692 = vadd.f32 0.0, %v4691
    %4693 = vmatprep.mubr.f32.mxu0 0.0
    %4694 = vmatmul.mubr.f32.gmra.mrb[0].mxu0 %v4498
    %v4695 = vpop.f32.mrb[0].mxu0
    %v4696 = vadd.f32 0.0, %v4695
    %v4697 = vpop.f32.mrb[0].mxu0
    %v4698 = vadd.f32 0.0, %v4697
    %4699 = vmatprep.mubr.f32.mxu0 0.0
    %4700 = vmatmul.mubr.f32.gmra.mrb[0].mxu0 %v4501
    %v4701 = vpop.f32.mrb[0].mxu0
    %v4702 = vadd.f32 0.0, %v4701
    %v4703 = vpop.f32.mrb[0].mxu0
    %v4704 = vadd.f32 0.0, %v4703
    %4705 = vmatprep.mubr.f32.mxu0 0.0
    %4706 = vmatmul.mubr.f32.gmra.mrb[0].mxu0 %v4504
    %v4707 = vpop.f32.mrb[0].mxu0
    %v4708 = vadd.f32 0.0, %v4707
    %v4709 = vpop.f32.mrb[0].mxu0
    %v4710 = vadd.f32 0.0, %v4709
    %4711 = vmatprep.mubr.f32.mxu0 0.0
    %4712 = vmatmul.mubr.f32.gmra.mrb[0].mxu0 %v4507
    %v4713 = vpop.f32.mrb[0].mxu0
    %v4714 = vadd.f32 0.0, %v4713
    %v4715 = vpop.f32.mrb[0].mxu0
    %v4716 = vadd.f32 0.0, %v4715
    %4717 = vmatprep.mubr.f32.mxu0 0.0
    %4718 = vmatmul.mubr.f32.gmra.mrb[0].mxu0 %v4510
    %v4719 = vpop.f32.mrb[0].mxu0
    %v4720 = vadd.f32 0.0, %v4719
    %v4721 = vpop.f32.mrb[0].mxu0
    %v4722 = vadd.f32 0.0, %v4721
    %4723 = vmatprep.mubr.f32.mxu0 0.0
    %4724 = vmatmul.mubr.f32.gmra.mrb[0].mxu0 %v4513
    %v4725 = vpop.f32.mrb[0].mxu0
    %v4726 = vadd.f32 0.0, %v4725
    %v4727 = vpop.f32.mrb[0].mxu0
    %v4728 = vadd.f32 0.0, %v4727
    %4729 = vmatprep.mubr.f32.mxu0 0.0
    %4730 = vmatmul.mubr.f32.gmra.mrb[0].mxu0 %v4516
    %v4731 = vpop.f32.mrb[0].mxu0
    %v4732 = vadd.f32 0.0, %v4731
    %v4733 = vpop.f32.mrb[0].mxu0
    %v4734 = vadd.f32 0.0, %v4733
    %4735 = vmatprep.mubr.f32.mxu0 0.0
    %4736 = vmatmul.mubr.f32.gmra.mrb[0].mxu0 %v4519
    %v4737 = vpop.f32.mrb[0].mxu0
    %v4738 = vadd.f32 0.0, %v4737
    %v4739 = vpop.f32.mrb[0].mxu0
    %v4740 = vadd.f32 0.0, %v4739
    %4741 = vmatprep.mubr.f32.mxu0 0.0
    %4742 = vmatmul.mubr.f32.gmra.mrb[0].mxu0 %v4522
    %v4743 = vpop.f32.mrb[0].mxu0
    %v4744 = vadd.f32 0.0, %v4743
    %v4745 = vpop.f32.mrb[0].mxu0
    %v4746 = vadd.f32 0.0, %v4745
    %4747 = vmatprep.mubr.f32.mxu0 0.0
    %4748 = vmatmul.mubr.f32.gmra.mrb[0].mxu0 %v4525
    %v4749 = vpop.f32.mrb[0].mxu0
    %v4750 = vadd.f32 0.0, %v4749
    %v4751 = vpop.f32.mrb[0].mxu0
    %v4752 = vadd.f32 0.0, %v4751
    %4753 = vmatprep.mubr.f32.mxu0 0.0
    %4754 = vmatmul.mubr.f32.gmra.mrb[0].mxu0 %v4528
    %v4755 = vpop.f32.mrb[0].mxu0
    %v4756 = vadd.f32 0.0, %v4755
    %v4757 = vpop.f32.mrb[0].mxu0
    %v4758 = vadd.f32 0.0, %v4757
    %4759 = vmatprep.mubr.f32.mxu0 0.0
    %4760 = vmatmul.mubr.f32.gmra.mrb[0].mxu0 %v4531
    %v4761 = vpop.f32.mrb[0].mxu0
    %v4762 = vadd.f32 0.0, %v4761
    %v4763 = vpop.f32.mrb[0].mxu0
    %v4764 = vadd.f32 0.0, %v4763
    %4765 = vmatprep.mubr.f32.mxu0 0.0
    %4766 = vmatmul.mubr.f32.gmra.mrb[0].mxu0 %v4534
    %v4767 = vpop.f32.mrb[0].mxu0
    %v4768 = vadd.f32 0.0, %v4767
    %v4769 = vpop.f32.mrb[0].mxu0
    %v4770 = vadd.f32 0.0, %v4769
    %4771 = vmatprep.mubr.f32.mxu0 0.0
    %4772 = vmatmul.mubr.f32.gmra.mrb[0].mxu0 %v4537
    %v4773 = vpop.f32.mrb[0].mxu0
    %v4774 = vadd.f32 0.0, %v4773
    %v4775 = vpop.f32.mrb[0].mxu0
    %v4776 = vadd.f32 0.0, %v4775
    %4777 = vmatprep.mubr.f32.mxu0 0.0
    %4778 = vmatmul.mubr.f32.gmra.mrb[0].mxu0 %v4540
    %v4779 = vpop.f32.mrb[0].mxu0
    %v4780 = vadd.f32 0.0, %v4779
    %v4781 = vpop.f32.mrb[0].mxu0
    %v4782 = vadd.f32 0.0, %v4781
    %4783 = vmatprep.mubr.f32.mxu0 0.0
    %4784 = vmatmul.mubr.f32.gmra.mrb[0].mxu0 %v4543
    %v4785 = vpop.f32.mrb[0].mxu0
    %v4786 = vadd.f32 0.0, %v4785
    %v4787 = vpop.f32.mrb[0].mxu0
    %v4788 = vadd.f32 0.0, %v4787
    %4789 = vmatprep.mubr.f32.mxu0 0.0
    %4790 = vmatmul.mubr.f32.gmra.mrb[0].mxu0 %v4546
    %v4791 = vpop.f32.mrb[0].mxu0
    %v4792 = vadd.f32 0.0, %v4791
    %v4793 = vpop.f32.mrb[0].mxu0
    %v4794 = vadd.f32 0.0, %v4793
    %4795 = vmatprep.mubr.f32.mxu0 0.0
    %4796 = vmatmul.mubr.f32.gmra.mrb[0].mxu0 %v4549
    %v4797 = vpop.f32.mrb[0].mxu0
    %v4798 = vadd.f32 0.0, %v4797
    %v4799 = vpop.f32.mrb[0].mxu0
    %v4800 = vadd.f32 0.0, %v4799
    %4801 = vmatprep.mubr.f32.mxu0 0.0
    %4802 = vmatmul.mubr.f32.gmra.mrb[0].mxu0 %v4552
    %v4803 = vpop.f32.mrb[0].mxu0
    %v4804 = vadd.f32 0.0, %v4803
    %v4805 = vpop.f32.mrb[0].mxu0
    %v4806 = vadd.f32 0.0, %v4805
    %4807 = vmatprep.mubr.f32.mxu0 0.0
    %4808 = vmatmul.mubr.f32.gmra.mrb[0].mxu0 %v4555
    %v4809 = vpop.f32.mrb[0].mxu0
    %v4810 = vadd.f32 0.0, %v4809
    %v4811 = vpop.f32.mrb[0].mxu0
    %v4812 = vadd.f32 0.0, %v4811
    %4813 = vmatprep.mubr.f32.mxu0 0.0
    %4814 = vmatmul.mubr.f32.gmra.mrb[0].mxu0 %v4558
    %v4815 = vpop.f32.mrb[0].mxu0
    %v4816 = vadd.f32 0.0, %v4815
    %v4817 = vpop.f32.mrb[0].mxu0
    %v4818 = vadd.f32 0.0, %v4817
    %4819 = vmatprep.mubr.f32.mxu0 0.0
    %4820 = vmatmul.mubr.f32.gmra.mrb[0].mxu0 %v4561
    %v4821 = vpop.f32.mrb[0].mxu0
    %v4822 = vadd.f32 0.0, %v4821
    %v4823 = vpop.f32.mrb[0].mxu0
    %v4824 = vadd.f32 0.0, %v4823
    %4825 = vmatprep.mubr.f32.mxu0 0.0
    %4826 = vmatmul.mubr.f32.gmra.mrb[0].mxu0 %v4564
    %v4827 = vpop.f32.mrb[0].mxu0
    %v4828 = vadd.f32 0.0, %v4827
    %v4829 = vpop.f32.mrb[0].mxu0
    %v4830 = vadd.f32 0.0, %v4829
    %4831 = vmatprep.mubr.f32.mxu0 0.0
    %4832 = vmatmul.mubr.f32.gmra.mrb[0].mxu0 %v4567
    %v4833 = vpop.f32.mrb[0].mxu0
    %v4834 = vadd.f32 0.0, %v4833
    %v4835 = vpop.f32.mrb[0].mxu0
    %v4836 = vadd.f32 0.0, %v4835
    %4837 = vdwg.mxu0
    %v4838 = vadd.f32 %v4636, %v4638
    %4839 = vadd.xlane.f32.xlu0 %v4838
    %v4840 = vpop.xlane.xlu0 %4839
    %v4841 = vadd.f32 %v4642, %v4644
    %4842 = vadd.xlane.f32.xlu0 %v4841
    %v4843 = vpop.xlane.xlu0 %4842
    %v4844 = vadd.f32 %v4648, %v4650
    %4845 = vadd.xlane.f32.xlu0 %v4844
    %v4846 = vpop.xlane.xlu0 %4845
    %v4847 = vadd.f32 %v4654, %v4656
    %4848 = vadd.xlane.f32.xlu0 %v4847
    %v4849 = vpop.xlane.xlu0 %4848
    %v4850 = vadd.f32 %v4660, %v4662
    %4851 = vadd.xlane.f32.xlu0 %v4850
    %v4852 = vpop.xlane.xlu0 %4851
    %v4853 = vadd.f32 %v4666, %v4668
    %4854 = vadd.xlane.f32.xlu0 %v4853
    %v4855 = vpop.xlane.xlu0 %4854
    %v4856 = vadd.f32 %v4672, %v4674
    %4857 = vadd.xlane.f32.xlu0 %v4856
    %v4858 = vpop.xlane.xlu0 %4857
    %v4859 = vadd.f32 %v4678, %v4680
    %4860 = vadd.xlane.f32.xlu0 %v4859
    %v4861 = vpop.xlane.xlu0 %4860
    %v4862 = vadd.f32 %v4684, %v4686
    %4863 = vadd.xlane.f32.xlu0 %v4862
    %v4864 = vpop.xlane.xlu0 %4863
    %v4865 = vadd.f32 %v4690, %v4692
    %4866 = vadd.xlane.f32.xlu0 %v4865
    %v4867 = vpop.xlane.xlu0 %4866
    %v4868 = vadd.f32 %v4696, %v4698
    %4869 = vadd.xlane.f32.xlu0 %v4868
    %v4870 = vpop.xlane.xlu0 %4869
    %v4871 = vadd.f32 %v4702, %v4704
    %4872 = vadd.xlane.f32.xlu0 %v4871
    %v4873 = vpop.xlane.xlu0 %4872
    %v4874 = vadd.f32 %v4708, %v4710
    %4875 = vadd.xlane.f32.xlu0 %v4874
    %v4876 = vpop.xlane.xlu0 %4875
    %v4877 = vadd.f32 %v4714, %v4716
    %4878 = vadd.xlane.f32.xlu0 %v4877
    %v4879 = vpop.xlane.xlu0 %4878
    %v4880 = vadd.f32 %v4720, %v4722
    %4881 = vadd.xlane.f32.xlu0 %v4880
    %v4882 = vpop.xlane.xlu0 %4881
    %v4883 = vadd.f32 %v4726, %v4728
    %4884 = vadd.xlane.f32.xlu0 %v4883
    %v4885 = vpop.xlane.xlu0 %4884
    %v4886 = vmul.f32 %v4840, %v720
    %v4887 = vmul.f32 %v4843, %v720
    %v4888 = vmul.f32 %v4846, %v720
    %v4889 = vmul.f32 %v4849, %v720
    %v4890 = vmul.f32 %v4852, %v720
    %v4891 = vmul.f32 %v4855, %v720
    %v4892 = vmul.f32 %v4858, %v720
    %v4893 = vmul.f32 %v4861, %v720
    %v4894 = vmul.f32 %v4864, %v720
    %v4895 = vmul.f32 %v4867, %v720
    %v4896 = vmul.f32 %v4870, %v720
    %v4897 = vmul.f32 %v4873, %v720
    %v4898 = vmul.f32 %v4876, %v720
    %v4899 = vmul.f32 %v4879, %v720
    %v4900 = vmul.f32 %v4882, %v720
    %v4901 = vmul.f32 %v4885, %v720
    %v4902 = vadd.f32 %v4886, %v4449
    %v4903 = vadd.f32 %v4887, %v4450
    %v4904 = vadd.f32 %v4888, %v4451
    %v4905 = vadd.f32 %v4889, %v4452
    %v4906 = vadd.f32 %v4890, %v4453
    %v4907 = vadd.f32 %v4891, %v4454
    %v4908 = vadd.f32 %v4892, %v4455
    %v4909 = vadd.f32 %v4893, %v4456
    %v4910 = vadd.f32 %v4894, %v4457
    %v4911 = vadd.f32 %v4895, %v4458
    %v4912 = vadd.f32 %v4896, %v4459
    %v4913 = vadd.f32 %v4897, %v4460
    %v4914 = vadd.f32 %v4898, %v4461
    %v4915 = vadd.f32 %v4899, %v4462
    %v4916 = vadd.f32 %v4900, %v4463
    %v4917 = vadd.f32 %v4901, %v4464
    %v4918 = vxor.u32 %v4902, 2147483648
    %v4919 = vxor.u32 %v4903, 2147483648
    %v4920 = vxor.u32 %v4904, 2147483648
    %v4921 = vxor.u32 %v4905, 2147483648
    %v4922 = vxor.u32 %v4906, 2147483648
    %v4923 = vxor.u32 %v4907, 2147483648
    %v4924 = vxor.u32 %v4908, 2147483648
    %v4925 = vxor.u32 %v4909, 2147483648
    %v4926 = vxor.u32 %v4910, 2147483648
    %v4927 = vxor.u32 %v4911, 2147483648
    %v4928 = vxor.u32 %v4912, 2147483648
    %v4929 = vxor.u32 %v4913, 2147483648
    %v4930 = vxor.u32 %v4914, 2147483648
    %v4931 = vxor.u32 %v4915, 2147483648
    %v4932 = vxor.u32 %v4916, 2147483648
    %v4933 = vxor.u32 %v4917, 2147483648
    %v4934 = vmul.f32 %v4918, 1.442695
    %v4935 = vpow.pop %v4934
    %v4936 = vmul.f32 %v4919, 1.442695
    %v4937 = vpow.pop %v4936
    %v4938 = vmul.f32 %v4920, 1.442695
    %v4939 = vpow.pop %v4938
    %v4940 = vmul.f32 %v4921, 1.442695
    %v4941 = vpow.pop %v4940
    %v4942 = vmul.f32 %v4922, 1.442695
    %v4943 = vpow.pop %v4942
    %v4944 = vmul.f32 %v4923, 1.442695
    %v4945 = vpow.pop %v4944
    %v4946 = vmul.f32 %v4924, 1.442695
    %v4947 = vpow.pop %v4946
    %v4948 = vmul.f32 %v4925, 1.442695
    %v4949 = vpow.pop %v4948
    %v4950 = vmul.f32 %v4926, 1.442695
    %v4951 = vpow.pop %v4950
    %v4952 = vmul.f32 %v4927, 1.442695
    %v4953 = vpow.pop %v4952
    %v4954 = vmul.f32 %v4928, 1.442695
    %v4955 = vpow.pop %v4954
    %v4956 = vmul.f32 %v4929, 1.442695
    %v4957 = vpow.pop %v4956
    %v4958 = vmul.f32 %v4930, 1.442695
    %v4959 = vpow.pop %v4958
    %v4960 = vmul.f32 %v4931, 1.442695
    %v4961 = vpow.pop %v4960
    %v4962 = vmul.f32 %v4932, 1.442695
    %v4963 = vpow.pop %v4962
    %v4964 = vmul.f32 %v4933, 1.442695
    %v4965 = vpow.pop %v4964
    %v4966 = vadd.f32 %v4935, 1.0
    %v4967 = vadd.f32 %v4937, 1.0
    %v4968 = vadd.f32 %v4939, 1.0
    %v4969 = vadd.f32 %v4941, 1.0
    %v4970 = vadd.f32 %v4943, 1.0
    %v4971 = vadd.f32 %v4945, 1.0
    %v4972 = vadd.f32 %v4947, 1.0
    %v4973 = vadd.f32 %v4949, 1.0
    %v4974 = vadd.f32 %v4951, 1.0
    %v4975 = vadd.f32 %v4953, 1.0
    %v4976 = vadd.f32 %v4955, 1.0
    %v4977 = vadd.f32 %v4957, 1.0
    %v4978 = vadd.f32 %v4959, 1.0
    %v4979 = vadd.f32 %v4961, 1.0
    %v4980 = vadd.f32 %v4963, 1.0
    %v4981 = vadd.f32 %v4965, 1.0
    %v4982 = vrcp.pop %v4966
    %v4983 = vmul.f32 1.0, %v4982
    %v4984 = vrcp.pop %v4967
    %v4985 = vmul.f32 1.0, %v4984
    %v4986 = vrcp.pop %v4968
    %v4987 = vmul.f32 1.0, %v4986
    %v4988 = vrcp.pop %v4969
    %v4989 = vmul.f32 1.0, %v4988
    %v4990 = vrcp.pop %v4970
    %v4991 = vmul.f32 1.0, %v4990
    %v4992 = vrcp.pop %v4971
    %v4993 = vmul.f32 1.0, %v4992
    %v4994 = vrcp.pop %v4972
    %v4995 = vmul.f32 1.0, %v4994
    %v4996 = vrcp.pop %v4973
    %v4997 = vmul.f32 1.0, %v4996
    %v4998 = vrcp.pop %v4974
    %v4999 = vmul.f32 1.0, %v4998
    %v5000 = vrcp.pop %v4975
    %v5001 = vmul.f32 1.0, %v5000
    %v5002 = vrcp.pop %v4976
    %v5003 = vmul.f32 1.0, %v5002
    %v5004 = vrcp.pop %v4977
    %v5005 = vmul.f32 1.0, %v5004
    %v5006 = vrcp.pop %v4978
    %v5007 = vmul.f32 1.0, %v5006
    %v5008 = vrcp.pop %v4979
    %v5009 = vmul.f32 1.0, %v5008
    %v5010 = vrcp.pop %v4980
    %v5011 = vmul.f32 1.0, %v5010
    %v5012 = vrcp.pop %v4981
    %v5013 = vmul.f32 1.0, %v5012
    %5015 = vset.pattern.permute.xlu0 0
    %5016 = vperm.xlu0 %5015, %v4983
    %v5017 = vpop.permute.xlu0 %5016
    %5020 = vset.pattern.permute.xlu0 0
    %5021 = vperm.xlu0 %5020, %v4985
    %v5022 = vpop.permute.xlu0 %5021
    %5025 = vset.pattern.permute.xlu0 0
    %5026 = vperm.xlu0 %5025, %v4987
    %v5027 = vpop.permute.xlu0 %5026
    %5030 = vset.pattern.permute.xlu0 0
    %5031 = vperm.xlu0 %5030, %v4989
    %v5032 = vpop.permute.xlu0 %5031
    %5035 = vset.pattern.permute.xlu0 0
    %5036 = vperm.xlu0 %5035, %v4991
    %v5037 = vpop.permute.xlu0 %5036
    %5040 = vset.pattern.permute.xlu0 0
    %5041 = vperm.xlu0 %5040, %v4993
    %v5042 = vpop.permute.xlu0 %5041
    %5045 = vset.pattern.permute.xlu0 0
    %5046 = vperm.xlu0 %5045, %v4995
    %v5047 = vpop.permute.xlu0 %5046
    %5050 = vset.pattern.permute.xlu0 0
    %5051 = vperm.xlu0 %5050, %v4997
    %v5052 = vpop.permute.xlu0 %5051
    %5055 = vset.pattern.permute.xlu0 0
    %5056 = vperm.xlu0 %5055, %v4999
    %v5057 = vpop.permute.xlu0 %5056
    %5060 = vset.pattern.permute.xlu0 0
    %5061 = vperm.xlu0 %5060, %v5001
    %v5062 = vpop.permute.xlu0 %5061
    %5065 = vset.pattern.permute.xlu0 0
    %5066 = vperm.xlu0 %5065, %v5003
    %v5067 = vpop.permute.xlu0 %5066
    %5070 = vset.pattern.permute.xlu0 0
    %5071 = vperm.xlu0 %5070, %v5005
    %v5072 = vpop.permute.xlu0 %5071
    %5075 = vset.pattern.permute.xlu0 0
    %5076 = vperm.xlu0 %5075, %v5007
    %v5077 = vpop.permute.xlu0 %5076
    %5080 = vset.pattern.permute.xlu0 0
    %5081 = vperm.xlu0 %5080, %v5009
    %v5082 = vpop.permute.xlu0 %5081
    %5085 = vset.pattern.permute.xlu0 0
    %5086 = vperm.xlu0 %5085, %v5011
    %v5087 = vpop.permute.xlu0 %5086
    %5090 = vset.pattern.permute.xlu0 0
    %5091 = vperm.xlu0 %5090, %v5013
    %v5092 = vpop.permute.xlu0 %5091
    %v5094 = vmul.f32 %v5017, %v4732
    %v5095 = vmul.f32 %v5017, %v4734
    %v5096 = vmul.f32 %v5022, %v4738
    %v5097 = vmul.f32 %v5022, %v4740
    %v5098 = vmul.f32 %v5027, %v4744
    %v5099 = vmul.f32 %v5027, %v4746
    %v5100 = vmul.f32 %v5032, %v4750
    %v5101 = vmul.f32 %v5032, %v4752
    %v5102 = vmul.f32 %v5037, %v4756
    %v5103 = vmul.f32 %v5037, %v4758
    %v5104 = vmul.f32 %v5042, %v4762
    %v5105 = vmul.f32 %v5042, %v4764
    %v5106 = vmul.f32 %v5047, %v4768
    %v5107 = vmul.f32 %v5047, %v4770
    %v5108 = vmul.f32 %v5052, %v4774
    %v5109 = vmul.f32 %v5052, %v4776
    %v5110 = vmul.f32 %v5057, %v4780
    %v5111 = vmul.f32 %v5057, %v4782
    %v5112 = vmul.f32 %v5062, %v4786
    %v5113 = vmul.f32 %v5062, %v4788
    %v5114 = vmul.f32 %v5067, %v4792
    %v5115 = vmul.f32 %v5067, %v4794
    %v5116 = vmul.f32 %v5072, %v4798
    %v5117 = vmul.f32 %v5072, %v4800
    %v5118 = vmul.f32 %v5077, %v4804
    %v5119 = vmul.f32 %v5077, %v4806
    %v5120 = vmul.f32 %v5082, %v4810
    %v5121 = vmul.f32 %v5082, %v4812
    %v5122 = vmul.f32 %v5087, %v4816
    %v5123 = vmul.f32 %v5087, %v4818
    %v5124 = vmul.f32 %v5092, %v4822
    %v5125 = vmul.f32 %v5092, %v4824
    %5126 = vmatprep.subr.mxu0 %v5095
    %5127 = vmatpush1.msra.mxu0 %v5094
    %5128 = vmatprep.subr.mxu0 %v5097
    %5129 = vmatpush1.msra.mxu0 %v5096
    %5130 = vmatprep.subr.mxu0 %v5099
    %5131 = vmatpush1.msra.mxu0 %v5098
    %5132 = vmatprep.subr.mxu0 %v5101
    %5133 = vmatpush1.msra.mxu0 %v5100
    %5134 = vmatprep.subr.mxu0 %v5103
    %5135 = vmatpush1.msra.mxu0 %v5102
    %5136 = vmatprep.subr.mxu0 %v5105
    %5137 = vmatpush1.msra.mxu0 %v5104
    %5138 = vmatprep.subr.mxu0 %v5107
    %5139 = vmatpush1.msra.mxu0 %v5106
    %5140 = vmatprep.subr.mxu0 %v5109
    %5141 = vmatpush1.msra.mxu0 %v5108
    %5142 = vmatprep.subr.mxu0 %v5111
    %5143 = vmatpush1.msra.mxu0 %v5110
    %5144 = vmatprep.subr.mxu0 %v5113
    %5145 = vmatpush1.msra.mxu0 %v5112
    %5146 = vmatprep.subr.mxu0 %v5115
    %5147 = vmatpush1.msra.mxu0 %v5114
    %5148 = vmatprep.subr.mxu0 %v5117
    %5149 = vmatpush1.msra.mxu0 %v5116
    %5150 = vmatprep.subr.mxu0 %v5119
    %5151 = vmatpush1.msra.mxu0 %v5118
    %5152 = vmatprep.subr.mxu0 %v5121
    %5153 = vmatpush1.msra.mxu0 %v5120
    %5154 = vmatprep.subr.mxu0 %v5123
    %5155 = vmatpush1.msra.mxu0 %v5122
    %5156 = vmatprep.subr.mxu0 %v5125
    %5157 = vmatpush1.msra.mxu0 %v5124
    %5158 = vmatprep.subr.mxu0 0.0
    %5159 = vmatpush1.msra.mxu0 0.0
    %5160 = vmatprep.subr.mxu0 0.0
    %5161 = vmatpush1.msra.mxu0 0.0
    %5162 = vmatprep.subr.mxu0 0.0
    %5163 = vmatpush1.msra.mxu0 0.0
    %5164 = vmatprep.subr.mxu0 0.0
    %5165 = vmatpush1.msra.mxu0 0.0
    %5166 = vmatprep.subr.mxu0 0.0
    %5167 = vmatpush1.msra.mxu0 0.0
    %5168 = vmatprep.subr.mxu0 0.0
    %5169 = vmatpush1.msra.mxu0 0.0
    %5170 = vmatprep.subr.mxu0 0.0
    %5171 = vmatpush1.msra.mxu0 0.0
    %5172 = vmatprep.subr.mxu0 0.0
    %5173 = vmatpush1.msra.mxu0 0.0
    %5174 = vmatprep.subr.mxu0 0.0
    %5175 = vmatpush1.msra.mxu0 0.0
    %5176 = vmatprep.subr.mxu0 0.0
    %5177 = vmatpush1.msra.mxu0 0.0
    %5178 = vmatprep.subr.mxu0 0.0
    %5179 = vmatpush1.msra.mxu0 0.0
    %5180 = vmatprep.subr.mxu0 0.0
    %5181 = vmatpush1.msra.mxu0 0.0
    %5182 = vmatprep.subr.mxu0 0.0
    %5183 = vmatpush1.msra.mxu0 0.0
    %5184 = vmatprep.subr.mxu0 0.0
    %5185 = vmatpush1.msra.mxu0 0.0
    %5186 = vmatprep.subr.mxu0 0.0
    %5187 = vmatpush1.msra.mxu0 0.0
    %5188 = vmatprep.subr.mxu0 0.0
    %5189 = vmatpush1.msra.mxu0 0.0
    %5190 = vmatprep.mubr.f32.mxu0 0.0
    %5191 = vmatmul.mubr.f32.gmra.mrb[0].mxu0 %v4465
    %v5192 = vpop.f32.mrb[0].mxu0
    %v5193 = vadd.f32 %v4828, %v5192
    %v5194 = vpop.f32.mrb[0].mxu0
    %v5195 = vadd.f32 %v4830, %v5194
    %5196 = vmatprep.mubr.f32.mxu0 0.0
    %5197 = vmatmul.mubr.f32.gmra.mrb[0].mxu0 %v4466
    %v5198 = vpop.f32.mrb[0].mxu0
    %v5199 = vadd.f32 %v4834, %v5198
    %v5200 = vpop.f32.mrb[0].mxu0
    %v5201 = vadd.f32 %v4836, %v5200
    %5202 = vdwg.mxu0
    %v5203 = vmul.f32 %v1053, %v5193
    %v5204 = vmul.f32 %v1057, %v5195
    %v5205 = vmul.f32 %v1067, %v5199
    %v5206 = vmul.f32 %v1071, %v5201
    %v5207 = vadd.f32 %v5203, %v5205
    %v5208 = vadd.f32 %v5204, %v5206
    %5209 = vmatprep.subr.mxu0 %v4414
    %5210 = vmatpush1.msra.mxu0 %v4413
    %5211 = vmatprep.subr.mxu0 0.0
    %5212 = vmatpush1.msra.mxu0 0.0
    %5213 = vmatprep.subr.mxu0 0.0
    %5214 = vmatpush1.msra.mxu0 0.0
    %5215 = vmatprep.subr.mxu0 0.0
    %5216 = vmatpush1.msra.mxu0 0.0
    %5217 = vmatprep.subr.mxu0 0.0
    %5218 = vmatpush1.msra.mxu0 0.0
    %5219 = vmatprep.subr.mxu0 0.0
    %5220 = vmatpush1.msra.mxu0 0.0
    %5221 = vmatprep.subr.mxu0 0.0
    %5222 = vmatpush1.msra.mxu0 0.0
    %5223 = vmatprep.subr.mxu0 0.0
    %5224 = vmatpush1.msra.mxu0 0.0
    %5225 = vmatprep.subr.mxu0 0.0
    %5226 = vmatpush1.msra.mxu0 0.0
    %5227 = vmatprep.subr.mxu0 0.0
    %5228 = vmatpush1.msra.mxu0 0.0
    %5229 = vmatprep.subr.mxu0 0.0
    %5230 = vmatpush1.msra.mxu0 0.0
    %5231 = vmatprep.subr.mxu0 0.0
    %5232 = vmatpush1.msra.mxu0 0.0
    %5233 = vmatprep.subr.mxu0 0.0
    %5234 = vmatpush1.msra.mxu0 0.0
    %5235 = vmatprep.subr.mxu0 0.0
    %5236 = vmatpush1.msra.mxu0 0.0
    %5237 = vmatprep.subr.mxu0 0.0
    %5238 = vmatpush1.msra.mxu0 0.0
    %5239 = vmatprep.subr.mxu0 0.0
    %5240 = vmatpush1.msra.mxu0 0.0
    %5241 = vmatprep.subr.mxu0 0.0
    %5242 = vmatpush1.msra.mxu0 0.0
    %5243 = vmatprep.subr.mxu0 0.0
    %5244 = vmatpush1.msra.mxu0 0.0
    %5245 = vmatprep.subr.mxu0 0.0
    %5246 = vmatpush1.msra.mxu0 0.0
    %5247 = vmatprep.subr.mxu0 0.0
    %5248 = vmatpush1.msra.mxu0 0.0
    %5249 = vmatprep.subr.mxu0 0.0
    %5250 = vmatpush1.msra.mxu0 0.0
    %5251 = vmatprep.subr.mxu0 0.0
    %5252 = vmatpush1.msra.mxu0 0.0
    %5253 = vmatprep.subr.mxu0 0.0
    %5254 = vmatpush1.msra.mxu0 0.0
    %5255 = vmatprep.subr.mxu0 0.0
    %5256 = vmatpush1.msra.mxu0 0.0
    %5257 = vmatprep.subr.mxu0 0.0
    %5258 = vmatpush1.msra.mxu0 0.0
    %5259 = vmatprep.subr.mxu0 0.0
    %5260 = vmatpush1.msra.mxu0 0.0
    %5261 = vmatprep.subr.mxu0 0.0
    %5262 = vmatpush1.msra.mxu0 0.0
    %5263 = vmatprep.subr.mxu0 0.0
    %5264 = vmatpush1.msra.mxu0 0.0
    %5265 = vmatprep.subr.mxu0 0.0
    %5266 = vmatpush1.msra.mxu0 0.0
    %5267 = vmatprep.subr.mxu0 0.0
    %5268 = vmatpush1.msra.mxu0 0.0
    %5269 = vmatprep.subr.mxu0 0.0
    %5270 = vmatpush1.msra.mxu0 0.0
    %5271 = vmatprep.subr.mxu0 0.0
    %5272 = vmatpush1.msra.mxu0 0.0
    %5273 = vmatprep.mubr.f32.mxu0 0.0
    %5274 = vmatmul.mubr.f32.gmra.mrb[0].mxu0 %v4468
    %v5275 = vpop.f32.mrb[0].mxu0
    %v5276 = vadd.f32 0.0, %v5275
    %v5277 = vpop.f32.mrb[0].mxu0
    %v5278 = vadd.f32 0.0, %v5277
    %5279 = vmatprep.mubr.f32.mxu0 0.0
    %5280 = vmatmul.mubr.f32.gmra.mrb[0].mxu0 %v4471
    %v5281 = vpop.f32.mrb[0].mxu0
    %v5282 = vadd.f32 0.0, %v5281
    %v5283 = vpop.f32.mrb[0].mxu0
    %v5284 = vadd.f32 0.0, %v5283
    %5285 = vmatprep.mubr.f32.mxu0 0.0
    %5286 = vmatmul.mubr.f32.gmra.mrb[0].mxu0 %v4474
    %v5287 = vpop.f32.mrb[0].mxu0
    %v5288 = vadd.f32 0.0, %v5287
    %v5289 = vpop.f32.mrb[0].mxu0
    %v5290 = vadd.f32 0.0, %v5289
    %5291 = vmatprep.mubr.f32.mxu0 0.0
    %5292 = vmatmul.mubr.f32.gmra.mrb[0].mxu0 %v4477
    %v5293 = vpop.f32.mrb[0].mxu0
    %v5294 = vadd.f32 0.0, %v5293
    %v5295 = vpop.f32.mrb[0].mxu0
    %v5296 = vadd.f32 0.0, %v5295
    %5297 = vmatprep.mubr.f32.mxu0 0.0
    %5298 = vmatmul.mubr.f32.gmra.mrb[0].mxu0 %v4480
    %v5299 = vpop.f32.mrb[0].mxu0
    %v5300 = vadd.f32 0.0, %v5299
    %v5301 = vpop.f32.mrb[0].mxu0
    %v5302 = vadd.f32 0.0, %v5301
    %5303 = vmatprep.mubr.f32.mxu0 0.0
    %5304 = vmatmul.mubr.f32.gmra.mrb[0].mxu0 %v4483
    %v5305 = vpop.f32.mrb[0].mxu0
    %v5306 = vadd.f32 0.0, %v5305
    %v5307 = vpop.f32.mrb[0].mxu0
    %v5308 = vadd.f32 0.0, %v5307
    %5309 = vmatprep.mubr.f32.mxu0 0.0
    %5310 = vmatmul.mubr.f32.gmra.mrb[0].mxu0 %v4486
    %v5311 = vpop.f32.mrb[0].mxu0
    %v5312 = vadd.f32 0.0, %v5311
    %v5313 = vpop.f32.mrb[0].mxu0
    %v5314 = vadd.f32 0.0, %v5313
    %5315 = vmatprep.mubr.f32.mxu0 0.0
    %5316 = vmatmul.mubr.f32.gmra.mrb[0].mxu0 %v4489
    %v5317 = vpop.f32.mrb[0].mxu0
    %v5318 = vadd.f32 0.0, %v5317
    %v5319 = vpop.f32.mrb[0].mxu0
    %v5320 = vadd.f32 0.0, %v5319
    %5321 = vmatprep.mubr.f32.mxu0 0.0
    %5322 = vmatmul.mubr.f32.gmra.mrb[0].mxu0 %v4492
    %v5323 = vpop.f32.mrb[0].mxu0
    %v5324 = vadd.f32 0.0, %v5323
    %v5325 = vpop.f32.mrb[0].mxu0
    %v5326 = vadd.f32 0.0, %v5325
    %5327 = vmatprep.mubr.f32.mxu0 0.0
    %5328 = vmatmul.mubr.f32.gmra.mrb[0].mxu0 %v4495
    %v5329 = vpop.f32.mrb[0].mxu0
    %v5330 = vadd.f32 0.0, %v5329
    %v5331 = vpop.f32.mrb[0].mxu0
    %v5332 = vadd.f32 0.0, %v5331
    %5333 = vmatprep.mubr.f32.mxu0 0.0
    %5334 = vmatmul.mubr.f32.gmra.mrb[0].mxu0 %v4498
    %v5335 = vpop.f32.mrb[0].mxu0
    %v5336 = vadd.f32 0.0, %v5335
    %v5337 = vpop.f32.mrb[0].mxu0
    %v5338 = vadd.f32 0.0, %v5337
    %5339 = vmatprep.mubr.f32.mxu0 0.0
    %5340 = vmatmul.mubr.f32.gmra.mrb[0].mxu0 %v4501
    %v5341 = vpop.f32.mrb[0].mxu0
    %v5342 = vadd.f32 0.0, %v5341
    %v5343 = vpop.f32.mrb[0].mxu0
    %v5344 = vadd.f32 0.0, %v5343
    %5345 = vmatprep.mubr.f32.mxu0 0.0
    %5346 = vmatmul.mubr.f32.gmra.mrb[0].mxu0 %v4504
    %v5347 = vpop.f32.mrb[0].mxu0
    %v5348 = vadd.f32 0.0, %v5347
    %v5349 = vpop.f32.mrb[0].mxu0
    %v5350 = vadd.f32 0.0, %v5349
    %5351 = vmatprep.mubr.f32.mxu0 0.0
    %5352 = vmatmul.mubr.f32.gmra.mrb[0].mxu0 %v4507
    %v5353 = vpop.f32.mrb[0].mxu0
    %v5354 = vadd.f32 0.0, %v5353
    %v5355 = vpop.f32.mrb[0].mxu0
    %v5356 = vadd.f32 0.0, %v5355
    %5357 = vmatprep.mubr.f32.mxu0 0.0
    %5358 = vmatmul.mubr.f32.gmra.mrb[0].mxu0 %v4510
    %v5359 = vpop.f32.mrb[0].mxu0
    %v5360 = vadd.f32 0.0, %v5359
    %v5361 = vpop.f32.mrb[0].mxu0
    %v5362 = vadd.f32 0.0, %v5361
    %5363 = vmatprep.mubr.f32.mxu0 0.0
    %5364 = vmatmul.mubr.f32.gmra.mrb[0].mxu0 %v4513
    %v5365 = vpop.f32.mrb[0].mxu0
    %v5366 = vadd.f32 0.0, %v5365
    %v5367 = vpop.f32.mrb[0].mxu0
    %v5368 = vadd.f32 0.0, %v5367
    %5369 = vmatprep.mubr.f32.mxu0 0.0
    %5370 = vmatmul.mubr.f32.gmra.mrb[0].mxu0 %v4516
    %v5371 = vpop.f32.mrb[0].mxu0
    %v5372 = vadd.f32 0.0, %v5371
    %v5373 = vpop.f32.mrb[0].mxu0
    %v5374 = vadd.f32 0.0, %v5373
    %5375 = vmatprep.mubr.f32.mxu0 0.0
    %5376 = vmatmul.mubr.f32.gmra.mrb[0].mxu0 %v4519
    %v5377 = vpop.f32.mrb[0].mxu0
    %v5378 = vadd.f32 0.0, %v5377
    %v5379 = vpop.f32.mrb[0].mxu0
    %v5380 = vadd.f32 0.0, %v5379
    %5381 = vmatprep.mubr.f32.mxu0 0.0
    %5382 = vmatmul.mubr.f32.gmra.mrb[0].mxu0 %v4522
    %v5383 = vpop.f32.mrb[0].mxu0
    %v5384 = vadd.f32 0.0, %v5383
    %v5385 = vpop.f32.mrb[0].mxu0
    %v5386 = vadd.f32 0.0, %v5385
    %5387 = vmatprep.mubr.f32.mxu0 0.0
    %5388 = vmatmul.mubr.f32.gmra.mrb[0].mxu0 %v4525
    %v5389 = vpop.f32.mrb[0].mxu0
    %v5390 = vadd.f32 0.0, %v5389
    %v5391 = vpop.f32.mrb[0].mxu0
    %v5392 = vadd.f32 0.0, %v5391
    %5393 = vmatprep.mubr.f32.mxu0 0.0
    %5394 = vmatmul.mubr.f32.gmra.mrb[0].mxu0 %v4528
    %v5395 = vpop.f32.mrb[0].mxu0
    %v5396 = vadd.f32 0.0, %v5395
    %v5397 = vpop.f32.mrb[0].mxu0
    %v5398 = vadd.f32 0.0, %v5397
    %5399 = vmatprep.mubr.f32.mxu0 0.0
    %5400 = vmatmul.mubr.f32.gmra.mrb[0].mxu0 %v4531
    %v5401 = vpop.f32.mrb[0].mxu0
    %v5402 = vadd.f32 0.0, %v5401
    %v5403 = vpop.f32.mrb[0].mxu0
    %v5404 = vadd.f32 0.0, %v5403
    %5405 = vmatprep.mubr.f32.mxu0 0.0
    %5406 = vmatmul.mubr.f32.gmra.mrb[0].mxu0 %v4534
    %v5407 = vpop.f32.mrb[0].mxu0
    %v5408 = vadd.f32 0.0, %v5407
    %v5409 = vpop.f32.mrb[0].mxu0
    %v5410 = vadd.f32 0.0, %v5409
    %5411 = vmatprep.mubr.f32.mxu0 0.0
    %5412 = vmatmul.mubr.f32.gmra.mrb[0].mxu0 %v4537
    %v5413 = vpop.f32.mrb[0].mxu0
    %v5414 = vadd.f32 0.0, %v5413
    %v5415 = vpop.f32.mrb[0].mxu0
    %v5416 = vadd.f32 0.0, %v5415
    %5417 = vmatprep.mubr.f32.mxu0 0.0
    %5418 = vmatmul.mubr.f32.gmra.mrb[0].mxu0 %v4540
    %v5419 = vpop.f32.mrb[0].mxu0
    %v5420 = vadd.f32 0.0, %v5419
    %v5421 = vpop.f32.mrb[0].mxu0
    %v5422 = vadd.f32 0.0, %v5421
    %5423 = vmatprep.mubr.f32.mxu0 0.0
    %5424 = vmatmul.mubr.f32.gmra.mrb[0].mxu0 %v4543
    %v5425 = vpop.f32.mrb[0].mxu0
    %v5426 = vadd.f32 0.0, %v5425
    %v5427 = vpop.f32.mrb[0].mxu0
    %v5428 = vadd.f32 0.0, %v5427
    %5429 = vmatprep.mubr.f32.mxu0 0.0
    %5430 = vmatmul.mubr.f32.gmra.mrb[0].mxu0 %v4546
    %v5431 = vpop.f32.mrb[0].mxu0
    %v5432 = vadd.f32 0.0, %v5431
    %v5433 = vpop.f32.mrb[0].mxu0
    %v5434 = vadd.f32 0.0, %v5433
    %5435 = vmatprep.mubr.f32.mxu0 0.0
    %5436 = vmatmul.mubr.f32.gmra.mrb[0].mxu0 %v4549
    %v5437 = vpop.f32.mrb[0].mxu0
    %v5438 = vadd.f32 0.0, %v5437
    %v5439 = vpop.f32.mrb[0].mxu0
    %v5440 = vadd.f32 0.0, %v5439
    %5441 = vmatprep.mubr.f32.mxu0 0.0
    %5442 = vmatmul.mubr.f32.gmra.mrb[0].mxu0 %v4552
    %v5443 = vpop.f32.mrb[0].mxu0
    %v5444 = vadd.f32 0.0, %v5443
    %v5445 = vpop.f32.mrb[0].mxu0
    %v5446 = vadd.f32 0.0, %v5445
    %5447 = vmatprep.mubr.f32.mxu0 0.0
    %5448 = vmatmul.mubr.f32.gmra.mrb[0].mxu0 %v4555
    %v5449 = vpop.f32.mrb[0].mxu0
    %v5450 = vadd.f32 0.0, %v5449
    %v5451 = vpop.f32.mrb[0].mxu0
    %v5452 = vadd.f32 0.0, %v5451
    %5453 = vmatprep.mubr.f32.mxu0 0.0
    %5454 = vmatmul.mubr.f32.gmra.mrb[0].mxu0 %v4558
    %v5455 = vpop.f32.mrb[0].mxu0
    %v5456 = vadd.f32 0.0, %v5455
    %v5457 = vpop.f32.mrb[0].mxu0
    %v5458 = vadd.f32 0.0, %v5457
    %5459 = vmatprep.mubr.f32.mxu0 0.0
    %5460 = vmatmul.mubr.f32.gmra.mrb[0].mxu0 %v4561
    %v5461 = vpop.f32.mrb[0].mxu0
    %v5462 = vadd.f32 0.0, %v5461
    %v5463 = vpop.f32.mrb[0].mxu0
    %v5464 = vadd.f32 0.0, %v5463
    %5465 = vmatprep.mubr.f32.mxu0 0.0
    %5466 = vmatmul.mubr.f32.gmra.mrb[0].mxu0 %v4564
    %v5467 = vpop.f32.mrb[0].mxu0
    %v5468 = vadd.f32 0.0, %v5467
    %v5469 = vpop.f32.mrb[0].mxu0
    %v5470 = vadd.f32 0.0, %v5469
    %5471 = vmatprep.mubr.f32.mxu0 0.0
    %5472 = vmatmul.mubr.f32.gmra.mrb[0].mxu0 %v4567
    %v5473 = vpop.f32.mrb[0].mxu0
    %v5474 = vadd.f32 0.0, %v5473
    %v5475 = vpop.f32.mrb[0].mxu0
    %v5476 = vadd.f32 0.0, %v5475
    %5477 = vdwg.mxu0
    %v5478 = vadd.f32 %v5276, %v5278
    %5479 = vadd.xlane.f32.xlu0 %v5478
    %v5480 = vpop.xlane.xlu0 %5479
    %v5481 = vadd.f32 %v5282, %v5284
    %5482 = vadd.xlane.f32.xlu0 %v5481
    %v5483 = vpop.xlane.xlu0 %5482
    %v5484 = vadd.f32 %v5288, %v5290
    %5485 = vadd.xlane.f32.xlu0 %v5484
    %v5486 = vpop.xlane.xlu0 %5485
    %v5487 = vadd.f32 %v5294, %v5296
    %5488 = vadd.xlane.f32.xlu0 %v5487
    %v5489 = vpop.xlane.xlu0 %5488
    %v5490 = vadd.f32 %v5300, %v5302
    %5491 = vadd.xlane.f32.xlu0 %v5490
    %v5492 = vpop.xlane.xlu0 %5491
    %v5493 = vadd.f32 %v5306, %v5308
    %5494 = vadd.xlane.f32.xlu0 %v5493
    %v5495 = vpop.xlane.xlu0 %5494
    %v5496 = vadd.f32 %v5312, %v5314
    %5497 = vadd.xlane.f32.xlu0 %v5496
    %v5498 = vpop.xlane.xlu0 %5497
    %v5499 = vadd.f32 %v5318, %v5320
    %5500 = vadd.xlane.f32.xlu0 %v5499
    %v5501 = vpop.xlane.xlu0 %5500
    %v5502 = vadd.f32 %v5324, %v5326
    %5503 = vadd.xlane.f32.xlu0 %v5502
    %v5504 = vpop.xlane.xlu0 %5503
    %v5505 = vadd.f32 %v5330, %v5332
    %5506 = vadd.xlane.f32.xlu0 %v5505
    %v5507 = vpop.xlane.xlu0 %5506
    %v5508 = vadd.f32 %v5336, %v5338
    %5509 = vadd.xlane.f32.xlu0 %v5508
    %v5510 = vpop.xlane.xlu0 %5509
    %v5511 = vadd.f32 %v5342, %v5344
    %5512 = vadd.xlane.f32.xlu0 %v5511
    %v5513 = vpop.xlane.xlu0 %5512
    %v5514 = vadd.f32 %v5348, %v5350
    %5515 = vadd.xlane.f32.xlu0 %v5514
    %v5516 = vpop.xlane.xlu0 %5515
    %v5517 = vadd.f32 %v5354, %v5356
    %5518 = vadd.xlane.f32.xlu0 %v5517
    %v5519 = vpop.xlane.xlu0 %5518
    %v5520 = vadd.f32 %v5360, %v5362
    %5521 = vadd.xlane.f32.xlu0 %v5520
    %v5522 = vpop.xlane.xlu0 %5521
    %v5523 = vadd.f32 %v5366, %v5368
    %5524 = vadd.xlane.f32.xlu0 %v5523
    %v5525 = vpop.xlane.xlu0 %5524
    %v5526 = vmul.f32 %v5480, %v720
    %v5527 = vmul.f32 %v5483, %v720
    %v5528 = vmul.f32 %v5486, %v720
    %v5529 = vmul.f32 %v5489, %v720
    %v5530 = vmul.f32 %v5492, %v720
    %v5531 = vmul.f32 %v5495, %v720
    %v5532 = vmul.f32 %v5498, %v720
    %v5533 = vmul.f32 %v5501, %v720
    %v5534 = vmul.f32 %v5504, %v720
    %v5535 = vmul.f32 %v5507, %v720
    %v5536 = vmul.f32 %v5510, %v720
    %v5537 = vmul.f32 %v5513, %v720
    %v5538 = vmul.f32 %v5516, %v720
    %v5539 = vmul.f32 %v5519, %v720
    %v5540 = vmul.f32 %v5522, %v720
    %v5541 = vmul.f32 %v5525, %v720
    %v5542 = vadd.f32 %v5526, %v4449
    %v5543 = vadd.f32 %v5527, %v4450
    %v5544 = vadd.f32 %v5528, %v4451
    %v5545 = vadd.f32 %v5529, %v4452
    %v5546 = vadd.f32 %v5530, %v4453
    %v5547 = vadd.f32 %v5531, %v4454
    %v5548 = vadd.f32 %v5532, %v4455
    %v5549 = vadd.f32 %v5533, %v4456
    %v5550 = vadd.f32 %v5534, %v4457
    %v5551 = vadd.f32 %v5535, %v4458
    %v5552 = vadd.f32 %v5536, %v4459
    %v5553 = vadd.f32 %v5537, %v4460
    %v5554 = vadd.f32 %v5538, %v4461
    %v5555 = vadd.f32 %v5539, %v4462
    %v5556 = vadd.f32 %v5540, %v4463
    %v5557 = vadd.f32 %v5541, %v4464
    %v5558 = vxor.u32 %v5542, 2147483648
    %v5559 = vxor.u32 %v5543, 2147483648
    %v5560 = vxor.u32 %v5544, 2147483648
    %v5561 = vxor.u32 %v5545, 2147483648
    %v5562 = vxor.u32 %v5546, 2147483648
    %v5563 = vxor.u32 %v5547, 2147483648
    %v5564 = vxor.u32 %v5548, 2147483648
    %v5565 = vxor.u32 %v5549, 2147483648
    %v5566 = vxor.u32 %v5550, 2147483648
    %v5567 = vxor.u32 %v5551, 2147483648
    %v5568 = vxor.u32 %v5552, 2147483648
    %v5569 = vxor.u32 %v5553, 2147483648
    %v5570 = vxor.u32 %v5554, 2147483648
    %v5571 = vxor.u32 %v5555, 2147483648
    %v5572 = vxor.u32 %v5556, 2147483648
    %v5573 = vxor.u32 %v5557, 2147483648
    %v5574 = vmul.f32 %v5558, 1.442695
    %v5575 = vpow.pop %v5574
    %v5576 = vmul.f32 %v5559, 1.442695
    %v5577 = vpow.pop %v5576
    %v5578 = vmul.f32 %v5560, 1.442695
    %v5579 = vpow.pop %v5578
    %v5580 = vmul.f32 %v5561, 1.442695
    %v5581 = vpow.pop %v5580
    %v5582 = vmul.f32 %v5562, 1.442695
    %v5583 = vpow.pop %v5582
    %v5584 = vmul.f32 %v5563, 1.442695
    %v5585 = vpow.pop %v5584
    %v5586 = vmul.f32 %v5564, 1.442695
    %v5587 = vpow.pop %v5586
    %v5588 = vmul.f32 %v5565, 1.442695
    %v5589 = vpow.pop %v5588
    %v5590 = vmul.f32 %v5566, 1.442695
    %v5591 = vpow.pop %v5590
    %v5592 = vmul.f32 %v5567, 1.442695
    %v5593 = vpow.pop %v5592
    %v5594 = vmul.f32 %v5568, 1.442695
    %v5595 = vpow.pop %v5594
    %v5596 = vmul.f32 %v5569, 1.442695
    %v5597 = vpow.pop %v5596
    %v5598 = vmul.f32 %v5570, 1.442695
    %v5599 = vpow.pop %v5598
    %v5600 = vmul.f32 %v5571, 1.442695
    %v5601 = vpow.pop %v5600
    %v5602 = vmul.f32 %v5572, 1.442695
    %v5603 = vpow.pop %v5602
    %v5604 = vmul.f32 %v5573, 1.442695
    %v5605 = vpow.pop %v5604
    %v5606 = vadd.f32 %v5575, 1.0
    %v5607 = vadd.f32 %v5577, 1.0
    %v5608 = vadd.f32 %v5579, 1.0
    %v5609 = vadd.f32 %v5581, 1.0
    %v5610 = vadd.f32 %v5583, 1.0
    %v5611 = vadd.f32 %v5585, 1.0
    %v5612 = vadd.f32 %v5587, 1.0
    %v5613 = vadd.f32 %v5589, 1.0
    %v5614 = vadd.f32 %v5591, 1.0
    %v5615 = vadd.f32 %v5593, 1.0
    %v5616 = vadd.f32 %v5595, 1.0
    %v5617 = vadd.f32 %v5597, 1.0
    %v5618 = vadd.f32 %v5599, 1.0
    %v5619 = vadd.f32 %v5601, 1.0
    %v5620 = vadd.f32 %v5603, 1.0
    %v5621 = vadd.f32 %v5605, 1.0
    %v5622 = vrcp.pop %v5606
    %v5623 = vmul.f32 1.0, %v5622
    %v5624 = vrcp.pop %v5607
    %v5625 = vmul.f32 1.0, %v5624
    %v5626 = vrcp.pop %v5608
    %v5627 = vmul.f32 1.0, %v5626
    %v5628 = vrcp.pop %v5609
    %v5629 = vmul.f32 1.0, %v5628
    %v5630 = vrcp.pop %v5610
    %v5631 = vmul.f32 1.0, %v5630
    %v5632 = vrcp.pop %v5611
    %v5633 = vmul.f32 1.0, %v5632
    %v5634 = vrcp.pop %v5612
    %v5635 = vmul.f32 1.0, %v5634
    %v5636 = vrcp.pop %v5613
    %v5637 = vmul.f32 1.0, %v5636
    %v5638 = vrcp.pop %v5614
    %v5639 = vmul.f32 1.0, %v5638
    %v5640 = vrcp.pop %v5615
    %v5641 = vmul.f32 1.0, %v5640
    %v5642 = vrcp.pop %v5616
    %v5643 = vmul.f32 1.0, %v5642
    %v5644 = vrcp.pop %v5617
    %v5645 = vmul.f32 1.0, %v5644
    %v5646 = vrcp.pop %v5618
    %v5647 = vmul.f32 1.0, %v5646
    %v5648 = vrcp.pop %v5619
    %v5649 = vmul.f32 1.0, %v5648
    %v5650 = vrcp.pop %v5620
    %v5651 = vmul.f32 1.0, %v5650
    %v5652 = vrcp.pop %v5621
    %v5653 = vmul.f32 1.0, %v5652
    %5655 = vset.pattern.permute.xlu0 0
    %5656 = vperm.xlu0 %5655, %v5623
    %v5657 = vpop.permute.xlu0 %5656
    %5660 = vset.pattern.permute.xlu0 0
    %5661 = vperm.xlu0 %5660, %v5625
    %v5662 = vpop.permute.xlu0 %5661
    %5665 = vset.pattern.permute.xlu0 0
    %5666 = vperm.xlu0 %5665, %v5627
    %v5667 = vpop.permute.xlu0 %5666
    %5670 = vset.pattern.permute.xlu0 0
    %5671 = vperm.xlu0 %5670, %v5629
    %v5672 = vpop.permute.xlu0 %5671
    %5675 = vset.pattern.permute.xlu0 0
    %5676 = vperm.xlu0 %5675, %v5631
    %v5677 = vpop.permute.xlu0 %5676
    %5680 = vset.pattern.permute.xlu0 0
    %5681 = vperm.xlu0 %5680, %v5633
    %v5682 = vpop.permute.xlu0 %5681
    %5685 = vset.pattern.permute.xlu0 0
    %5686 = vperm.xlu0 %5685, %v5635
    %v5687 = vpop.permute.xlu0 %5686
    %5690 = vset.pattern.permute.xlu0 0
    %5691 = vperm.xlu0 %5690, %v5637
    %v5692 = vpop.permute.xlu0 %5691
    %5695 = vset.pattern.permute.xlu0 0
    %5696 = vperm.xlu0 %5695, %v5639
    %v5697 = vpop.permute.xlu0 %5696
    %5700 = vset.pattern.permute.xlu0 0
    %5701 = vperm.xlu0 %5700, %v5641
    %v5702 = vpop.permute.xlu0 %5701
    %5705 = vset.pattern.permute.xlu0 0
    %5706 = vperm.xlu0 %5705, %v5643
    %v5707 = vpop.permute.xlu0 %5706
    %5710 = vset.pattern.permute.xlu0 0
    %5711 = vperm.xlu0 %5710, %v5645
    %v5712 = vpop.permute.xlu0 %5711
    %5715 = vset.pattern.permute.xlu0 0
    %5716 = vperm.xlu0 %5715, %v5647
    %v5717 = vpop.permute.xlu0 %5716
    %5720 = vset.pattern.permute.xlu0 0
    %5721 = vperm.xlu0 %5720, %v5649
    %v5722 = vpop.permute.xlu0 %5721
    %5725 = vset.pattern.permute.xlu0 0
    %5726 = vperm.xlu0 %5725, %v5651
    %v5727 = vpop.permute.xlu0 %5726
    %5730 = vset.pattern.permute.xlu0 0
    %5731 = vperm.xlu0 %5730, %v5653
    %v5732 = vpop.permute.xlu0 %5731
    %v5734 = vmul.f32 %v5657, %v5372
    %v5735 = vmul.f32 %v5657, %v5374
    %v5736 = vmul.f32 %v5662, %v5378
    %v5737 = vmul.f32 %v5662, %v5380
    %v5738 = vmul.f32 %v5667, %v5384
    %v5739 = vmul.f32 %v5667, %v5386
    %v5740 = vmul.f32 %v5672, %v5390
    %v5741 = vmul.f32 %v5672, %v5392
    %v5742 = vmul.f32 %v5677, %v5396
    %v5743 = vmul.f32 %v5677, %v5398
    %v5744 = vmul.f32 %v5682, %v5402
    %v5745 = vmul.f32 %v5682, %v5404
    %v5746 = vmul.f32 %v5687, %v5408
    %v5747 = vmul.f32 %v5687, %v5410
    %v5748 = vmul.f32 %v5692, %v5414
    %v5749 = vmul.f32 %v5692, %v5416
    %v5750 = vmul.f32 %v5697, %v5420
    %v5751 = vmul.f32 %v5697, %v5422
    %v5752 = vmul.f32 %v5702, %v5426
    %v5753 = vmul.f32 %v5702, %v5428
    %v5754 = vmul.f32 %v5707, %v5432
    %v5755 = vmul.f32 %v5707, %v5434
    %v5756 = vmul.f32 %v5712, %v5438
    %v5757 = vmul.f32 %v5712, %v5440
    %v5758 = vmul.f32 %v5717, %v5444
    %v5759 = vmul.f32 %v5717, %v5446
    %v5760 = vmul.f32 %v5722, %v5450
    %v5761 = vmul.f32 %v5722, %v5452
    %v5762 = vmul.f32 %v5727, %v5456
    %v5763 = vmul.f32 %v5727, %v5458
    %v5764 = vmul.f32 %v5732, %v5462
    %v5765 = vmul.f32 %v5732, %v5464
    %5766 = vmatprep.subr.mxu0 %v5735
    %5767 = vmatpush1.msra.mxu0 %v5734
    %5768 = vmatprep.subr.mxu0 %v5737
    %5769 = vmatpush1.msra.mxu0 %v5736
    %5770 = vmatprep.subr.mxu0 %v5739
    %5771 = vmatpush1.msra.mxu0 %v5738
    %5772 = vmatprep.subr.mxu0 %v5741
    %5773 = vmatpush1.msra.mxu0 %v5740
    %5774 = vmatprep.subr.mxu0 %v5743
    %5775 = vmatpush1.msra.mxu0 %v5742
    %5776 = vmatprep.subr.mxu0 %v5745
    %5777 = vmatpush1.msra.mxu0 %v5744
    %5778 = vmatprep.subr.mxu0 %v5747
    %5779 = vmatpush1.msra.mxu0 %v5746
    %5780 = vmatprep.subr.mxu0 %v5749
    %5781 = vmatpush1.msra.mxu0 %v5748
    %5782 = vmatprep.subr.mxu0 %v5751
    %5783 = vmatpush1.msra.mxu0 %v5750
    %5784 = vmatprep.subr.mxu0 %v5753
    %5785 = vmatpush1.msra.mxu0 %v5752
    %5786 = vmatprep.subr.mxu0 %v5755
    %5787 = vmatpush1.msra.mxu0 %v5754
    %5788 = vmatprep.subr.mxu0 %v5757
    %5789 = vmatpush1.msra.mxu0 %v5756
    %5790 = vmatprep.subr.mxu0 %v5759
    %5791 = vmatpush1.msra.mxu0 %v5758
    %5792 = vmatprep.subr.mxu0 %v5761
    %5793 = vmatpush1.msra.mxu0 %v5760
    %5794 = vmatprep.subr.mxu0 %v5763
    %5795 = vmatpush1.msra.mxu0 %v5762
    %5796 = vmatprep.subr.mxu0 %v5765
    %5797 = vmatpush1.msra.mxu0 %v5764
    %5798 = vmatprep.subr.mxu0 0.0
    %5799 = vmatpush1.msra.mxu0 0.0
    %5800 = vmatprep.subr.mxu0 0.0
    %5801 = vmatpush1.msra.mxu0 0.0
    %5802 = vmatprep.subr.mxu0 0.0
    %5803 = vmatpush1.msra.mxu0 0.0
    %5804 = vmatprep.subr.mxu0 0.0
    %5805 = vmatpush1.msra.mxu0 0.0
    %5806 = vmatprep.subr.mxu0 0.0
    %5807 = vmatpush1.msra.mxu0 0.0
    %5808 = vmatprep.subr.mxu0 0.0
    %5809 = vmatpush1.msra.mxu0 0.0
    %5810 = vmatprep.subr.mxu0 0.0
    %5811 = vmatpush1.msra.mxu0 0.0
    %5812 = vmatprep.subr.mxu0 0.0
    %5813 = vmatpush1.msra.mxu0 0.0
    %5814 = vmatprep.subr.mxu0 0.0
    %5815 = vmatpush1.msra.mxu0 0.0
    %5816 = vmatprep.subr.mxu0 0.0
    %5817 = vmatpush1.msra.mxu0 0.0
    %5818 = vmatprep.subr.mxu0 0.0
    %5819 = vmatpush1.msra.mxu0 0.0
    %5820 = vmatprep.subr.mxu0 0.0
    %5821 = vmatpush1.msra.mxu0 0.0
    %5822 = vmatprep.subr.mxu0 0.0
    %5823 = vmatpush1.msra.mxu0 0.0
    %5824 = vmatprep.subr.mxu0 0.0
    %5825 = vmatpush1.msra.mxu0 0.0
    %5826 = vmatprep.subr.mxu0 0.0
    %5827 = vmatpush1.msra.mxu0 0.0
    %5828 = vmatprep.subr.mxu0 0.0
    %5829 = vmatpush1.msra.mxu0 0.0
    %5830 = vmatprep.mubr.f32.mxu0 0.0
    %5831 = vmatmul.mubr.f32.gmra.mrb[0].mxu0 %v4465
    %v5832 = vpop.f32.mrb[0].mxu0
    %v5833 = vadd.f32 %v5468, %v5832
    %v5834 = vpop.f32.mrb[0].mxu0
    %v5835 = vadd.f32 %v5470, %v5834
    %5836 = vmatprep.mubr.f32.mxu0 0.0
    %5837 = vmatmul.mubr.f32.gmra.mrb[0].mxu0 %v4466
    %v5838 = vpop.f32.mrb[0].mxu0
    %v5839 = vadd.f32 %v5474, %v5838
    %v5840 = vpop.f32.mrb[0].mxu0
    %v5841 = vadd.f32 %v5476, %v5840
    %5842 = vdwg.mxu0
    %v5843 = vmul.f32 %v1741, %v5833
    %v5844 = vmul.f32 %v1745, %v5835
    %v5845 = vmul.f32 %v1753, %v5839
    %v5846 = vmul.f32 %v1757, %v5841
    %v5847 = vadd.f32 %v5843, %v5845
    %v5848 = vadd.f32 %v5844, %v5846
    %v5849 = vadd.f32 %v5207, %v5208
    %5850 = vadd.xlane.f32.xlu0 %v5849
    %v5851 = vpop.xlane.xlu0 %5850
    %v5852 = vmul.f32 %v5207, %v5207
    %v5853 = vmul.f32 %v5208, %v5208
    %v5854 = vadd.f32 %v5852, %v5853
    %5855 = vadd.xlane.f32.xlu0 %v5854
    %v5856 = vpop.xlane.xlu0 %5855
    %v5857 = vadd.f32 %v5847, %v5848
    %5858 = vadd.xlane.f32.xlu0 %v5857
    %v5859 = vpop.xlane.xlu0 %5858
    %v5860 = vadd.f32 %v5851, %v5859
    %v5861 = vmul.f32 %v5847, %v5847
    %v5862 = vmul.f32 %v5848, %v5848
    %v5863 = vadd.f32 %v5861, %v5862
    %5864 = vadd.xlane.f32.xlu0 %v5863
    %v5865 = vpop.xlane.xlu0 %5864
    %v5866 = vadd.f32 %v5856, %v5865
    %v5867 = vmul.f32 %v5860, 0.001953125
    %v5868 = vmul.f32 %v5866, 0.001953125
    %v5869 = vmul.f32 %v5867, %v5867
    %v5870 = vsub.f32 %v5868, %v5869
    %v5871 = vadd.f32 %v5870, 1e-05
    %v5872 = vrsqrt.pop %v5871
    %v5873 = vsub.f32 %v5207, %v5867
    %v5874 = vsub.f32 %v5208, %v5867
    %v5875 = vmul.f32 %v5873, %v5872
    %v5876 = vmul.f32 %v5874, %v5872
    %v5877 = vmax.f32 %v5875, 0.0
    %v5878 = vmax.f32 %v5876, 0.0
    %v5879 = vsub.f32 %v5847, %v5867
    %v5880 = vsub.f32 %v5848, %v5867
    %v5881 = vmul.f32 %v5879, %v5872
    %v5882 = vmul.f32 %v5880, %v5872
    %v5883 = vmax.f32 %v5881, 0.0
    %v5884 = vmax.f32 %v5882, 0.0
    %v5885 = vadd.f32 %v5877, %v221
    %v5886 = vadd.f32 %v5878, %v222
    %v5887 = vmax.f32 %v5885, 0.0
    %v5888 = vmax.f32 %v5886, 0.0
    %5889 = vst [vmem:[#allocation2] sm:$0xff] %v5887
    %5890 = vst [vmem:[#allocation2 + $0x8] sm:$0xff] %v5888
    %v5891 = vadd.f32 %v5883, %v224
    %v5892 = vadd.f32 %v5884, %v225
    %v5893 = vmax.f32 %v5891, 0.0
    %v5894 = vmax.f32 %v5892, 0.0
    %s5895 = scalar_lea.vmem [#allocation2], 16
    %5896 = vst [vmem:[%s5895] sm:$0xff] %v5893
    %5897 = vst [vmem:[%s5895 + $0x8] sm:$0xff] %v5894
    // Predicated region
    $region50: #{tpu_custom_call.1} parent=1 // pred_check
      _
    $region51: #{tpu_custom_call.1} parent=1 // pred_check_branch
      %5899 = sbr.rel (0) target = $region53
    $region52: #{tpu_custom_call.1} parent=1 // pred_region
      %s5901 = ssub.s32 512, 512
      %5902 = vsyncadd [#allocation3], %s5901
      %s5903 = sshll.u32 [#allocation2], 4
      %s5904 = int_to_ptr.vmem [resolvable:$true] %s5903
      %5909 = dma.vmem_to_hbm [thread:$0]  %s5904, 512, %s12, [#allocation3], 256, 256, 16
    $region53: #{tpu_custom_call.1} parent=1 // pred_fallthru
      _
    // Predicated region
    $region54: #{tpu_custom_call.1} parent=1 // pred_check
      _
    $region55: #{tpu_custom_call.1} parent=1 // pred_check_branch
      %5911 = sbr.rel (0) target = $region57
    $region56: #{tpu_custom_call.1} parent=1 // pred_region
      %5912 = dma.done [#allocation3], 512
    $region57: #{tpu_custom_call.1} parent=1 // pred_fallthru
      _
    %5913 = vsyncpa [#allocation3], 1

</llo_original>
